<compile_context>
chip_gen: v6e
topology: v6e:2x2x1
jax: 0.10.0
libtpu: 0.0.40
codegen_flags: <defaults>
</compile_context>

<pallas_src>
import functools

import numpy as np
import jax
import jax.numpy as jnp
from jax.experimental import pallas as pl
from jax.experimental.pallas import tpu as pltpu


def cas_kernel(x_ref, w1_ref, w2_ref, wa_ref, wb_ref, out_ref,
               pav_ref, pmx_ref, *, W, P):
    """One grid step: a (Bt, C, HW) tile of images.

    x_ref  : (Bt, C, HW)    input tile
    w1_ref : (hid, C)       CA MLP first 1x1 conv
    w2_ref : (C, hid)       CA MLP second 1x1 conv
    wa_ref : (49, HW)       7x7 weights for the avg channel, pre-multiplied by
                            the per-tap horizontal-validity lane mask
    wb_ref : (49, HW)       same for the max channel
    pav/pmx_ref : (Bt, HW + 2P) zero-padded scratch lines for the pooled maps
    """
    Bt, C, HW = x_ref.shape
    n_cols = 2 * Bt

    # ---------------- CABlock: fused channel-attention MLP ----------------
    # Pack avg/max pooled vectors of all Bt images into one (C, 2*Bt) matrix
    # (columns 0..Bt-1 = avg, Bt..2Bt-1 = max) using iota one-hots (no concat).
    lane = jax.lax.broadcasted_iota(jnp.int32, (1, n_cols), 1)
    v = jnp.zeros((C, n_cols), jnp.float32)
    for b in range(Bt):
        xb = x_ref[b]                                     # (C, HW)
        avg = jnp.mean(xb, axis=1, keepdims=True)         # AdaptiveAvgPool2d(1)
        mx = jnp.max(xb, axis=1, keepdims=True)           # AdaptiveMaxPool2d(1)
        v = (v
             + avg * (lane == b).astype(jnp.float32)
             + mx * (lane == Bt + b).astype(jnp.float32))

    # Shared MLP: Conv1x1 -> ReLU -> Conv1x1 on all 2*Bt pooled vectors at once.
    h = jnp.maximum(
        jnp.dot(w1_ref[...], v, preferred_element_type=jnp.float32), 0.0)
    y = jnp.dot(w2_ref[...], h, preferred_element_type=jnp.float32)   # (C, 2Bt)

    # ------------- per-image channel weights + channel pooling -------------
    pav_ref[...] = jnp.zeros_like(pav_ref)
    pmx_ref[...] = jnp.zeros_like(pmx_ref)
    ca_w = []
    for b in range(Bt):
        w_b = jax.nn.sigmoid(y[:, b:b + 1] + y[:, Bt + b:Bt + b + 1])  # (C, 1)
        ca_w.append(w_b)
        ca_xb = x_ref[b] * w_b                                         # (C, HW)
        pav_ref[b:b + 1, P:P + HW] = jnp.mean(ca_xb, axis=0, keepdims=True)
        pmx_ref[b:b + 1, P:P + HW] = jnp.max(ca_xb, axis=0, keepdims=True)

    # -------- SABlock: 7x7 conv as 49 shifted multiply-adds (VPU only) -----
    acc = jnp.zeros((Bt, HW), jnp.float32)
    for ky in range(7):
        for kx in range(7):
            t = ky * 7 + kx
            s0 = P + (ky - 3) * W + (kx - 3)     # static window offset
            acc = acc + (pav_ref[:, s0:s0 + HW] * wa_ref[t:t + 1, :]
                         + pmx_ref[:, s0:s0 + HW] * wb_ref[t:t + 1, :])
    sa_w = jax.nn.sigmoid(acc)                                         # (Bt, HW)

    # ---------------- final: out = (x * ca_w) * sa_w ----------------
    for b in range(Bt):
        out_ref[b] = (x_ref[b] * ca_w[b] * sa_w[b:b + 1, :]).astype(out_ref.dtype)


def _weighted_dx_masks(w_conv, H, W):
    """Fold the 7x7 conv weights with the horizontal-validity lane masks.

    Returns (wa, wb): (49, HW) f32 arrays where row t = ky*7+kx holds
    w_conv[0, c, ky, kx] * [0 <= (p % W) + (kx-3) < W]  for every flat p.
    Only numpy constants are used for the masks -> safe under jit.
    """
    HW = H * W
    col = np.arange(HW) % W                                  # static
    dxs = np.arange(7) - 3
    valid = ((col[None, :] + dxs[:, None] >= 0) &
             (col[None, :] + dxs[:, None] < W)).astype(np.float32)   # (7, HW)
    mask49 = jnp.asarray(valid[np.arange(49) % 7, :])                # (49, HW)
    w = jnp.reshape(w_conv.astype(jnp.float32), (2, 49))             # (2, 49)
    wa = w[0][:, None] * mask49                                      # avg channel
    wb = w[1][:, None] * mask49                                      # max channel
    return wa, wb


def _pick_batch_tile(B, C, HW):
    """Biggest divisor of B that keeps >=2 grid steps (megacore) and a small block."""
    cap = max(1, (4 << 20) // max(1, C * HW * 4))
    target = max(1, B // 2)
    for d in range(min(cap, target), 0, -1):
        if B % d == 0:
            return d
    return 1


def cas_block(x_nchw, w1, w2, w_conv, *, batch_tile=None):
    """x_nchw: (B, C, H, W).  w1: (hid, C), w2: (C, hid), w_conv: (1, 2, 7, 7)."""
    B, C, H, W = x_nchw.shape
    HW = H * W
    hid = w1.shape[0]
    x = x_nchw.reshape(B, C, HW).astype(jnp.float32)

    wa, wb = _weighted_dx_masks(w_conv, H, W)

    if batch_tile is None:
        batch_tile = _pick_batch_tile(B, C, HW)
    assert B % batch_tile == 0, "batch_tile must divide B"
    grid = (B // batch_tile,)

    # Zero pad (rounded up to a 128-lane multiple) on each side of the pooled
    # line so every vertical out-of-range tap reads zeros.
    P = ((3 * W + 3 + 127) // 128) * 128

    out = pl.pallas_call(
        functools.partial(cas_kernel, W=W, P=P),
        out_shape=jax.ShapeDtypeStruct((B, C, HW), jnp.float32),
        grid=grid,
        in_specs=[
            pl.BlockSpec((batch_tile, C, HW), lambda i: (i, 0, 0)),
            pl.BlockSpec((hid, C), lambda i: (0, 0)),
            pl.BlockSpec((C, hid), lambda i: (0, 0)),
            pl.BlockSpec((49, HW), lambda i: (0, 0)),
            pl.BlockSpec((49, HW), lambda i: (0, 0)),
        ],
        out_specs=pl.BlockSpec((batch_tile, C, HW), lambda i: (i, 0, 0)),
        scratch_shapes=[
            pltpu.VMEM((batch_tile, HW + 2 * P), jnp.float32),
            pltpu.VMEM((batch_tile, HW + 2 * P), jnp.float32),
        ],
        compiler_params=pltpu.CompilerParams(
            dimension_semantics=("parallel",)),
    )(x, w1.astype(jnp.float32), w2.astype(jnp.float32), wa, wb)
    return out.reshape(B, C, H, W)


def cas_block_ref(x, w1, w2, w_conv):
    """Pure-JAX reference matching the PyTorch forward."""
    avg = jnp.mean(x, axis=(2, 3), keepdims=True)
    mx = jnp.max(x, axis=(2, 3), keepdims=True)

    def fc(v):
        v2 = v[:, :, 0, 0]                              # (B, C)
        h = jnp.maximum(v2 @ w1.T, 0.0)                 # (B, hid)
        return (h @ w2.T)[:, :, None, None]             # (B, C, 1, 1)

    ca_w = jax.nn.sigmoid(fc(avg) + fc(mx))
    ca_x = x * ca_w
    sa_avg = jnp.mean(ca_x, axis=1, keepdims=True)
    sa_max = jnp.max(ca_x, axis=1, keepdims=True)
    pooled = jnp.concatenate([sa_avg, sa_max], axis=1)  # (B, 2, H, W)
    conv = jax.lax.conv_general_dilated(
        pooled, w_conv, window_strides=(1, 1), padding=((3, 3), (3, 3)),
        dimension_numbers=("NCHW", "OIHW", "NCHW"))
    sa_w = jax.nn.sigmoid(conv)                         # (B, 1, H, W)
    return ca_x * sa_w


if __name__ == "__main__":
    B, C, H, W = 2, 64, 16, 16
    resize_factor = 4
    hid = C // resize_factor

    key = jax.random.PRNGKey(0)
    kx, k1, k2, k3 = jax.random.split(key, 4)
    x = jax.random.normal(kx, (B, C, H, W), dtype=jnp.float32)
    # Deterministic synthetic parameters (shapes match the nn.Module __init__).
    w1 = jax.random.normal(k1, (hid, C), dtype=jnp.float32) * 0.1   # Conv2d(C, hid, 1, bias=False)
    w2 = jax.random.normal(k2, (C, hid), dtype=jnp.float32) * 0.1   # Conv2d(hid, C, 1, bias=False)
    w_conv = jax.random.normal(k3, (1, 2, 7, 7), dtype=jnp.float32) * 0.1  # Conv2d(2, 1, 7, pad=3, bias=False)

    out = cas_block(x, w1, w2, w_conv)
    out = jax.block_until_ready(out)

    ref = jax.block_until_ready(cas_block_ref(x, w1, w2, w_conv))
    np.testing.assert_allclose(np.asarray(out), np.asarray(ref), rtol=1e-4, atol=1e-4)

    print("KERNEL_OK")
</pallas_src>

<mosaic_0001>
module attributes {stable_mosaic.version = 11 : i64} {
  func.func @cas_kernel(%arg0: i32, %arg1: memref<1x64x256xf32, #tpu.memory_space<vmem>>, %arg2: memref<16x64xf32, #tpu.memory_space<vmem>>, %arg3: memref<64x16xf32, #tpu.memory_space<vmem>>, %arg4: memref<49x256xf32, #tpu.memory_space<vmem>>, %arg5: memref<49x256xf32, #tpu.memory_space<vmem>>, %arg6: memref<1x64x256xf32, #tpu.memory_space<vmem>>, %arg7: memref<1x512xf32, #tpu.memory_space<vmem>>, %arg8: memref<1x512xf32, #tpu.memory_space<vmem>>) attributes {dimension_semantics = [#tpu.dimension_semantics<parallel>], iteration_bounds = array<i64: 2>, scalar_prefetch = 0 : i64, scratch_operands = 2 : i64, tpu.core_type = #tpu.core_type<tc>, window_params = [{transform_indices = @transform_0, window_bounds = array<i64: 1, 64, 256>}, {pipeline_mode = #tpu.pipeline_mode<synchronous>, transform_indices = @transform_1, window_bounds = array<i64: 16, 64>}, {pipeline_mode = #tpu.pipeline_mode<synchronous>, transform_indices = @transform_2, window_bounds = array<i64: 64, 16>}, {pipeline_mode = #tpu.pipeline_mode<synchronous>, transform_indices = @transform_3, window_bounds = array<i64: 49, 256>}, {pipeline_mode = #tpu.pipeline_mode<synchronous>, transform_indices = @transform_4, window_bounds = array<i64: 49, 256>}, {transform_indices = @transform_5, window_bounds = array<i64: 1, 64, 256>}]} {
    %0 = tpu.iota {dimensions = array<i32: 1>} : vector<1x2xi32>
    %cst = arith.constant 0.000000e+00 : f32
    %1 = vector.broadcast %cst : f32 to vector<64x2xf32>
    %c0 = arith.constant 0 : index
    %c0_0 = arith.constant 0 : index
    %c0_1 = arith.constant 0 : index
    %2 = vector.load %arg1[%c0, %c0_0, %c0_1] : memref<1x64x256xf32, #tpu.memory_space<vmem>>, vector<1x64x256xf32>
    %3 = vector.shape_cast %2 : vector<1x64x256xf32> to vector<64x256xf32>
    %cst_2 = arith.constant dense<0.000000e+00> : vector<64xf32>
    %4 = vector.multi_reduction <add>, %3, %cst_2 [1] : vector<64x256xf32> to vector<64xf32>
    %5 = vector.shape_cast %4 : vector<64xf32> to vector<64x1xf32>
    %cst_3 = arith.constant 2.560000e+02 : f32
    %6 = vector.broadcast %cst_3 : f32 to vector<64x1xf32>
    %7 = arith.divf %5, %6 : vector<64x1xf32>
    %cst_4 = arith.constant dense<0xFF800000> : vector<64xf32>
    %8 = vector.multi_reduction <maximumf>, %3, %cst_4 [1] : vector<64x256xf32> to vector<64xf32>
    %9 = vector.shape_cast %8 : vector<64xf32> to vector<64x1xf32>
    %c0_i32 = arith.constant 0 : i32
    %10 = vector.broadcast %c0_i32 : i32 to vector<1x2xi32>
    %11 = arith.cmpi eq, %0, %10 : vector<1x2xi32>
    %12 = arith.extui %11 : vector<1x2xi1> to vector<1x2xi32>
    %13 = arith.sitofp %12 : vector<1x2xi32> to vector<1x2xf32>
    %14 = vector.broadcast %7 : vector<64x1xf32> to vector<64x2xf32>
    %15 = vector.broadcast %13 : vector<1x2xf32> to vector<64x2xf32>
    %16 = arith.mulf %14, %15 : vector<64x2xf32>
    %17 = arith.addf %1, %16 : vector<64x2xf32>
    %c1_i32 = arith.constant 1 : i32
    %18 = vector.broadcast %c1_i32 : i32 to vector<1x2xi32>
    %19 = arith.cmpi eq, %0, %18 : vector<1x2xi32>
    %20 = arith.extui %19 : vector<1x2xi1> to vector<1x2xi32>
    %21 = arith.sitofp %20 : vector<1x2xi32> to vector<1x2xf32>
    %22 = vector.broadcast %9 : vector<64x1xf32> to vector<64x2xf32>
    %23 = vector.broadcast %21 : vector<1x2xf32> to vector<64x2xf32>
    %24 = arith.mulf %22, %23 : vector<64x2xf32>
    %25 = arith.addf %17, %24 : vector<64x2xf32>
    %c0_5 = arith.constant 0 : index
    %c0_6 = arith.constant 0 : index
    %26 = vector.load %arg2[%c0_5, %c0_6] : memref<16x64xf32, #tpu.memory_space<vmem>>, vector<16x64xf32>
    %cst_7 = arith.constant dense<0.000000e+00> : vector<16x2xf32>
    %27 = tpu.matmul %26, %25, %cst_7 {dimension_numbers = #tpu.dot_dimension_numbers<[1], [0], [0], [1], [0, 0, 1, 1], [], []>} : vector<16x64xf32>, vector<64x2xf32>, vector<16x2xf32> -> vector<16x2xf32>
    %cst_8 = arith.constant 0.000000e+00 : f32
    %28 = vector.broadcast %cst_8 : f32 to vector<16x2xf32>
    %29 = arith.maximumf %27, %28 : vector<16x2xf32>
    %c0_9 = arith.constant 0 : index
    %c0_10 = arith.constant 0 : index
    %30 = vector.load %arg3[%c0_9, %c0_10] : memref<64x16xf32, #tpu.memory_space<vmem>>, vector<64x16xf32>
    %cst_11 = arith.constant dense<0.000000e+00> : vector<64x2xf32>
    %31 = tpu.matmul %30, %29, %cst_11 {dimension_numbers = #tpu.dot_dimension_numbers<[1], [0], [0], [1], [0, 0, 1, 1], [], []>} : vector<64x16xf32>, vector<16x2xf32>, vector<64x2xf32> -> vector<64x2xf32>
    %cst_12 = arith.constant 0.000000e+00 : f32
    %32 = vector.broadcast %cst_12 : f32 to vector<1x512xf32>
    %c0_13 = arith.constant 0 : index
    %c0_14 = arith.constant 0 : index
    %33 = vector.load %arg7[%c0_13, %c0_14] : memref<1x512xf32, #tpu.memory_space<vmem>>, vector<1x512xf32>
    tpu.vector_store %arg7[%c0_13, %c0_14], %32 {strides = array<i32>} : memref<1x512xf32, #tpu.memory_space<vmem>>, vector<1x512xf32>,
    %cst_15 = arith.constant 0.000000e+00 : f32
    %34 = vector.broadcast %cst_15 : f32 to vector<1x512xf32>
    %c0_16 = arith.constant 0 : index
    %c0_17 = arith.constant 0 : index
    %35 = vector.load %arg8[%c0_16, %c0_17] : memref<1x512xf32, #tpu.memory_space<vmem>>, vector<1x512xf32>
    tpu.vector_store %arg8[%c0_16, %c0_17], %34 {strides = array<i32>} : memref<1x512xf32, #tpu.memory_space<vmem>>, vector<1x512xf32>,
    %36 = vector.extract_strided_slice %31 {offsets = [0, 0], sizes = [64, 1], strides = [1, 1]} : vector<64x2xf32> to vector<64x1xf32>
    %37 = vector.extract_strided_slice %31 {offsets = [0, 1], sizes = [64, 1], strides = [1, 1]} : vector<64x2xf32> to vector<64x1xf32>
    %38 = arith.addf %36, %37 : vector<64x1xf32>
    %39 = arith.negf %38 : vector<64x1xf32>
    %40 = math.exp %39 : vector<64x1xf32>
    %cst_18 = arith.constant 1.000000e+00 : f32
    %41 = vector.broadcast %cst_18 : f32 to vector<64x1xf32>
    %42 = arith.addf %41, %40 : vector<64x1xf32>
    %43 = arith.divf %41, %42 : vector<64x1xf32>
    %c0_19 = arith.constant 0 : index
    %c0_20 = arith.constant 0 : index
    %c0_21 = arith.constant 0 : index
    %44 = vector.load %arg1[%c0_19, %c0_20, %c0_21] : memref<1x64x256xf32, #tpu.memory_space<vmem>>, vector<1x64x256xf32>
    %45 = vector.shape_cast %44 : vector<1x64x256xf32> to vector<64x256xf32>
    %46 = vector.broadcast %43 : vector<64x1xf32> to vector<64x256xf32>
    %47 = arith.mulf %45, %46 : vector<64x256xf32>
    %cst_22 = arith.constant dense<0.000000e+00> : vector<256xf32>
    %48 = vector.multi_reduction <add>, %47, %cst_22 [0] : vector<64x256xf32> to vector<256xf32>
    %49 = vector.shape_cast %48 : vector<256xf32> to vector<1x256xf32>
    %cst_23 = arith.constant 6.400000e+01 : f32
    %50 = vector.broadcast %cst_23 : f32 to vector<1x256xf32>
    %51 = arith.divf %49, %50 : vector<1x256xf32>
    %c0_24 = arith.constant 0 : index
    %c128 = arith.constant 128 : index
    %52 = vector.load %arg7[%c0_24, %c128] : memref<1x512xf32, #tpu.memory_space<vmem>>, vector<1x256xf32>
    tpu.vector_store %arg7[%c0_24, %c128], %51 {strides = array<i32>} : memref<1x512xf32, #tpu.memory_space<vmem>>, vector<1x256xf32>,
    %cst_25 = arith.constant dense<0xFF800000> : vector<256xf32>
    %53 = vector.multi_reduction <maximumf>, %47, %cst_25 [0] : vector<64x256xf32> to vector<256xf32>
    %54 = vector.shape_cast %53 : vector<256xf32> to vector<1x256xf32>
    %c0_26 = arith.constant 0 : index
    %c128_27 = arith.constant 128 : index
    %55 = vector.load %arg8[%c0_26, %c128_27] : memref<1x512xf32, #tpu.memory_space<vmem>>, vector<1x256xf32>
    tpu.vector_store %arg8[%c0_26, %c128_27], %54 {strides = array<i32>} : memref<1x512xf32, #tpu.memory_space<vmem>>, vector<1x256xf32>,
    %cst_28 = arith.constant 0.000000e+00 : f32
    %56 = vector.broadcast %cst_28 : f32 to vector<1x256xf32>
    %c0_29 = arith.constant 0 : index
    %c77 = arith.constant 77 : index
    %57 = vector.load %arg7[%c0_29, %c77] : memref<1x512xf32, #tpu.memory_space<vmem>>, vector<1x256xf32>
    %c0_30 = arith.constant 0 : index
    %c0_31 = arith.constant 0 : index
    %58 = vector.load %arg4[%c0_30, %c0_31] : memref<49x256xf32, #tpu.memory_space<vmem>>, vector<1x256xf32>
    %59 = arith.mulf %57, %58 : vector<1x256xf32>
    %c0_32 = arith.constant 0 : index
    %c77_33 = arith.constant 77 : index
    %60 = vector.load %arg8[%c0_32, %c77_33] : memref<1x512xf32, #tpu.memory_space<vmem>>, vector<1x256xf32>
    %c0_34 = arith.constant 0 : index
    %c0_35 = arith.constant 0 : index
    %61 = vector.load %arg5[%c0_34, %c0_35] : memref<49x256xf32, #tpu.memory_space<vmem>>, vector<1x256xf32>
    %62 = arith.mulf %60, %61 : vector<1x256xf32>
    %63 = arith.addf %59, %62 : vector<1x256xf32>
    %64 = arith.addf %56, %63 : vector<1x256xf32>
    %c0_36 = arith.constant 0 : index
    %c78 = arith.constant 78 : index
    %65 = vector.load %arg7[%c0_36, %c78] : memref<1x512xf32, #tpu.memory_space<vmem>>, vector<1x256xf32>
    %c1 = arith.constant 1 : index
    %c0_37 = arith.constant 0 : index
    %66 = vector.load %arg4[%c1, %c0_37] : memref<49x256xf32, #tpu.memory_space<vmem>>, vector<1x256xf32>
    %67 = arith.mulf %65, %66 : vector<1x256xf32>
    %c0_38 = arith.constant 0 : index
    %c78_39 = arith.constant 78 : index
    %68 = vector.load %arg8[%c0_38, %c78_39] : memref<1x512xf32, #tpu.memory_space<vmem>>, vector<1x256xf32>
    %c1_40 = arith.constant 1 : index
    %c0_41 = arith.constant 0 : index
    %69 = vector.load %arg5[%c1_40, %c0_41] : memref<49x256xf32, #tpu.memory_space<vmem>>, vector<1x256xf32>
    %70 = arith.mulf %68, %69 : vector<1x256xf32>
    %71 = arith.addf %67, %70 : vector<1x256xf32>
    %72 = arith.addf %64, %71 : vector<1x256xf32>
    %c0_42 = arith.constant 0 : index
    %c79 = arith.constant 79 : index
    %73 = vector.load %arg7[%c0_42, %c79] : memref<1x512xf32, #tpu.memory_space<vmem>>, vector<1x256xf32>
    %c2 = arith.constant 2 : index
    %c0_43 = arith.constant 0 : index
    %74 = vector.load %arg4[%c2, %c0_43] : memref<49x256xf32, #tpu.memory_space<vmem>>, vector<1x256xf32>
    %75 = arith.mulf %73, %74 : vector<1x256xf32>
    %c0_44 = arith.constant 0 : index
    %c79_45 = arith.constant 79 : index
    %76 = vector.load %arg8[%c0_44, %c79_45] : memref<1x512xf32, #tpu.memory_space<vmem>>, vector<1x256xf32>
    %c2_46 = arith.constant 2 : index
    %c0_47 = arith.constant 0 : index
    %77 = vector.load %arg5[%c2_46, %c0_47] : memref<49x256xf32, #tpu.memory_space<vmem>>, vector<1x256xf32>
    %78 = arith.mulf %76, %77 : vector<1x256xf32>
    %79 = arith.addf %75, %78 : vector<1x256xf32>
    %80 = arith.addf %72, %79 : vector<1x256xf32>
    %c0_48 = arith.constant 0 : index
    %c80 = arith.constant 80 : index
    %81 = vector.load %arg7[%c0_48, %c80] : memref<1x512xf32, #tpu.memory_space<vmem>>, vector<1x256xf32>
    %c3 = arith.constant 3 : index
    %c0_49 = arith.constant 0 : index
    %82 = vector.load %arg4[%c3, %c0_49] : memref<49x256xf32, #tpu.memory_space<vmem>>, vector<1x256xf32>
    %83 = arith.mulf %81, %82 : vector<1x256xf32>
    %c0_50 = arith.constant 0 : index
    %c80_51 = arith.constant 80 : index
    %84 = vector.load %arg8[%c0_50, %c80_51] : memref<1x512xf32, #tpu.memory_space<vmem>>, vector<1x256xf32>
    %c3_52 = arith.constant 3 : index
    %c0_53 = arith.constant 0 : index
    %85 = vector.load %arg5[%c3_52, %c0_53] : memref<49x256xf32, #tpu.memory_space<vmem>>, vector<1x256xf32>
    %86 = arith.mulf %84, %85 : vector<1x256xf32>
    %87 = arith.addf %83, %86 : vector<1x256xf32>
    %88 = arith.addf %80, %87 : vector<1x256xf32>
    %c0_54 = arith.constant 0 : index
    %c81 = arith.constant 81 : index
    %89 = vector.load %arg7[%c0_54, %c81] : memref<1x512xf32, #tpu.memory_space<vmem>>, vector<1x256xf32>
    %c4 = arith.constant 4 : index
    %c0_55 = arith.constant 0 : index
    %90 = vector.load %arg4[%c4, %c0_55] : memref<49x256xf32, #tpu.memory_space<vmem>>, vector<1x256xf32>
    %91 = arith.mulf %89, %90 : vector<1x256xf32>
    %c0_56 = arith.constant 0 : index
    %c81_57 = arith.constant 81 : index
    %92 = vector.load %arg8[%c0_56, %c81_57] : memref<1x512xf32, #tpu.memory_space<vmem>>, vector<1x256xf32>
    %c4_58 = arith.constant 4 : index
    %c0_59 = arith.constant 0 : index
    %93 = vector.load %arg5[%c4_58, %c0_59] : memref<49x256xf32, #tpu.memory_space<vmem>>, vector<1x256xf32>
    %94 = arith.mulf %92, %93 : vector<1x256xf32>
    %95 = arith.addf %91, %94 : vector<1x256xf32>
    %96 = arith.addf %88, %95 : vector<1x256xf32>
    %c0_60 = arith.constant 0 : index
    %c82 = arith.constant 82 : index
    %97 = vector.load %arg7[%c0_60, %c82] : memref<1x512xf32, #tpu.memory_space<vmem>>, vector<1x256xf32>
    %c5 = arith.constant 5 : index
    %c0_61 = arith.constant 0 : index
    %98 = vector.load %arg4[%c5, %c0_61] : memref<49x256xf32, #tpu.memory_space<vmem>>, vector<1x256xf32>
    %99 = arith.mulf %97, %98 : vector<1x256xf32>
    %c0_62 = arith.constant 0 : index
    %c82_63 = arith.constant 82 : index
    %100 = vector.load %arg8[%c0_62, %c82_63] : memref<1x512xf32, #tpu.memory_space<vmem>>, vector<1x256xf32>
    %c5_64 = arith.constant 5 : index
    %c0_65 = arith.constant 0 : index
    %101 = vector.load %arg5[%c5_64, %c0_65] : memref<49x256xf32, #tpu.memory_space<vmem>>, vector<1x256xf32>
    %102 = arith.mulf %100, %101 : vector<1x256xf32>
    %103 = arith.addf %99, %102 : vector<1x256xf32>
    %104 = arith.addf %96, %103 : vector<1x256xf32>
    %c0_66 = arith.constant 0 : index
    %c83 = arith.constant 83 : index
    %105 = vector.load %arg7[%c0_66, %c83] : memref<1x512xf32, #tpu.memory_space<vmem>>, vector<1x256xf32>
    %c6 = arith.constant 6 : index
    %c0_67 = arith.constant 0 : index
    %106 = vector.load %arg4[%c6, %c0_67] : memref<49x256xf32, #tpu.memory_space<vmem>>, vector<1x256xf32>
    %107 = arith.mulf %105, %106 : vector<1x256xf32>
    %c0_68 = arith.constant 0 : index
    %c83_69 = arith.constant 83 : index
    %108 = vector.load %arg8[%c0_68, %c83_69] : memref<1x512xf32, #tpu.memory_space<vmem>>, vector<1x256xf32>
    %c6_70 = arith.constant 6 : index
    %c0_71 = arith.constant 0 : index
    %109 = vector.load %arg5[%c6_70, %c0_71] : memref<49x256xf32, #tpu.memory_space<vmem>>, vector<1x256xf32>
    %110 = arith.mulf %108, %109 : vector<1x256xf32>
    %111 = arith.addf %107, %110 : vector<1x256xf32>
    %112 = arith.addf %104, %111 : vector<1x256xf32>
    %c0_72 = arith.constant 0 : index
    %c93 = arith.constant 93 : index
    %113 = vector.load %arg7[%c0_72, %c93] : memref<1x512xf32, #tpu.memory_space<vmem>>, vector<1x256xf32>
    %c7 = arith.constant 7 : index
    %c0_73 = arith.constant 0 : index
    %114 = vector.load %arg4[%c7, %c0_73] : memref<49x256xf32, #tpu.memory_space<vmem>>, vector<1x256xf32>
    %115 = arith.mulf %113, %114 : vector<1x256xf32>
    %c0_74 = arith.constant 0 : index
    %c93_75 = arith.constant 93 : index
    %116 = vector.load %arg8[%c0_74, %c93_75] : memref<1x512xf32, #tpu.memory_space<vmem>>, vector<1x256xf32>
    %c7_76 = arith.constant 7 : index
    %c0_77 = arith.constant 0 : index
    %117 = vector.load %arg5[%c7_76, %c0_77] : memref<49x256xf32, #tpu.memory_space<vmem>>, vector<1x256xf32>
    %118 = arith.mulf %116, %117 : vector<1x256xf32>
    %119 = arith.addf %115, %118 : vector<1x256xf32>
    %120 = arith.addf %112, %119 : vector<1x256xf32>
    %c0_78 = arith.constant 0 : index
    %c94 = arith.constant 94 : index
    %121 = vector.load %arg7[%c0_78, %c94] : memref<1x512xf32, #tpu.memory_space<vmem>>, vector<1x256xf32>
    %c8 = arith.constant 8 : index
    %c0_79 = arith.constant 0 : index
    %122 = vector.load %arg4[%c8, %c0_79] : memref<49x256xf32, #tpu.memory_space<vmem>>, vector<1x256xf32>
    %123 = arith.mulf %121, %122 : vector<1x256xf32>
    %c0_80 = arith.constant 0 : index
    %c94_81 = arith.constant 94 : index
    %124 = vector.load %arg8[%c0_80, %c94_81] : memref<1x512xf32, #tpu.memory_space<vmem>>, vector<1x256xf32>
    %c8_82 = arith.constant 8 : index
    %c0_83 = arith.constant 0 : index
    %125 = vector.load %arg5[%c8_82, %c0_83] : memref<49x256xf32, #tpu.memory_space<vmem>>, vector<1x256xf32>
    %126 = arith.mulf %124, %125 : vector<1x256xf32>
    %127 = arith.addf %123, %126 : vector<1x256xf32>
    %128 = arith.addf %120, %127 : vector<1x256xf32>
    %c0_84 = arith.constant 0 : index
    %c95 = arith.constant 95 : index
    %129 = vector.load %arg7[%c0_84, %c95] : memref<1x512xf32, #tpu.memory_space<vmem>>, vector<1x256xf32>
    %c9 = arith.constant 9 : index
    %c0_85 = arith.constant 0 : index
    %130 = vector.load %arg4[%c9, %c0_85] : memref<49x256xf32, #tpu.memory_space<vmem>>, vector<1x256xf32>
    %131 = arith.mulf %129, %130 : vector<1x256xf32>
    %c0_86 = arith.constant 0 : index
    %c95_87 = arith.constant 95 : index
    %132 = vector.load %arg8[%c0_86, %c95_87] : memref<1x512xf32, #tpu.memory_space<vmem>>, vector<1x256xf32>
    %c9_88 = arith.constant 9 : index
    %c0_89 = arith.constant 0 : index
    %133 = vector.load %arg5[%c9_88, %c0_89] : memref<49x256xf32, #tpu.memory_space<vmem>>, vector<1x256xf32>
    %134 = arith.mulf %132, %133 : vector<1x256xf32>
    %135 = arith.addf %131, %134 : vector<1x256xf32>
    %136 = arith.addf %128, %135 : vector<1x256xf32>
    %c0_90 = arith.constant 0 : index
    %c96 = arith.constant 96 : index
    %137 = vector.load %arg7[%c0_90, %c96] : memref<1x512xf32, #tpu.memory_space<vmem>>, vector<1x256xf32>
    %c10 = arith.constant 10 : index
    %c0_91 = arith.constant 0 : index
    %138 = vector.load %arg4[%c10, %c0_91] : memref<49x256xf32, #tpu.memory_space<vmem>>, vector<1x256xf32>
    %139 = arith.mulf %137, %138 : vector<1x256xf32>
    %c0_92 = arith.constant 0 : index
    %c96_93 = arith.constant 96 : index
    %140 = vector.load %arg8[%c0_92, %c96_93] : memref<1x512xf32, #tpu.memory_space<vmem>>, vector<1x256xf32>
    %c10_94 = arith.constant 10 : index
    %c0_95 = arith.constant 0 : index
    %141 = vector.load %arg5[%c10_94, %c0_95] : memref<49x256xf32, #tpu.memory_space<vmem>>, vector<1x256xf32>
    %142 = arith.mulf %140, %141 : vector<1x256xf32>
    %143 = arith.addf %139, %142 : vector<1x256xf32>
    %144 = arith.addf %136, %143 : vector<1x256xf32>
    %c0_96 = arith.constant 0 : index
    %c97 = arith.constant 97 : index
    %145 = vector.load %arg7[%c0_96, %c97] : memref<1x512xf32, #tpu.memory_space<vmem>>, vector<1x256xf32>
    %c11 = arith.constant 11 : index
    %c0_97 = arith.constant 0 : index
    %146 = vector.load %arg4[%c11, %c0_97] : memref<49x256xf32, #tpu.memory_space<vmem>>, vector<1x256xf32>
    %147 = arith.mulf %145, %146 : vector<1x256xf32>
    %c0_98 = arith.constant 0 : index
    %c97_99 = arith.constant 97 : index
    %148 = vector.load %arg8[%c0_98, %c97_99] : memref<1x512xf32, #tpu.memory_space<vmem>>, vector<1x256xf32>
    %c11_100 = arith.constant 11 : index
    %c0_101 = arith.constant 0 : index
    %149 = vector.load %arg5[%c11_100, %c0_101] : memref<49x256xf32, #tpu.memory_space<vmem>>, vector<1x256xf32>
    %150 = arith.mulf %148, %149 : vector<1x256xf32>
    %151 = arith.addf %147, %150 : vector<1x256xf32>
    %152 = arith.addf %144, %151 : vector<1x256xf32>
    %c0_102 = arith.constant 0 : index
    %c98 = arith.constant 98 : index
    %153 = vector.load %arg7[%c0_102, %c98] : memref<1x512xf32, #tpu.memory_space<vmem>>, vector<1x256xf32>
    %c12 = arith.constant 12 : index
    %c0_103 = arith.constant 0 : index
    %154 = vector.load %arg4[%c12, %c0_103] : memref<49x256xf32, #tpu.memory_space<vmem>>, vector<1x256xf32>
    %155 = arith.mulf %153, %154 : vector<1x256xf32>
    %c0_104 = arith.constant 0 : index
    %c98_105 = arith.constant 98 : index
    %156 = vector.load %arg8[%c0_104, %c98_105] : memref<1x512xf32, #tpu.memory_space<vmem>>, vector<1x256xf32>
    %c12_106 = arith.constant 12 : index
    %c0_107 = arith.constant 0 : index
    %157 = vector.load %arg5[%c12_106, %c0_107] : memref<49x256xf32, #tpu.memory_space<vmem>>, vector<1x256xf32>
    %158 = arith.mulf %156, %157 : vector<1x256xf32>
    %159 = arith.addf %155, %158 : vector<1x256xf32>
    %160 = arith.addf %152, %159 : vector<1x256xf32>
    %c0_108 = arith.constant 0 : index
    %c99 = arith.constant 99 : index
    %161 = vector.load %arg7[%c0_108, %c99] : memref<1x512xf32, #tpu.memory_space<vmem>>, vector<1x256xf32>
    %c13 = arith.constant 13 : index
    %c0_109 = arith.constant 0 : index
    %162 = vector.load %arg4[%c13, %c0_109] : memref<49x256xf32, #tpu.memory_space<vmem>>, vector<1x256xf32>
    %163 = arith.mulf %161, %162 : vector<1x256xf32>
    %c0_110 = arith.constant 0 : index
    %c99_111 = arith.constant 99 : index
    %164 = vector.load %arg8[%c0_110, %c99_111] : memref<1x512xf32, #tpu.memory_space<vmem>>, vector<1x256xf32>
    %c13_112 = arith.constant 13 : index
    %c0_113 = arith.constant 0 : index
    %165 = vector.load %arg5[%c13_112, %c0_113] : memref<49x256xf32, #tpu.memory_space<vmem>>, vector<1x256xf32>
    %166 = arith.mulf %164, %165 : vector<1x256xf32>
    %167 = arith.addf %163, %166 : vector<1x256xf32>
    %168 = arith.addf %160, %167 : vector<1x256xf32>
    %c0_114 = arith.constant 0 : index
    %c109 = arith.constant 109 : index
    %169 = vector.load %arg7[%c0_114, %c109] : memref<1x512xf32, #tpu.memory_space<vmem>>, vector<1x256xf32>
    %c14 = arith.constant 14 : index
    %c0_115 = arith.constant 0 : index
    %170 = vector.load %arg4[%c14, %c0_115] : memref<49x256xf32, #tpu.memory_space<vmem>>, vector<1x256xf32>
    %171 = arith.mulf %169, %170 : vector<1x256xf32>
    %c0_116 = arith.constant 0 : index
    %c109_117 = arith.constant 109 : index
    %172 = vector.load %arg8[%c0_116, %c109_117] : memref<1x512xf32, #tpu.memory_space<vmem>>, vector<1x256xf32>
    %c14_118 = arith.constant 14 : index
    %c0_119 = arith.constant 0 : index
    %173 = vector.load %arg5[%c14_118, %c0_119] : memref<49x256xf32, #tpu.memory_space<vmem>>, vector<1x256xf32>
    %174 = arith.mulf %172, %173 : vector<1x256xf32>
    %175 = arith.addf %171, %174 : vector<1x256xf32>
    %176 = arith.addf %168, %175 : vector<1x256xf32>
    %c0_120 = arith.constant 0 : index
    %c110 = arith.constant 110 : index
    %177 = vector.load %arg7[%c0_120, %c110] : memref<1x512xf32, #tpu.memory_space<vmem>>, vector<1x256xf32>
    %c15 = arith.constant 15 : index
    %c0_121 = arith.constant 0 : index
    %178 = vector.load %arg4[%c15, %c0_121] : memref<49x256xf32, #tpu.memory_space<vmem>>, vector<1x256xf32>
    %179 = arith.mulf %177, %178 : vector<1x256xf32>
    %c0_122 = arith.constant 0 : index
    %c110_123 = arith.constant 110 : index
    %180 = vector.load %arg8[%c0_122, %c110_123] : memref<1x512xf32, #tpu.memory_space<vmem>>, vector<1x256xf32>
    %c15_124 = arith.constant 15 : index
    %c0_125 = arith.constant 0 : index
    %181 = vector.load %arg5[%c15_124, %c0_125] : memref<49x256xf32, #tpu.memory_space<vmem>>, vector<1x256xf32>
    %182 = arith.mulf %180, %181 : vector<1x256xf32>
    %183 = arith.addf %179, %182 : vector<1x256xf32>
    %184 = arith.addf %176, %183 : vector<1x256xf32>
    %c0_126 = arith.constant 0 : index
    %c111 = arith.constant 111 : index
    %185 = vector.load %arg7[%c0_126, %c111] : memref<1x512xf32, #tpu.memory_space<vmem>>, vector<1x256xf32>
    %c16 = arith.constant 16 : index
    %c0_127 = arith.constant 0 : index
    %186 = vector.load %arg4[%c16, %c0_127] : memref<49x256xf32, #tpu.memory_space<vmem>>, vector<1x256xf32>
    %187 = arith.mulf %185, %186 : vector<1x256xf32>
    %c0_128 = arith.constant 0 : index
    %c111_129 = arith.constant 111 : index
    %188 = vector.load %arg8[%c0_128, %c111_129] : memref<1x512xf32, #tpu.memory_space<vmem>>, vector<1x256xf32>
    %c16_130 = arith.constant 16 : index
    %c0_131 = arith.constant 0 : index
    %189 = vector.load %arg5[%c16_130, %c0_131] : memref<49x256xf32, #tpu.memory_space<vmem>>, vector<1x256xf32>
    %190 = arith.mulf %188, %189 : vector<1x256xf32>
    %191 = arith.addf %187, %190 : vector<1x256xf32>
    %192 = arith.addf %184, %191 : vector<1x256xf32>
    %c0_132 = arith.constant 0 : index
    %c112 = arith.constant 112 : index
    %193 = vector.load %arg7[%c0_132, %c112] : memref<1x512xf32, #tpu.memory_space<vmem>>, vector<1x256xf32>
    %c17 = arith.constant 17 : index
    %c0_133 = arith.constant 0 : index
    %194 = vector.load %arg4[%c17, %c0_133] : memref<49x256xf32, #tpu.memory_space<vmem>>, vector<1x256xf32>
    %195 = arith.mulf %193, %194 : vector<1x256xf32>
    %c0_134 = arith.constant 0 : index
    %c112_135 = arith.constant 112 : index
    %196 = vector.load %arg8[%c0_134, %c112_135] : memref<1x512xf32, #tpu.memory_space<vmem>>, vector<1x256xf32>
    %c17_136 = arith.constant 17 : index
    %c0_137 = arith.constant 0 : index
    %197 = vector.load %arg5[%c17_136, %c0_137] : memref<49x256xf32, #tpu.memory_space<vmem>>, vector<1x256xf32>
    %198 = arith.mulf %196, %197 : vector<1x256xf32>
    %199 = arith.addf %195, %198 : vector<1x256xf32>
    %200 = arith.addf %192, %199 : vector<1x256xf32>
    %c0_138 = arith.constant 0 : index
    %c113 = arith.constant 113 : index
    %201 = vector.load %arg7[%c0_138, %c113] : memref<1x512xf32, #tpu.memory_space<vmem>>, vector<1x256xf32>
    %c18 = arith.constant 18 : index
    %c0_139 = arith.constant 0 : index
    %202 = vector.load %arg4[%c18, %c0_139] : memref<49x256xf32, #tpu.memory_space<vmem>>, vector<1x256xf32>
    %203 = arith.mulf %201, %202 : vector<1x256xf32>
    %c0_140 = arith.constant 0 : index
    %c113_141 = arith.constant 113 : index
    %204 = vector.load %arg8[%c0_140, %c113_141] : memref<1x512xf32, #tpu.memory_space<vmem>>, vector<1x256xf32>
    %c18_142 = arith.constant 18 : index
    %c0_143 = arith.constant 0 : index
    %205 = vector.load %arg5[%c18_142, %c0_143] : memref<49x256xf32, #tpu.memory_space<vmem>>, vector<1x256xf32>
    %206 = arith.mulf %204, %205 : vector<1x256xf32>
    %207 = arith.addf %203, %206 : vector<1x256xf32>
    %208 = arith.addf %200, %207 : vector<1x256xf32>
    %c0_144 = arith.constant 0 : index
    %c114 = arith.constant 114 : index
    %209 = vector.load %arg7[%c0_144, %c114] : memref<1x512xf32, #tpu.memory_space<vmem>>, vector<1x256xf32>
    %c19 = arith.constant 19 : index
    %c0_145 = arith.constant 0 : index
    %210 = vector.load %arg4[%c19, %c0_145] : memref<49x256xf32, #tpu.memory_space<vmem>>, vector<1x256xf32>
    %211 = arith.mulf %209, %210 : vector<1x256xf32>
    %c0_146 = arith.constant 0 : index
    %c114_147 = arith.constant 114 : index
    %212 = vector.load %arg8[%c0_146, %c114_147] : memref<1x512xf32, #tpu.memory_space<vmem>>, vector<1x256xf32>
    %c19_148 = arith.constant 19 : index
    %c0_149 = arith.constant 0 : index
    %213 = vector.load %arg5[%c19_148, %c0_149] : memref<49x256xf32, #tpu.memory_space<vmem>>, vector<1x256xf32>
    %214 = arith.mulf %212, %213 : vector<1x256xf32>
    %215 = arith.addf %211, %214 : vector<1x256xf32>
    %216 = arith.addf %208, %215 : vector<1x256xf32>
    %c0_150 = arith.constant 0 : index
    %c115 = arith.constant 115 : index
    %217 = vector.load %arg7[%c0_150, %c115] : memref<1x512xf32, #tpu.memory_space<vmem>>, vector<1x256xf32>
    %c20 = arith.constant 20 : index
    %c0_151 = arith.constant 0 : index
    %218 = vector.load %arg4[%c20, %c0_151] : memref<49x256xf32, #tpu.memory_space<vmem>>, vector<1x256xf32>
    %219 = arith.mulf %217, %218 : vector<1x256xf32>
    %c0_152 = arith.constant 0 : index
    %c115_153 = arith.constant 115 : index
    %220 = vector.load %arg8[%c0_152, %c115_153] : memref<1x512xf32, #tpu.memory_space<vmem>>, vector<1x256xf32>
    %c20_154 = arith.constant 20 : index
    %c0_155 = arith.constant 0 : index
    %221 = vector.load %arg5[%c20_154, %c0_155] : memref<49x256xf32, #tpu.memory_space<vmem>>, vector<1x256xf32>
    %222 = arith.mulf %220, %221 : vector<1x256xf32>
    %223 = arith.addf %219, %222 : vector<1x256xf32>
    %224 = arith.addf %216, %223 : vector<1x256xf32>
    %c0_156 = arith.constant 0 : index
    %c125 = arith.constant 125 : index
    %225 = vector.load %arg7[%c0_156, %c125] : memref<1x512xf32, #tpu.memory_space<vmem>>, vector<1x256xf32>
    %c21 = arith.constant 21 : index
    %c0_157 = arith.constant 0 : index
    %226 = vector.load %arg4[%c21, %c0_157] : memref<49x256xf32, #tpu.memory_space<vmem>>, vector<1x256xf32>
    %227 = arith.mulf %225, %226 : vector<1x256xf32>
    %c0_158 = arith.constant 0 : index
    %c125_159 = arith.constant 125 : index
    %228 = vector.load %arg8[%c0_158, %c125_159] : memref<1x512xf32, #tpu.memory_space<vmem>>, vector<1x256xf32>
    %c21_160 = arith.constant 21 : index
    %c0_161 = arith.constant 0 : index
    %229 = vector.load %arg5[%c21_160, %c0_161] : memref<49x256xf32, #tpu.memory_space<vmem>>, vector<1x256xf32>
    %230 = arith.mulf %228, %229 : vector<1x256xf32>
    %231 = arith.addf %227, %230 : vector<1x256xf32>
    %232 = arith.addf %224, %231 : vector<1x256xf32>
    %c0_162 = arith.constant 0 : index
    %c126 = arith.constant 126 : index
    %233 = vector.load %arg7[%c0_162, %c126] : memref<1x512xf32, #tpu.memory_space<vmem>>, vector<1x256xf32>
    %c22 = arith.constant 22 : index
    %c0_163 = arith.constant 0 : index
    %234 = vector.load %arg4[%c22, %c0_163] : memref<49x256xf32, #tpu.memory_space<vmem>>, vector<1x256xf32>
    %235 = arith.mulf %233, %234 : vector<1x256xf32>
    %c0_164 = arith.constant 0 : index
    %c126_165 = arith.constant 126 : index
    %236 = vector.load %arg8[%c0_164, %c126_165] : memref<1x512xf32, #tpu.memory_space<vmem>>, vector<1x256xf32>
    %c22_166 = arith.constant 22 : index
    %c0_167 = arith.constant 0 : index
    %237 = vector.load %arg5[%c22_166, %c0_167] : memref<49x256xf32, #tpu.memory_space<vmem>>, vector<1x256xf32>
    %238 = arith.mulf %236, %237 : vector<1x256xf32>
    %239 = arith.addf %235, %238 : vector<1x256xf32>
    %240 = arith.addf %232, %239 : vector<1x256xf32>
    %c0_168 = arith.constant 0 : index
    %c127 = arith.constant 127 : index
    %241 = vector.load %arg7[%c0_168, %c127] : memref<1x512xf32, #tpu.memory_space<vmem>>, vector<1x256xf32>
    %c23 = arith.constant 23 : index
    %c0_169 = arith.constant 0 : index
    %242 = vector.load %arg4[%c23, %c0_169] : memref<49x256xf32, #tpu.memory_space<vmem>>, vector<1x256xf32>
    %243 = arith.mulf %241, %242 : vector<1x256xf32>
    %c0_170 = arith.constant 0 : index
    %c127_171 = arith.constant 127 : index
    %244 = vector.load %arg8[%c0_170, %c127_171] : memref<1x512xf32, #tpu.memory_space<vmem>>, vector<1x256xf32>
    %c23_172 = arith.constant 23 : index
    %c0_173 = arith.constant 0 : index
    %245 = vector.load %arg5[%c23_172, %c0_173] : memref<49x256xf32, #tpu.memory_space<vmem>>, vector<1x256xf32>
    %246 = arith.mulf %244, %245 : vector<1x256xf32>
    %247 = arith.addf %243, %246 : vector<1x256xf32>
    %248 = arith.addf %240, %247 : vector<1x256xf32>
    %c0_174 = arith.constant 0 : index
    %c128_175 = arith.constant 128 : index
    %249 = vector.load %arg7[%c0_174, %c128_175] : memref<1x512xf32, #tpu.memory_space<vmem>>, vector<1x256xf32>
    %c24 = arith.constant 24 : index
    %c0_176 = arith.constant 0 : index
    %250 = vector.load %arg4[%c24, %c0_176] : memref<49x256xf32, #tpu.memory_space<vmem>>, vector<1x256xf32>
    %251 = arith.mulf %249, %250 : vector<1x256xf32>
    %c0_177 = arith.constant 0 : index
    %c128_178 = arith.constant 128 : index
    %252 = vector.load %arg8[%c0_177, %c128_178] : memref<1x512xf32, #tpu.memory_space<vmem>>, vector<1x256xf32>
    %c24_179 = arith.constant 24 : index
    %c0_180 = arith.constant 0 : index
    %253 = vector.load %arg5[%c24_179, %c0_180] : memref<49x256xf32, #tpu.memory_space<vmem>>, vector<1x256xf32>
    %254 = arith.mulf %252, %253 : vector<1x256xf32>
    %255 = arith.addf %251, %254 : vector<1x256xf32>
    %256 = arith.addf %248, %255 : vector<1x256xf32>
    %c0_181 = arith.constant 0 : index
    %c129 = arith.constant 129 : index
    %257 = vector.load %arg7[%c0_181, %c129] : memref<1x512xf32, #tpu.memory_space<vmem>>, vector<1x256xf32>
    %c25 = arith.constant 25 : index
    %c0_182 = arith.constant 0 : index
    %258 = vector.load %arg4[%c25, %c0_182] : memref<49x256xf32, #tpu.memory_space<vmem>>, vector<1x256xf32>
    %259 = arith.mulf %257, %258 : vector<1x256xf32>
    %c0_183 = arith.constant 0 : index
    %c129_184 = arith.constant 129 : index
    %260 = vector.load %arg8[%c0_183, %c129_184] : memref<1x512xf32, #tpu.memory_space<vmem>>, vector<1x256xf32>
    %c25_185 = arith.constant 25 : index
    %c0_186 = arith.constant 0 : index
    %261 = vector.load %arg5[%c25_185, %c0_186] : memref<49x256xf32, #tpu.memory_space<vmem>>, vector<1x256xf32>
    %262 = arith.mulf %260, %261 : vector<1x256xf32>
    %263 = arith.addf %259, %262 : vector<1x256xf32>
    %264 = arith.addf %256, %263 : vector<1x256xf32>
    %c0_187 = arith.constant 0 : index
    %c130 = arith.constant 130 : index
    %265 = vector.load %arg7[%c0_187, %c130] : memref<1x512xf32, #tpu.memory_space<vmem>>, vector<1x256xf32>
    %c26 = arith.constant 26 : index
    %c0_188 = arith.constant 0 : index
    %266 = vector.load %arg4[%c26, %c0_188] : memref<49x256xf32, #tpu.memory_space<vmem>>, vector<1x256xf32>
    %267 = arith.mulf %265, %266 : vector<1x256xf32>
    %c0_189 = arith.constant 0 : index
    %c130_190 = arith.constant 130 : index
    %268 = vector.load %arg8[%c0_189, %c130_190] : memref<1x512xf32, #tpu.memory_space<vmem>>, vector<1x256xf32>
    %c26_191 = arith.constant 26 : index
    %c0_192 = arith.constant 0 : index
    %269 = vector.load %arg5[%c26_191, %c0_192] : memref<49x256xf32, #tpu.memory_space<vmem>>, vector<1x256xf32>
    %270 = arith.mulf %268, %269 : vector<1x256xf32>
    %271 = arith.addf %267, %270 : vector<1x256xf32>
    %272 = arith.addf %264, %271 : vector<1x256xf32>
    %c0_193 = arith.constant 0 : index
    %c131 = arith.constant 131 : index
    %273 = vector.load %arg7[%c0_193, %c131] : memref<1x512xf32, #tpu.memory_space<vmem>>, vector<1x256xf32>
    %c27 = arith.constant 27 : index
    %c0_194 = arith.constant 0 : index
    %274 = vector.load %arg4[%c27, %c0_194] : memref<49x256xf32, #tpu.memory_space<vmem>>, vector<1x256xf32>
    %275 = arith.mulf %273, %274 : vector<1x256xf32>
    %c0_195 = arith.constant 0 : index
    %c131_196 = arith.constant 131 : index
    %276 = vector.load %arg8[%c0_195, %c131_196] : memref<1x512xf32, #tpu.memory_space<vmem>>, vector<1x256xf32>
    %c27_197 = arith.constant 27 : index
    %c0_198 = arith.constant 0 : index
    %277 = vector.load %arg5[%c27_197, %c0_198] : memref<49x256xf32, #tpu.memory_space<vmem>>, vector<1x256xf32>
    %278 = arith.mulf %276, %277 : vector<1x256xf32>
    %279 = arith.addf %275, %278 : vector<1x256xf32>
    %280 = arith.addf %272, %279 : vector<1x256xf32>
    %c0_199 = arith.constant 0 : index
    %c141 = arith.constant 141 : index
    %281 = vector.load %arg7[%c0_199, %c141] : memref<1x512xf32, #tpu.memory_space<vmem>>, vector<1x256xf32>
    %c28 = arith.constant 28 : index
    %c0_200 = arith.constant 0 : index
    %282 = vector.load %arg4[%c28, %c0_200] : memref<49x256xf32, #tpu.memory_space<vmem>>, vector<1x256xf32>
    %283 = arith.mulf %281, %282 : vector<1x256xf32>
    %c0_201 = arith.constant 0 : index
    %c141_202 = arith.constant 141 : index
    %284 = vector.load %arg8[%c0_201, %c141_202] : memref<1x512xf32, #tpu.memory_space<vmem>>, vector<1x256xf32>
    %c28_203 = arith.constant 28 : index
    %c0_204 = arith.constant 0 : index
    %285 = vector.load %arg5[%c28_203, %c0_204] : memref<49x256xf32, #tpu.memory_space<vmem>>, vector<1x256xf32>
    %286 = arith.mulf %284, %285 : vector<1x256xf32>
    %287 = arith.addf %283, %286 : vector<1x256xf32>
    %288 = arith.addf %280, %287 : vector<1x256xf32>
    %c0_205 = arith.constant 0 : index
    %c142 = arith.constant 142 : index
    %289 = vector.load %arg7[%c0_205, %c142] : memref<1x512xf32, #tpu.memory_space<vmem>>, vector<1x256xf32>
    %c29 = arith.constant 29 : index
    %c0_206 = arith.constant 0 : index
    %290 = vector.load %arg4[%c29, %c0_206] : memref<49x256xf32, #tpu.memory_space<vmem>>, vector<1x256xf32>
    %291 = arith.mulf %289, %290 : vector<1x256xf32>
    %c0_207 = arith.constant 0 : index
    %c142_208 = arith.constant 142 : index
    %292 = vector.load %arg8[%c0_207, %c142_208] : memref<1x512xf32, #tpu.memory_space<vmem>>, vector<1x256xf32>
    %c29_209 = arith.constant 29 : index
    %c0_210 = arith.constant 0 : index
    %293 = vector.load %arg5[%c29_209, %c0_210] : memref<49x256xf32, #tpu.memory_space<vmem>>, vector<1x256xf32>
    %294 = arith.mulf %292, %293 : vector<1x256xf32>
    %295 = arith.addf %291, %294 : vector<1x256xf32>
    %296 = arith.addf %288, %295 : vector<1x256xf32>
    %c0_211 = arith.constant 0 : index
    %c143 = arith.constant 143 : index
    %297 = vector.load %arg7[%c0_211, %c143] : memref<1x512xf32, #tpu.memory_space<vmem>>, vector<1x256xf32>
    %c30 = arith.constant 30 : index
    %c0_212 = arith.constant 0 : index
    %298 = vector.load %arg4[%c30, %c0_212] : memref<49x256xf32, #tpu.memory_space<vmem>>, vector<1x256xf32>
    %299 = arith.mulf %297, %298 : vector<1x256xf32>
    %c0_213 = arith.constant 0 : index
    %c143_214 = arith.constant 143 : index
    %300 = vector.load %arg8[%c0_213, %c143_214] : memref<1x512xf32, #tpu.memory_space<vmem>>, vector<1x256xf32>
    %c30_215 = arith.constant 30 : index
    %c0_216 = arith.constant 0 : index
    %301 = vector.load %arg5[%c30_215, %c0_216] : memref<49x256xf32, #tpu.memory_space<vmem>>, vector<1x256xf32>
    %302 = arith.mulf %300, %301 : vector<1x256xf32>
    %303 = arith.addf %299, %302 : vector<1x256xf32>
    %304 = arith.addf %296, %303 : vector<1x256xf32>
    %c0_217 = arith.constant 0 : index
    %c144 = arith.constant 144 : index
    %305 = vector.load %arg7[%c0_217, %c144] : memref<1x512xf32, #tpu.memory_space<vmem>>, vector<1x256xf32>
    %c31 = arith.constant 31 : index
    %c0_218 = arith.constant 0 : index
    %306 = vector.load %arg4[%c31, %c0_218] : memref<49x256xf32, #tpu.memory_space<vmem>>, vector<1x256xf32>
    %307 = arith.mulf %305, %306 : vector<1x256xf32>
    %c0_219 = arith.constant 0 : index
    %c144_220 = arith.constant 144 : index
    %308 = vector.load %arg8[%c0_219, %c144_220] : memref<1x512xf32, #tpu.memory_space<vmem>>, vector<1x256xf32>
    %c31_221 = arith.constant 31 : index
    %c0_222 = arith.constant 0 : index
    %309 = vector.load %arg5[%c31_221, %c0_222] : memref<49x256xf32, #tpu.memory_space<vmem>>, vector<1x256xf32>
    %310 = arith.mulf %308, %309 : vector<1x256xf32>
    %311 = arith.addf %307, %310 : vector<1x256xf32>
    %312 = arith.addf %304, %311 : vector<1x256xf32>
    %c0_223 = arith.constant 0 : index
    %c145 = arith.constant 145 : index
    %313 = vector.load %arg7[%c0_223, %c145] : memref<1x512xf32, #tpu.memory_space<vmem>>, vector<1x256xf32>
    %c32 = arith.constant 32 : index
    %c0_224 = arith.constant 0 : index
    %314 = vector.load %arg4[%c32, %c0_224] : memref<49x256xf32, #tpu.memory_space<vmem>>, vector<1x256xf32>
    %315 = arith.mulf %313, %314 : vector<1x256xf32>
    %c0_225 = arith.constant 0 : index
    %c145_226 = arith.constant 145 : index
    %316 = vector.load %arg8[%c0_225, %c145_226] : memref<1x512xf32, #tpu.memory_space<vmem>>, vector<1x256xf32>
    %c32_227 = arith.constant 32 : index
    %c0_228 = arith.constant 0 : index
    %317 = vector.load %arg5[%c32_227, %c0_228] : memref<49x256xf32, #tpu.memory_space<vmem>>, vector<1x256xf32>
    %318 = arith.mulf %316, %317 : vector<1x256xf32>
    %319 = arith.addf %315, %318 : vector<1x256xf32>
    %320 = arith.addf %312, %319 : vector<1x256xf32>
    %c0_229 = arith.constant 0 : index
    %c146 = arith.constant 146 : index
    %321 = vector.load %arg7[%c0_229, %c146] : memref<1x512xf32, #tpu.memory_space<vmem>>, vector<1x256xf32>
    %c33 = arith.constant 33 : index
    %c0_230 = arith.constant 0 : index
    %322 = vector.load %arg4[%c33, %c0_230] : memref<49x256xf32, #tpu.memory_space<vmem>>, vector<1x256xf32>
    %323 = arith.mulf %321, %322 : vector<1x256xf32>
    %c0_231 = arith.constant 0 : index
    %c146_232 = arith.constant 146 : index
    %324 = vector.load %arg8[%c0_231, %c146_232] : memref<1x512xf32, #tpu.memory_space<vmem>>, vector<1x256xf32>
    %c33_233 = arith.constant 33 : index
    %c0_234 = arith.constant 0 : index
    %325 = vector.load %arg5[%c33_233, %c0_234] : memref<49x256xf32, #tpu.memory_space<vmem>>, vector<1x256xf32>
    %326 = arith.mulf %324, %325 : vector<1x256xf32>
    %327 = arith.addf %323, %326 : vector<1x256xf32>
    %328 = arith.addf %320, %327 : vector<1x256xf32>
    %c0_235 = arith.constant 0 : index
    %c147 = arith.constant 147 : index
    %329 = vector.load %arg7[%c0_235, %c147] : memref<1x512xf32, #tpu.memory_space<vmem>>, vector<1x256xf32>
    %c34 = arith.constant 34 : index
    %c0_236 = arith.constant 0 : index
    %330 = vector.load %arg4[%c34, %c0_236] : memref<49x256xf32, #tpu.memory_space<vmem>>, vector<1x256xf32>
    %331 = arith.mulf %329, %330 : vector<1x256xf32>
    %c0_237 = arith.constant 0 : index
    %c147_238 = arith.constant 147 : index
    %332 = vector.load %arg8[%c0_237, %c147_238] : memref<1x512xf32, #tpu.memory_space<vmem>>, vector<1x256xf32>
    %c34_239 = arith.constant 34 : index
    %c0_240 = arith.constant 0 : index
    %333 = vector.load %arg5[%c34_239, %c0_240] : memref<49x256xf32, #tpu.memory_space<vmem>>, vector<1x256xf32>
    %334 = arith.mulf %332, %333 : vector<1x256xf32>
    %335 = arith.addf %331, %334 : vector<1x256xf32>
    %336 = arith.addf %328, %335 : vector<1x256xf32>
    %c0_241 = arith.constant 0 : index
    %c157 = arith.constant 157 : index
    %337 = vector.load %arg7[%c0_241, %c157] : memref<1x512xf32, #tpu.memory_space<vmem>>, vector<1x256xf32>
    %c35 = arith.constant 35 : index
    %c0_242 = arith.constant 0 : index
    %338 = vector.load %arg4[%c35, %c0_242] : memref<49x256xf32, #tpu.memory_space<vmem>>, vector<1x256xf32>
    %339 = arith.mulf %337, %338 : vector<1x256xf32>
    %c0_243 = arith.constant 0 : index
    %c157_244 = arith.constant 157 : index
    %340 = vector.load %arg8[%c0_243, %c157_244] : memref<1x512xf32, #tpu.memory_space<vmem>>, vector<1x256xf32>
    %c35_245 = arith.constant 35 : index
    %c0_246 = arith.constant 0 : index
    %341 = vector.load %arg5[%c35_245, %c0_246] : memref<49x256xf32, #tpu.memory_space<vmem>>, vector<1x256xf32>
    %342 = arith.mulf %340, %341 : vector<1x256xf32>
    %343 = arith.addf %339, %342 : vector<1x256xf32>
    %344 = arith.addf %336, %343 : vector<1x256xf32>
    %c0_247 = arith.constant 0 : index
    %c158 = arith.constant 158 : index
    %345 = vector.load %arg7[%c0_247, %c158] : memref<1x512xf32, #tpu.memory_space<vmem>>, vector<1x256xf32>
    %c36 = arith.constant 36 : index
    %c0_248 = arith.constant 0 : index
    %346 = vector.load %arg4[%c36, %c0_248] : memref<49x256xf32, #tpu.memory_space<vmem>>, vector<1x256xf32>
    %347 = arith.mulf %345, %346 : vector<1x256xf32>
    %c0_249 = arith.constant 0 : index
    %c158_250 = arith.constant 158 : index
    %348 = vector.load %arg8[%c0_249, %c158_250] : memref<1x512xf32, #tpu.memory_space<vmem>>, vector<1x256xf32>
    %c36_251 = arith.constant 36 : index
    %c0_252 = arith.constant 0 : index
    %349 = vector.load %arg5[%c36_251, %c0_252] : memref<49x256xf32, #tpu.memory_space<vmem>>, vector<1x256xf32>
    %350 = arith.mulf %348, %349 : vector<1x256xf32>
    %351 = arith.addf %347, %350 : vector<1x256xf32>
    %352 = arith.addf %344, %351 : vector<1x256xf32>
    %c0_253 = arith.constant 0 : index
    %c159 = arith.constant 159 : index
    %353 = vector.load %arg7[%c0_253, %c159] : memref<1x512xf32, #tpu.memory_space<vmem>>, vector<1x256xf32>
    %c37 = arith.constant 37 : index
    %c0_254 = arith.constant 0 : index
    %354 = vector.load %arg4[%c37, %c0_254] : memref<49x256xf32, #tpu.memory_space<vmem>>, vector<1x256xf32>
    %355 = arith.mulf %353, %354 : vector<1x256xf32>
    %c0_255 = arith.constant 0 : index
    %c159_256 = arith.constant 159 : index
    %356 = vector.load %arg8[%c0_255, %c159_256] : memref<1x512xf32, #tpu.memory_space<vmem>>, vector<1x256xf32>
    %c37_257 = arith.constant 37 : index
    %c0_258 = arith.constant 0 : index
    %357 = vector.load %arg5[%c37_257, %c0_258] : memref<49x256xf32, #tpu.memory_space<vmem>>, vector<1x256xf32>
    %358 = arith.mulf %356, %357 : vector<1x256xf32>
    %359 = arith.addf %355, %358 : vector<1x256xf32>
    %360 = arith.addf %352, %359 : vector<1x256xf32>
    %c0_259 = arith.constant 0 : index
    %c160 = arith.constant 160 : index
    %361 = vector.load %arg7[%c0_259, %c160] : memref<1x512xf32, #tpu.memory_space<vmem>>, vector<1x256xf32>
    %c38 = arith.constant 38 : index
    %c0_260 = arith.constant 0 : index
    %362 = vector.load %arg4[%c38, %c0_260] : memref<49x256xf32, #tpu.memory_space<vmem>>, vector<1x256xf32>
    %363 = arith.mulf %361, %362 : vector<1x256xf32>
    %c0_261 = arith.constant 0 : index
    %c160_262 = arith.constant 160 : index
    %364 = vector.load %arg8[%c0_261, %c160_262] : memref<1x512xf32, #tpu.memory_space<vmem>>, vector<1x256xf32>
    %c38_263 = arith.constant 38 : index
    %c0_264 = arith.constant 0 : index
    %365 = vector.load %arg5[%c38_263, %c0_264] : memref<49x256xf32, #tpu.memory_space<vmem>>, vector<1x256xf32>
    %366 = arith.mulf %364, %365 : vector<1x256xf32>
    %367 = arith.addf %363, %366 : vector<1x256xf32>
    %368 = arith.addf %360, %367 : vector<1x256xf32>
    %c0_265 = arith.constant 0 : index
    %c161 = arith.constant 161 : index
    %369 = vector.load %arg7[%c0_265, %c161] : memref<1x512xf32, #tpu.memory_space<vmem>>, vector<1x256xf32>
    %c39 = arith.constant 39 : index
    %c0_266 = arith.constant 0 : index
    %370 = vector.load %arg4[%c39, %c0_266] : memref<49x256xf32, #tpu.memory_space<vmem>>, vector<1x256xf32>
    %371 = arith.mulf %369, %370 : vector<1x256xf32>
    %c0_267 = arith.constant 0 : index
    %c161_268 = arith.constant 161 : index
    %372 = vector.load %arg8[%c0_267, %c161_268] : memref<1x512xf32, #tpu.memory_space<vmem>>, vector<1x256xf32>
    %c39_269 = arith.constant 39 : index
    %c0_270 = arith.constant 0 : index
    %373 = vector.load %arg5[%c39_269, %c0_270] : memref<49x256xf32, #tpu.memory_space<vmem>>, vector<1x256xf32>
    %374 = arith.mulf %372, %373 : vector<1x256xf32>
    %375 = arith.addf %371, %374 : vector<1x256xf32>
    %376 = arith.addf %368, %375 : vector<1x256xf32>
    %c0_271 = arith.constant 0 : index
    %c162 = arith.constant 162 : index
    %377 = vector.load %arg7[%c0_271, %c162] : memref<1x512xf32, #tpu.memory_space<vmem>>, vector<1x256xf32>
    %c40 = arith.constant 40 : index
    %c0_272 = arith.constant 0 : index
    %378 = vector.load %arg4[%c40, %c0_272] : memref<49x256xf32, #tpu.memory_space<vmem>>, vector<1x256xf32>
    %379 = arith.mulf %377, %378 : vector<1x256xf32>
    %c0_273 = arith.constant 0 : index
    %c162_274 = arith.constant 162 : index
    %380 = vector.load %arg8[%c0_273, %c162_274] : memref<1x512xf32, #tpu.memory_space<vmem>>, vector<1x256xf32>
    %c40_275 = arith.constant 40 : index
    %c0_276 = arith.constant 0 : index
    %381 = vector.load %arg5[%c40_275, %c0_276] : memref<49x256xf32, #tpu.memory_space<vmem>>, vector<1x256xf32>
    %382 = arith.mulf %380, %381 : vector<1x256xf32>
    %383 = arith.addf %379, %382 : vector<1x256xf32>
    %384 = arith.addf %376, %383 : vector<1x256xf32>
    %c0_277 = arith.constant 0 : index
    %c163 = arith.constant 163 : index
    %385 = vector.load %arg7[%c0_277, %c163] : memref<1x512xf32, #tpu.memory_space<vmem>>, vector<1x256xf32>
    %c41 = arith.constant 41 : index
    %c0_278 = arith.constant 0 : index
    %386 = vector.load %arg4[%c41, %c0_278] : memref<49x256xf32, #tpu.memory_space<vmem>>, vector<1x256xf32>
    %387 = arith.mulf %385, %386 : vector<1x256xf32>
    %c0_279 = arith.constant 0 : index
    %c163_280 = arith.constant 163 : index
    %388 = vector.load %arg8[%c0_279, %c163_280] : memref<1x512xf32, #tpu.memory_space<vmem>>, vector<1x256xf32>
    %c41_281 = arith.constant 41 : index
    %c0_282 = arith.constant 0 : index
    %389 = vector.load %arg5[%c41_281, %c0_282] : memref<49x256xf32, #tpu.memory_space<vmem>>, vector<1x256xf32>
    %390 = arith.mulf %388, %389 : vector<1x256xf32>
    %391 = arith.addf %387, %390 : vector<1x256xf32>
    %392 = arith.addf %384, %391 : vector<1x256xf32>
    %c0_283 = arith.constant 0 : index
    %c173 = arith.constant 173 : index
    %393 = vector.load %arg7[%c0_283, %c173] : memref<1x512xf32, #tpu.memory_space<vmem>>, vector<1x256xf32>
    %c42 = arith.constant 42 : index
    %c0_284 = arith.constant 0 : index
    %394 = vector.load %arg4[%c42, %c0_284] : memref<49x256xf32, #tpu.memory_space<vmem>>, vector<1x256xf32>
    %395 = arith.mulf %393, %394 : vector<1x256xf32>
    %c0_285 = arith.constant 0 : index
    %c173_286 = arith.constant 173 : index
    %396 = vector.load %arg8[%c0_285, %c173_286] : memref<1x512xf32, #tpu.memory_space<vmem>>, vector<1x256xf32>
    %c42_287 = arith.constant 42 : index
    %c0_288 = arith.constant 0 : index
    %397 = vector.load %arg5[%c42_287, %c0_288] : memref<49x256xf32, #tpu.memory_space<vmem>>, vector<1x256xf32>
    %398 = arith.mulf %396, %397 : vector<1x256xf32>
    %399 = arith.addf %395, %398 : vector<1x256xf32>
    %400 = arith.addf %392, %399 : vector<1x256xf32>
    %c0_289 = arith.constant 0 : index
    %c174 = arith.constant 174 : index
    %401 = vector.load %arg7[%c0_289, %c174] : memref<1x512xf32, #tpu.memory_space<vmem>>, vector<1x256xf32>
    %c43 = arith.constant 43 : index
    %c0_290 = arith.constant 0 : index
    %402 = vector.load %arg4[%c43, %c0_290] : memref<49x256xf32, #tpu.memory_space<vmem>>, vector<1x256xf32>
    %403 = arith.mulf %401, %402 : vector<1x256xf32>
    %c0_291 = arith.constant 0 : index
    %c174_292 = arith.constant 174 : index
    %404 = vector.load %arg8[%c0_291, %c174_292] : memref<1x512xf32, #tpu.memory_space<vmem>>, vector<1x256xf32>
    %c43_293 = arith.constant 43 : index
    %c0_294 = arith.constant 0 : index
    %405 = vector.load %arg5[%c43_293, %c0_294] : memref<49x256xf32, #tpu.memory_space<vmem>>, vector<1x256xf32>
    %406 = arith.mulf %404, %405 : vector<1x256xf32>
    %407 = arith.addf %403, %406 : vector<1x256xf32>
    %408 = arith.addf %400, %407 : vector<1x256xf32>
    %c0_295 = arith.constant 0 : index
    %c175 = arith.constant 175 : index
    %409 = vector.load %arg7[%c0_295, %c175] : memref<1x512xf32, #tpu.memory_space<vmem>>, vector<1x256xf32>
    %c44 = arith.constant 44 : index
    %c0_296 = arith.constant 0 : index
    %410 = vector.load %arg4[%c44, %c0_296] : memref<49x256xf32, #tpu.memory_space<vmem>>, vector<1x256xf32>
    %411 = arith.mulf %409, %410 : vector<1x256xf32>
    %c0_297 = arith.constant 0 : index
    %c175_298 = arith.constant 175 : index
    %412 = vector.load %arg8[%c0_297, %c175_298] : memref<1x512xf32, #tpu.memory_space<vmem>>, vector<1x256xf32>
    %c44_299 = arith.constant 44 : index
    %c0_300 = arith.constant 0 : index
    %413 = vector.load %arg5[%c44_299, %c0_300] : memref<49x256xf32, #tpu.memory_space<vmem>>, vector<1x256xf32>
    %414 = arith.mulf %412, %413 : vector<1x256xf32>
    %415 = arith.addf %411, %414 : vector<1x256xf32>
    %416 = arith.addf %408, %415 : vector<1x256xf32>
    %c0_301 = arith.constant 0 : index
    %c176 = arith.constant 176 : index
    %417 = vector.load %arg7[%c0_301, %c176] : memref<1x512xf32, #tpu.memory_space<vmem>>, vector<1x256xf32>
    %c45 = arith.constant 45 : index
    %c0_302 = arith.constant 0 : index
    %418 = vector.load %arg4[%c45, %c0_302] : memref<49x256xf32, #tpu.memory_space<vmem>>, vector<1x256xf32>
    %419 = arith.mulf %417, %418 : vector<1x256xf32>
    %c0_303 = arith.constant 0 : index
    %c176_304 = arith.constant 176 : index
    %420 = vector.load %arg8[%c0_303, %c176_304] : memref<1x512xf32, #tpu.memory_space<vmem>>, vector<1x256xf32>
    %c45_305 = arith.constant 45 : index
    %c0_306 = arith.constant 0 : index
    %421 = vector.load %arg5[%c45_305, %c0_306] : memref<49x256xf32, #tpu.memory_space<vmem>>, vector<1x256xf32>
    %422 = arith.mulf %420, %421 : vector<1x256xf32>
    %423 = arith.addf %419, %422 : vector<1x256xf32>
    %424 = arith.addf %416, %423 : vector<1x256xf32>
    %c0_307 = arith.constant 0 : index
    %c177 = arith.constant 177 : index
    %425 = vector.load %arg7[%c0_307, %c177] : memref<1x512xf32, #tpu.memory_space<vmem>>, vector<1x256xf32>
    %c46 = arith.constant 46 : index
    %c0_308 = arith.constant 0 : index
    %426 = vector.load %arg4[%c46, %c0_308] : memref<49x256xf32, #tpu.memory_space<vmem>>, vector<1x256xf32>
    %427 = arith.mulf %425, %426 : vector<1x256xf32>
    %c0_309 = arith.constant 0 : index
    %c177_310 = arith.constant 177 : index
    %428 = vector.load %arg8[%c0_309, %c177_310] : memref<1x512xf32, #tpu.memory_space<vmem>>, vector<1x256xf32>
    %c46_311 = arith.constant 46 : index
    %c0_312 = arith.constant 0 : index
    %429 = vector.load %arg5[%c46_311, %c0_312] : memref<49x256xf32, #tpu.memory_space<vmem>>, vector<1x256xf32>
    %430 = arith.mulf %428, %429 : vector<1x256xf32>
    %431 = arith.addf %427, %430 : vector<1x256xf32>
    %432 = arith.addf %424, %431 : vector<1x256xf32>
    %c0_313 = arith.constant 0 : index
    %c178 = arith.constant 178 : index
    %433 = vector.load %arg7[%c0_313, %c178] : memref<1x512xf32, #tpu.memory_space<vmem>>, vector<1x256xf32>
    %c47 = arith.constant 47 : index
    %c0_314 = arith.constant 0 : index
    %434 = vector.load %arg4[%c47, %c0_314] : memref<49x256xf32, #tpu.memory_space<vmem>>, vector<1x256xf32>
    %435 = arith.mulf %433, %434 : vector<1x256xf32>
    %c0_315 = arith.constant 0 : index
    %c178_316 = arith.constant 178 : index
    %436 = vector.load %arg8[%c0_315, %c178_316] : memref<1x512xf32, #tpu.memory_space<vmem>>, vector<1x256xf32>
    %c47_317 = arith.constant 47 : index
    %c0_318 = arith.constant 0 : index
    %437 = vector.load %arg5[%c47_317, %c0_318] : memref<49x256xf32, #tpu.memory_space<vmem>>, vector<1x256xf32>
    %438 = arith.mulf %436, %437 : vector<1x256xf32>
    %439 = arith.addf %435, %438 : vector<1x256xf32>
    %440 = arith.addf %432, %439 : vector<1x256xf32>
    %c0_319 = arith.constant 0 : index
    %c179 = arith.constant 179 : index
    %441 = vector.load %arg7[%c0_319, %c179] : memref<1x512xf32, #tpu.memory_space<vmem>>, vector<1x256xf32>
    %c48 = arith.constant 48 : index
    %c0_320 = arith.constant 0 : index
    %442 = vector.load %arg4[%c48, %c0_320] : memref<49x256xf32, #tpu.memory_space<vmem>>, vector<1x256xf32>
    %443 = arith.mulf %441, %442 : vector<1x256xf32>
    %c0_321 = arith.constant 0 : index
    %c179_322 = arith.constant 179 : index
    %444 = vector.load %arg8[%c0_321, %c179_322] : memref<1x512xf32, #tpu.memory_space<vmem>>, vector<1x256xf32>
    %c48_323 = arith.constant 48 : index
    %c0_324 = arith.constant 0 : index
    %445 = vector.load %arg5[%c48_323, %c0_324] : memref<49x256xf32, #tpu.memory_space<vmem>>, vector<1x256xf32>
    %446 = arith.mulf %444, %445 : vector<1x256xf32>
    %447 = arith.addf %443, %446 : vector<1x256xf32>
    %448 = arith.addf %440, %447 : vector<1x256xf32>
    %449 = arith.negf %448 : vector<1x256xf32>
    %450 = math.exp %449 : vector<1x256xf32>
    %cst_325 = arith.constant 1.000000e+00 : f32
    %451 = vector.broadcast %cst_325 : f32 to vector<1x256xf32>
    %452 = arith.addf %451, %450 : vector<1x256xf32>
    %453 = arith.divf %451, %452 : vector<1x256xf32>
    %c0_326 = arith.constant 0 : index
    %c0_327 = arith.constant 0 : index
    %c0_328 = arith.constant 0 : index
    %454 = vector.load %arg1[%c0_326, %c0_327, %c0_328] : memref<1x64x256xf32, #tpu.memory_space<vmem>>, vector<1x64x256xf32>
    %455 = vector.shape_cast %454 : vector<1x64x256xf32> to vector<64x256xf32>
    %456 = vector.broadcast %43 : vector<64x1xf32> to vector<64x256xf32>
    %457 = arith.mulf %455, %456 : vector<64x256xf32>
    %458 = vector.broadcast %453 : vector<1x256xf32> to vector<64x256xf32>
    %459 = arith.mulf %457, %458 : vector<64x256xf32>
    %c0_329 = arith.constant 0 : index
    %c0_330 = arith.constant 0 : index
    %c0_331 = arith.constant 0 : index
    %460 = vector.load %arg6[%c0_329, %c0_330, %c0_331] : memref<1x64x256xf32, #tpu.memory_space<vmem>>, vector<1x64x256xf32>
    %461 = vector.shape_cast %460 : vector<1x64x256xf32> to vector<64x256xf32>
    %462 = vector.shape_cast %459 : vector<64x256xf32> to vector<1x64x256xf32>
    tpu.vector_store %arg6[%c0_329, %c0_330, %c0_331], %462 {strides = array<i32>} : memref<1x64x256xf32, #tpu.memory_space<vmem>>, vector<1x64x256xf32>,
    return
  }
  func.func @transform_0(%arg0: i32) -> (i32, i32, i32) {
    %c0_i32 = arith.constant 0 : i32
    %c0_i32_0 = arith.constant 0 : i32
    %c0_i32_1 = arith.constant 0 : i32
    return %arg0, %c0_i32, %c0_i32_0 : i32, i32, i32
  }
  func.func @transform_1(%arg0: i32) -> (i32, i32) {
    %c0_i32 = arith.constant 0 : i32
    %c0_i32_0 = arith.constant 0 : i32
    %c0_i32_1 = arith.constant 0 : i32
    return %c0_i32, %c0_i32_0 : i32, i32
  }
  func.func @transform_2(%arg0: i32) -> (i32, i32) {
    %c0_i32 = arith.constant 0 : i32
    %c0_i32_0 = arith.constant 0 : i32
    %c0_i32_1 = arith.constant 0 : i32
    return %c0_i32, %c0_i32_0 : i32, i32
  }
  func.func @transform_3(%arg0: i32) -> (i32, i32) {
    %c0_i32 = arith.constant 0 : i32
    %c0_i32_0 = arith.constant 0 : i32
    %c0_i32_1 = arith.constant 0 : i32
    return %c0_i32, %c0_i32_0 : i32, i32
  }
  func.func @transform_4(%arg0: i32) -> (i32, i32) {
    %c0_i32 = arith.constant 0 : i32
    %c0_i32_0 = arith.constant 0 : i32
    %c0_i32_1 = arith.constant 0 : i32
    return %c0_i32, %c0_i32_0 : i32, i32
  }
  func.func @transform_5(%arg0: i32) -> (i32, i32, i32) {
    %c0_i32 = arith.constant 0 : i32
    %c0_i32_0 = arith.constant 0 : i32
    %c0_i32_1 = arith.constant 0 : i32
    return %arg0, %c0_i32, %c0_i32_0 : i32, i32, i32
  }
}

</mosaic_0001>

<llo_original>
// kernel: tpu_custom_call.1
$region0: #{tpu_custom_call.1}
  #allocation0 [shape = 'u32[]', space=smem, size = 0x4, offset = 0x4, fixed_abs, tag = 'smem constant byte address 0x4 - core index']
  #allocation1 [shape = 'u32[144,128]{1,0:T(1,128)}', space=vmem, size = 0x12000, scoped, tag = 'internal scratch']
  #allocation2 [shape = 'f32[1,512]{1,0:T(1,128)}', space=vmem, size = 0x800, scoped, tag = 'scratch operand']
  #allocation3 [shape = 'f32[1,512]{1,0:T(1,128)}', space=vmem, size = 0x800, scoped, tag = 'scratch operand']
  %s0 = inlined_call_operand.hbm [shape: f32[2,64,256], index: 0, kind: input, shape index: {}]
  %s1 = inlined_call_operand.vmem [shape: f32[16,64], index: 1, kind: input, shape index: {}]
  %s2 = inlined_call_operand.vmem [shape: f32[64,16], index: 2, kind: input, shape index: {}]
  %s3 = inlined_call_operand.hbm [shape: f32[49,256], index: 3, kind: input, shape index: {}]
  %s4 = inlined_call_operand.hbm [shape: f32[49,256], index: 4, kind: input, shape index: {}]
  %s5 = inlined_call_operand.hbm [shape: f32[2,64,256], index: 5, kind: output, shape index: {}]
  %s6 = sld [smem:[#allocation0]]
  $region65: #{tpu_custom_call.1} parent=0
    _
  %s8 = ssub.s32 1, %s6
  %s9 = scalar_select 0, %s8, %s6
  $region1: #{tpu_custom_call.1} parent=0
    #allocation4 [shape = 'u8[131072]{0}', space=vmem, size = 0x20000, scoped, tag = 'input window, operand 0']
    #allocation5 [shape = 's32[2]{0}', space=sflag, size = 0x8, scoped, tag = 'scoped memory for tpu_custom_call.1']
    #allocation6 [shape = 's32[2]{0}', space=sflag, size = 0x8, scoped, tag = 'scoped memory for tpu_custom_call.1']
    #allocation7 [shape = 'u8[57344]{0}', space=vmem, size = 0xe000, scoped, tag = 'input window, operand 3, single buffered']
    #allocation8 [shape = 's32[1]{0}', space=sflag, size = 0x4, scoped, tag = 'scoped memory for tpu_custom_call.1']
    #allocation9 [shape = 'u8[57344]{0}', space=vmem, size = 0xe000, scoped, tag = 'input window, operand 4, single buffered']
    #allocation10 [shape = 'u8[131072]{0}', space=vmem, size = 0x20000, scoped, tag = 'output window, operand 0']
    %10 = vsyncpa [#allocation5], 0
    %s11 = scalar_lea.sflag [#allocation5], 1
    %12 = vsyncpa %s11, 0
    %13 = vsyncpa [#allocation8], 0
    %14 = vsyncpa [#allocation6], 0
    %s15 = scalar_lea.sflag [#allocation6], 1
    %16 = vsyncpa %s15, 0
    loop: start=0, step=1, limit=4
    $region2: #{tpu_custom_call.1} parent=1 // loop_pre_header
      _
    $region3: #{tpu_custom_call.1} parent=1 // loop_header
      %s18 = sphi 0, %s22
      %p19 = scmp.ge.s32.totalorder %s18, 4
      %s28 = sphi 0, %s30
      %s31 = sphi 0, %s28
      %s32 = sphi 0, %s31
      %s48 = sphi 0, %s32
      %s52 = sphi 0, %s52
      %s54 = sphi 0, %s52
      %s55 = sphi 0, %s54
      %s69 = sphi 0, %s55
      %s73 = sphi 0, %s73
      %s75 = sphi 0, %s73
      %s76 = sphi 0, %s75
      %s90 = sphi 0, %s76
      %s94 = sphi 0, %s94
      %s96 = sphi 0, %s94
      %s97 = sphi 0, %s96
      %s111 = sphi 0, %s97
      %s115 = sphi 0, %s115
      %s117 = sphi 0, %s115
      %s118 = sphi 0, %s117
      %s132 = sphi 0, %s118
      %s138 = sphi 0, %s140
      %s141 = sphi 0, %s138
      %s142 = sphi 0, %s141
      %s158 = sphi 0, %s142
    $region4: #{tpu_custom_call.1} parent=1 // loop_header_branch
      %21 = sbr.rel (%p19) target = $region8
    $region5: #{tpu_custom_call.1} parent=1 // loop_body
      %s23 = ssub.s32 %s18, 1
      %s24 = ssub.s32 %s18, 2
      %s25 = sadd.s32 %s18, 1
      %s26 = ssub.s32 %s18, %s25
      %p27 = scmp.eq.s32.totalorder %s26, 0
      %s29 = sadd.s32 %s28, 1
      %s30 = scalar_select %p27, %s28, %s29
      %p33 = pneg %p27
      %p34 = scmp.eq.s32.totalorder %s18, 1
      %p35 = por %p33, %p34
      %p36 = scmp.ne.s32.totalorder %s28, %s31
      %p37 = scmp.eq.s32.totalorder %s18, 0
      %p38 = por %p36, %p37
      %p39 = scmp.ne.s32.totalorder %s28, %s31
      %p40 = scmp.eq.s32.totalorder %s23, 1
      %p41 = por %p39, %p40
      %p42 = scmp.ne.s32.totalorder %s31, %s32
      %p43 = scmp.eq.s32.totalorder %s23, 0
      %p44 = por %p42, %p43
      %p45 = scmp.ne.s32.totalorder %s31, %s32
      %p46 = scmp.eq.s32.totalorder %s24, 1
      %p47 = por %p45, %p46
      %p49 = scmp.ne.s32.totalorder %s32, %s48
      %p50 = scmp.eq.s32.totalorder %s24, 0
      %p51 = por %p49, %p50
      %s53 = sadd.s32 %s52, 1
      %p56 = scmp.eq.s32.totalorder %s18, 1
      %p57 = scmp.ne.s32.totalorder %s52, %s54
      %p58 = scmp.eq.s32.totalorder %s18, 0
      %p59 = por %p57, %p58
      %p60 = scmp.ne.s32.totalorder %s52, %s54
      %p61 = scmp.eq.s32.totalorder %s23, 1
      %p62 = por %p60, %p61
      %p63 = scmp.ne.s32.totalorder %s54, %s55
      %p64 = scmp.eq.s32.totalorder %s23, 0
      %p65 = por %p63, %p64
      %p66 = scmp.ne.s32.totalorder %s54, %s55
      %p67 = scmp.eq.s32.totalorder %s24, 1
      %p68 = por %p66, %p67
      %p70 = scmp.ne.s32.totalorder %s55, %s69
      %p71 = scmp.eq.s32.totalorder %s24, 0
      %p72 = por %p70, %p71
      %s74 = sadd.s32 %s73, 1
      %p77 = scmp.eq.s32.totalorder %s18, 1
      %p78 = scmp.ne.s32.totalorder %s73, %s75
      %p79 = scmp.eq.s32.totalorder %s18, 0
      %p80 = por %p78, %p79
      %p81 = scmp.ne.s32.totalorder %s73, %s75
      %p82 = scmp.eq.s32.totalorder %s23, 1
      %p83 = por %p81, %p82
      %p84 = scmp.ne.s32.totalorder %s75, %s76
      %p85 = scmp.eq.s32.totalorder %s23, 0
      %p86 = por %p84, %p85
      %p87 = scmp.ne.s32.totalorder %s75, %s76
      %p88 = scmp.eq.s32.totalorder %s24, 1
      %p89 = por %p87, %p88
      %p91 = scmp.ne.s32.totalorder %s76, %s90
      %p92 = scmp.eq.s32.totalorder %s24, 0
      %p93 = por %p91, %p92
      %s95 = sadd.s32 %s94, 1
      %p98 = scmp.eq.s32.totalorder %s18, 1
      %p99 = scmp.ne.s32.totalorder %s94, %s96
      %p100 = scmp.eq.s32.totalorder %s18, 0
      %p101 = por %p99, %p100
      %p102 = scmp.ne.s32.totalorder %s94, %s96
      %p103 = scmp.eq.s32.totalorder %s23, 1
      %p104 = por %p102, %p103
      %p105 = scmp.ne.s32.totalorder %s96, %s97
      %p106 = scmp.eq.s32.totalorder %s23, 0
      %p107 = por %p105, %p106
      %p108 = scmp.ne.s32.totalorder %s96, %s97
      %p109 = scmp.eq.s32.totalorder %s24, 1
      %p110 = por %p108, %p109
      %p112 = scmp.ne.s32.totalorder %s97, %s111
      %p113 = scmp.eq.s32.totalorder %s24, 0
      %p114 = por %p112, %p113
      %s116 = sadd.s32 %s115, 1
      %p119 = scmp.eq.s32.totalorder %s18, 1
      %p120 = scmp.ne.s32.totalorder %s115, %s117
      %p121 = scmp.eq.s32.totalorder %s18, 0
      %p122 = por %p120, %p121
      %p123 = scmp.ne.s32.totalorder %s115, %s117
      %p124 = scmp.eq.s32.totalorder %s23, 1
      %p125 = por %p123, %p124
      %p126 = scmp.ne.s32.totalorder %s117, %s118
      %p127 = scmp.eq.s32.totalorder %s23, 0
      %p128 = por %p126, %p127
      %p129 = scmp.ne.s32.totalorder %s117, %s118
      %p130 = scmp.eq.s32.totalorder %s24, 1
      %p131 = por %p129, %p130
      %p133 = scmp.ne.s32.totalorder %s118, %s132
      %p134 = scmp.eq.s32.totalorder %s24, 0
      %p135 = por %p133, %p134
      %s136 = ssub.s32 %s18, %s25
      %p137 = scmp.eq.s32.totalorder %s136, 0
      %s139 = sadd.s32 %s138, 1
      %s140 = scalar_select %p137, %s138, %s139
      %p143 = pneg %p137
      %p144 = scmp.eq.s32.totalorder %s18, 1
      %p145 = por %p143, %p144
      %p146 = scmp.ne.s32.totalorder %s138, %s141
      %p147 = scmp.eq.s32.totalorder %s18, 0
      %p148 = por %p146, %p147
      %p149 = scmp.ne.s32.totalorder %s138, %s141
      %p150 = scmp.eq.s32.totalorder %s23, 1
      %p151 = por %p149, %p150
      %p152 = scmp.ne.s32.totalorder %s141, %s142
      %p153 = scmp.eq.s32.totalorder %s23, 0
      %p154 = por %p152, %p153
      %p155 = scmp.ne.s32.totalorder %s141, %s142
      %p156 = scmp.eq.s32.totalorder %s24, 1
      %p157 = por %p155, %p156
      %p159 = scmp.ne.s32.totalorder %s142, %s158
      %p160 = scmp.eq.s32.totalorder %s24, 0
      %p161 = por %p159, %p160
      %p162 = scmp.le.s32.totalorder 1, %s18
      %p163 = scmp.lt.s32.totalorder %s18, 3
      %p164 = pnand %p162, %p163
      %p165 = pneg %p164
      // Predicated region
      $region9: #{tpu_custom_call.1} parent=5 // pred_check
        _
      $region10: #{tpu_custom_call.1} parent=5 // pred_check_branch
        %167 = sbr.rel (%p164) target = $region12
      $region11: #{tpu_custom_call.1} parent=5 // pred_region
        %s168 = ssub.s32 %s18, 1
        // Predicated region
        $region13: #{tpu_custom_call.1} parent=11 // pred_check
          %p169 = pneg %p65
        $region14: #{tpu_custom_call.1} parent=11 // pred_check_branch
          %171 = sbr.rel (%p169) target = $region16
        $region15: #{tpu_custom_call.1} parent=11 // pred_region
          _
        $region16: #{tpu_custom_call.1} parent=11 // pred_fallthru
          _
        // Predicated region
        $region17: #{tpu_custom_call.1} parent=11 // pred_check
          %p172 = pneg %p86
        $region18: #{tpu_custom_call.1} parent=11 // pred_check_branch
          %174 = sbr.rel (%p172) target = $region20
        $region19: #{tpu_custom_call.1} parent=11 // pred_region
          _
        $region20: #{tpu_custom_call.1} parent=11 // pred_fallthru
          _
        // Predicated region
        $region21: #{tpu_custom_call.1} parent=11 // pred_check
          %p175 = pneg %p107
        $region22: #{tpu_custom_call.1} parent=11 // pred_check_branch
          %177 = sbr.rel (%p175) target = $region24
        $region23: #{tpu_custom_call.1} parent=11 // pred_region
          %s179 = ssub.s32 1792, 1792
          %180 = vsyncadd [#allocation8], %s179
          %s181 = sshll.u32 [#allocation7], 4
          %s182 = int_to_ptr.vmem [resolvable:$true] %s181
          %187 = dma.hbm_to_vmem [thread:$0]  %s3, 1792, %s182, [#allocation8], 256, 256, 16
        $region24: #{tpu_custom_call.1} parent=11 // pred_fallthru
          _
        // Predicated region
        $region25: #{tpu_custom_call.1} parent=11 // pred_check
          %p188 = pneg %p128
        $region26: #{tpu_custom_call.1} parent=11 // pred_check_branch
          %190 = sbr.rel (%p188) target = $region28
        $region27: #{tpu_custom_call.1} parent=11 // pred_region
          %s192 = ssub.s32 1792, 1792
          %193 = vsyncadd [#allocation8], %s192
          %s194 = sshll.u32 [#allocation9], 4
          %s195 = int_to_ptr.vmem [resolvable:$true] %s194
          %200 = dma.hbm_to_vmem [thread:$0]  %s4, 1792, %s195, [#allocation8], 256, 256, 16
        $region28: #{tpu_custom_call.1} parent=11 // pred_fallthru
          _
      $region12: #{tpu_custom_call.1} parent=5 // pred_fallthru
        _
      %p201 = scmp.lt.s32.totalorder %s18, 2
      // Predicated region
      $region29: #{tpu_custom_call.1} parent=5 // pred_check
        %p202 = pneg %p201
      $region30: #{tpu_custom_call.1} parent=5 // pred_check_branch
        %204 = sbr.rel (%p202) target = $region32
      $region31: #{tpu_custom_call.1} parent=5 // pred_region
        // Predicated region
        $region33: #{tpu_custom_call.1} parent=31 // pred_check
          %p205 = pneg %p38
        $region34: #{tpu_custom_call.1} parent=31 // pred_check_branch
          %207 = sbr.rel (%p205) target = $region36
        $region35: #{tpu_custom_call.1} parent=31 // pred_region
          %s208 = sand.u32 %s28, 1
          %s209 = scalar_lea.sflag [#allocation5], %s208
          %s210 = sand.u32 %s28, 1
          %s211 = smul.addr %s210, 128
          %s212 = scalar_lea.vmem [#allocation4], %s211
          %s214 = ssub.s32 2048, 2048
          %215 = vsyncadd %s209, %s214
          %s216 = smul.addr %s18, 16
          %s217 = smul.addr %s216, 128
          %s218 = scalar_lea.hbm %s0, %s217
          %s219 = sshll.u32 %s212, 4
          %s220 = int_to_ptr.vmem [resolvable:$true] %s219
          %225 = dma.hbm_to_vmem [thread:$0]  %s218, 2048, %s220, %s209, 256, 256, 16
        $region36: #{tpu_custom_call.1} parent=31 // pred_fallthru
          _
      $region32: #{tpu_custom_call.1} parent=5 // pred_fallthru
        _
      %p226 = scmp.le.s32.totalorder 1, %s18
      %p227 = scmp.lt.s32.totalorder %s18, 3
      %p228 = pnand %p226, %p227
      %p229 = pneg %p228
      // Predicated region
      $region37: #{tpu_custom_call.1} parent=5 // pred_check
        _
      $region38: #{tpu_custom_call.1} parent=5 // pred_check_branch
        %231 = sbr.rel (%p228) target = $region40
      $region39: #{tpu_custom_call.1} parent=5 // pred_region
        %s232 = ssub.s32 %s18, 1
        %s233 = sand.u32 %s31, 1
        %s234 = scalar_lea.sflag [#allocation5], %s233
        %s235 = sand.u32 %s31, 1
        %s236 = smul.addr %s235, 128
        %s237 = scalar_lea.vmem [#allocation4], %s236
        // Predicated region
        $region41: #{tpu_custom_call.1} parent=39 // pred_check
          %p238 = pneg %p44
        $region42: #{tpu_custom_call.1} parent=39 // pred_check_branch
          %240 = sbr.rel (%p238) target = $region44
        $region43: #{tpu_custom_call.1} parent=39 // pred_region
          %241 = dma.done %s234, 2048
        $region44: #{tpu_custom_call.1} parent=39 // pred_fallthru
          _
        // Predicated region
        $region45: #{tpu_custom_call.1} parent=39 // pred_check
          %p242 = pneg %p107
        $region46: #{tpu_custom_call.1} parent=39 // pred_check_branch
          %244 = sbr.rel (%p242) target = $region48
        $region47: #{tpu_custom_call.1} parent=39 // pred_region
          %245 = dma.done [#allocation8], 1792
        $region48: #{tpu_custom_call.1} parent=39 // pred_fallthru
          _
        // Predicated region
        $region49: #{tpu_custom_call.1} parent=39 // pred_check
          %p246 = pneg %p128
        $region50: #{tpu_custom_call.1} parent=39 // pred_check_branch
          %248 = sbr.rel (%p246) target = $region52
        $region51: #{tpu_custom_call.1} parent=39 // pred_region
          %249 = dma.done [#allocation8], 1792
        $region52: #{tpu_custom_call.1} parent=39 // pred_fallthru
          _
        %s250 = sand.u32 %s31, 1
        %s251 = scalar_lea.sflag [#allocation5], %s250
        %s252 = sand.u32 %s31, 1
        %s253 = smul.addr %s252, 128
        %s254 = scalar_lea.vmem [#allocation4], %s253
        %p255 = pneg %p44
        %p256 = pneg %p41
        %p257 = pneg %p65
        %p258 = pneg %p62
        %p259 = pneg %p86
        %p260 = pneg %p83
        %p261 = pneg %p107
        %p262 = pneg %p104
        %p263 = pneg %p128
        %p264 = pneg %p125
        %p265 = pneg %p154
        %p266 = pneg %p151
        %s267 = sand.u32 %s141, 1
        %s268 = scalar_lea.sflag [#allocation6], %s267
        %s269 = sand.u32 %s141, 1
        %s270 = smul.addr %s269, 128
        %s271 = scalar_lea.vmem [#allocation10], %s270
        %v272 = vlaneseq
        %v273 = vand.u32 %v272, 127
        %v274 = vld [vmem:[%s237] sm:$0xff]
        %v275 = vld [vmem:[%s237 + $0x8] sm:$0xff]
        %v276 = vld [vmem:[%s237 + $0x10] sm:$0xff]
        %v277 = vld [vmem:[%s237 + $0x18] sm:$0xff]
        %v278 = vld [vmem:[%s237 + $0x20] sm:$0xff]
        %v279 = vld [vmem:[%s237 + $0x28] sm:$0xff]
        %v280 = vld [vmem:[%s237 + $0x30] sm:$0xff]
        %v281 = vld [vmem:[%s237 + $0x38] sm:$0xff]
        %v282 = vld [vmem:[%s237 + $0x40] sm:$0xff]
        %v283 = vld [vmem:[%s237 + $0x48] sm:$0xff]
        %v284 = vld [vmem:[%s237 + $0x50] sm:$0xff]
        %v285 = vld [vmem:[%s237 + $0x58] sm:$0xff]
        %v286 = vld [vmem:[%s237 + $0x60] sm:$0xff]
        %v287 = vld [vmem:[%s237 + $0x68] sm:$0xff]
        %v288 = vld [vmem:[%s237 + $0x70] sm:$0xff]
        %v289 = vld [vmem:[%s237 + $0x78] sm:$0xff]
        %v290 = vadd.f32 %v274, %v275
        %291 = vadd.xlane.f32.xlu0 %v290
        %v292 = vpop.xlane.xlu0 %291
        %v293 = vadd.f32 %v276, %v277
        %294 = vadd.xlane.f32.xlu0 %v293
        %v295 = vpop.xlane.xlu0 %294
        %v296 = vadd.f32 %v278, %v279
        %297 = vadd.xlane.f32.xlu0 %v296
        %v298 = vpop.xlane.xlu0 %297
        %v299 = vadd.f32 %v280, %v281
        %300 = vadd.xlane.f32.xlu0 %v299
        %v301 = vpop.xlane.xlu0 %300
        %v302 = vadd.f32 %v282, %v283
        %303 = vadd.xlane.f32.xlu0 %v302
        %v304 = vpop.xlane.xlu0 %303
        %v305 = vadd.f32 %v284, %v285
        %306 = vadd.xlane.f32.xlu0 %v305
        %v307 = vpop.xlane.xlu0 %306
        %v308 = vadd.f32 %v286, %v287
        %309 = vadd.xlane.f32.xlu0 %v308
        %v310 = vpop.xlane.xlu0 %309
        %v311 = vadd.f32 %v288, %v289
        %312 = vadd.xlane.f32.xlu0 %v311
        %v313 = vpop.xlane.xlu0 %312
        %v314 = vrcp.pop 256.0
        %v315 = vmul.f32 %v292, %v314
        %v316 = vmul.f32 %v295, %v314
        %v317 = vmul.f32 %v298, %v314
        %v318 = vmul.f32 %v301, %v314
        %v319 = vmul.f32 %v304, %v314
        %v320 = vmul.f32 %v307, %v314
        %v321 = vmul.f32 %v310, %v314
        %v322 = vmul.f32 %v313, %v314
        %v323 = vmax.f32 %v274, %v275
        %324 = vmax.xlane.f32.xlu0 %v323
        %v325 = vpop.xlane.xlu0 %324
        %v326 = vmax.f32 %v276, %v277
        %327 = vmax.xlane.f32.xlu0 %v326
        %v328 = vpop.xlane.xlu0 %327
        %v329 = vmax.f32 %v278, %v279
        %330 = vmax.xlane.f32.xlu0 %v329
        %v331 = vpop.xlane.xlu0 %330
        %v332 = vmax.f32 %v280, %v281
        %333 = vmax.xlane.f32.xlu0 %v332
        %v334 = vpop.xlane.xlu0 %333
        %v335 = vmax.f32 %v282, %v283
        %336 = vmax.xlane.f32.xlu0 %v335
        %v337 = vpop.xlane.xlu0 %336
        %v338 = vmax.f32 %v284, %v285
        %339 = vmax.xlane.f32.xlu0 %v338
        %v340 = vpop.xlane.xlu0 %339
        %v341 = vmax.f32 %v286, %v287
        %342 = vmax.xlane.f32.xlu0 %v341
        %v343 = vpop.xlane.xlu0 %342
        %v344 = vmax.f32 %v288, %v289
        %345 = vmax.xlane.f32.xlu0 %v344
        %v346 = vpop.xlane.xlu0 %345
        %vm347 = vcmp.eq.s32.totalorder %v273, 0
        %v348 = vsel %vm347, 1, 0
        %v349 = vcvt.s32.f32 %v348
        %v350 = vmul.f32 %v315, %v349
        %v351 = vmul.f32 %v316, %v349
        %v352 = vmul.f32 %v317, %v349
        %v353 = vmul.f32 %v318, %v349
        %v354 = vmul.f32 %v319, %v349
        %v355 = vmul.f32 %v320, %v349
        %v356 = vmul.f32 %v321, %v349
        %v357 = vmul.f32 %v322, %v349
        %v358 = vadd.f32 %v350, 0.0
        %v359 = vadd.f32 %v351, 0.0
        %v360 = vadd.f32 %v352, 0.0
        %v361 = vadd.f32 %v353, 0.0
        %v362 = vadd.f32 %v354, 0.0
        %v363 = vadd.f32 %v355, 0.0
        %v364 = vadd.f32 %v356, 0.0
        %v365 = vadd.f32 %v357, 0.0
        %vm366 = vcmp.eq.s32.totalorder %v273, 1
        %v367 = vsel %vm366, 1, 0
        %v368 = vcvt.s32.f32 %v367
        %v369 = vmul.f32 %v325, %v368
        %v370 = vmul.f32 %v328, %v368
        %v371 = vmul.f32 %v331, %v368
        %v372 = vmul.f32 %v334, %v368
        %v373 = vmul.f32 %v337, %v368
        %v374 = vmul.f32 %v340, %v368
        %v375 = vmul.f32 %v343, %v368
        %v376 = vmul.f32 %v346, %v368
        %v377 = vadd.f32 %v358, %v369
        %v378 = vadd.f32 %v359, %v370
        %v379 = vadd.f32 %v360, %v371
        %v380 = vadd.f32 %v361, %v372
        %v381 = vadd.f32 %v362, %v373
        %v382 = vadd.f32 %v363, %v374
        %v383 = vadd.f32 %v364, %v375
        %v384 = vadd.f32 %v365, %v376
        %v385 = vld [vmem:[%s1] sm:$0xff]
        %v386 = vld [vmem:[%s1 + $0x8] sm:$0xff]
        %vm387 = vcmask 523264
        %v389 = vsel %vm387, %v385, 0
        %v392 = vsel %vm387, %v386, 0
        %394 = vmatprep.subr.mxu0 0.0
        %395 = vmatpush1.msra.mxu0 0.0
        %396 = vmatprep.subr.mxu0 0.0
        %397 = vmatpush1.msra.mxu0 0.0
        %398 = vmatprep.subr.mxu0 0.0
        %399 = vmatpush1.msra.mxu0 0.0
        %400 = vmatprep.subr.mxu0 0.0
        %401 = vmatpush1.msra.mxu0 0.0
        %402 = vmatprep.subr.mxu0 0.0
        %403 = vmatpush1.msra.mxu0 0.0
        %404 = vmatprep.subr.mxu0 0.0
        %405 = vmatpush1.msra.mxu0 0.0
        %406 = vmatprep.subr.mxu0 0.0
        %407 = vmatpush1.msra.mxu0 0.0
        %408 = vmatprep.subr.mxu0 0.0
        %409 = vmatpush1.msra.mxu0 0.0
        %410 = vmatprep.subr.mxu0 0.0
        %411 = vmatpush1.msra.mxu0 %v384
        %412 = vmatprep.subr.mxu0 0.0
        %413 = vmatpush1.msra.mxu0 %v383
        %414 = vmatprep.subr.mxu0 0.0
        %415 = vmatpush1.msra.mxu0 %v382
        %416 = vmatprep.subr.mxu0 0.0
        %417 = vmatpush1.msra.mxu0 %v381
        %418 = vmatprep.subr.mxu0 0.0
        %419 = vmatpush1.msra.mxu0 %v380
        %420 = vmatprep.subr.mxu0 0.0
        %421 = vmatpush1.msra.mxu0 %v379
        %422 = vmatprep.subr.mxu0 0.0
        %423 = vmatpush1.msra.mxu0 %v378
        %424 = vmatprep.subr.mxu0 0.0
        %425 = vmatpush1.msra.mxu0 %v377
        %426 = vmatprep.subr.mxu0 0.0
        %427 = vmatpush2.msra.mxu0 0.0
        %428 = vmatprep.subr.mxu0 0.0
        %429 = vmatpush2.msra.mxu0 0.0
        %430 = vmatprep.subr.mxu0 0.0
        %431 = vmatpush2.msra.mxu0 0.0
        %432 = vmatprep.subr.mxu0 0.0
        %433 = vmatpush2.msra.mxu0 0.0
        %434 = vmatprep.subr.mxu0 0.0
        %435 = vmatpush2.msra.mxu0 0.0
        %436 = vmatprep.subr.mxu0 0.0
        %437 = vmatpush2.msra.mxu0 0.0
        %438 = vmatprep.subr.mxu0 0.0
        %439 = vmatpush2.msra.mxu0 0.0
        %440 = vmatprep.subr.mxu0 0.0
        %441 = vmatpush2.msra.mxu0 0.0
        %442 = vmatprep.subr.mxu0 0.0
        %443 = vmatpush2.msra.mxu0 0.0
        %444 = vmatprep.subr.mxu0 0.0
        %445 = vmatpush2.msra.mxu0 0.0
        %446 = vmatprep.subr.mxu0 0.0
        %447 = vmatpush2.msra.mxu0 0.0
        %448 = vmatprep.subr.mxu0 0.0
        %449 = vmatpush2.msra.mxu0 0.0
        %450 = vmatprep.subr.mxu0 0.0
        %451 = vmatpush2.msra.mxu0 0.0
        %452 = vmatprep.subr.mxu0 0.0
        %453 = vmatpush2.msra.mxu0 0.0
        %454 = vmatprep.subr.mxu0 0.0
        %455 = vmatpush2.msra.mxu0 0.0
        %456 = vmatprep.subr.mxu0 0.0
        %457 = vmatpush2.msra.mxu0 0.0
        %458 = vmatprep.mubr.f32.mxu0 0.0
        %459 = vmatmul.mubr.f32.gmra.mxu0 %v389
        %v460 = vpop.f32.mrf.mxu0
        %v461 = vadd.f32 0.0, %v460
        %v462 = vpop.f32.mrf.mxu0
        %463 = vmatprep.mubr.f32.mxu0 0.0
        %464 = vmatmul.mubr.f32.gmra.mxu0 %v392
        %v465 = vpop.f32.mrf.mxu0
        %v466 = vadd.f32 0.0, %v465
        %v467 = vpop.f32.mrf.mxu0
        %468 = vdwg.mxu0
        %v469 = vmax.f32 %v461, 0.0
        %v470 = vmax.f32 %v466, 0.0
        %v471 = vld [vmem:[%s2] sm:$0xff]
        %v472 = vld [vmem:[%s2 + $0x8] sm:$0xff]
        %v473 = vld [vmem:[%s2 + $0x10] sm:$0xff]
        %v474 = vld [vmem:[%s2 + $0x18] sm:$0xff]
        %v475 = vld [vmem:[%s2 + $0x20] sm:$0xff]
        %v476 = vld [vmem:[%s2 + $0x28] sm:$0xff]
        %v477 = vld [vmem:[%s2 + $0x30] sm:$0xff]
        %v478 = vld [vmem:[%s2 + $0x38] sm:$0xff]
        %vm479 = vcmask 130048
        %v481 = vsel %vm479, %v471, 0
        %v484 = vsel %vm479, %v472, 0
        %v487 = vsel %vm479, %v473, 0
        %v490 = vsel %vm479, %v474, 0
        %v493 = vsel %vm479, %v475, 0
        %v496 = vsel %vm479, %v476, 0
        %v499 = vsel %vm479, %v477, 0
        %v502 = vsel %vm479, %v478, 0
        %504 = vmatprep.subr.mxu0 0.0
        %505 = vmatpush1.msra.mxu0 0.0
        %506 = vmatprep.subr.mxu0 0.0
        %507 = vmatpush1.msra.mxu0 0.0
        %508 = vmatprep.subr.mxu0 0.0
        %509 = vmatpush1.msra.mxu0 0.0
        %510 = vmatprep.subr.mxu0 0.0
        %511 = vmatpush1.msra.mxu0 0.0
        %512 = vmatprep.subr.mxu0 0.0
        %513 = vmatpush1.msra.mxu0 0.0
        %514 = vmatprep.subr.mxu0 0.0
        %515 = vmatpush1.msra.mxu0 0.0
        %516 = vmatprep.subr.mxu0 0.0
        %517 = vmatpush1.msra.mxu0 0.0
        %518 = vmatprep.subr.mxu0 0.0
        %519 = vmatpush1.msra.mxu0 0.0
        %520 = vmatprep.subr.mxu0 0.0
        %521 = vmatpush1.msra.mxu0 0.0
        %522 = vmatprep.subr.mxu0 0.0
        %523 = vmatpush1.msra.mxu0 0.0
        %524 = vmatprep.subr.mxu0 0.0
        %525 = vmatpush1.msra.mxu0 0.0
        %526 = vmatprep.subr.mxu0 0.0
        %527 = vmatpush1.msra.mxu0 0.0
        %528 = vmatprep.subr.mxu0 0.0
        %529 = vmatpush1.msra.mxu0 0.0
        %530 = vmatprep.subr.mxu0 0.0
        %531 = vmatpush1.msra.mxu0 0.0
        %532 = vmatprep.subr.mxu0 0.0
        %533 = vmatpush1.msra.mxu0 %v470
        %534 = vmatprep.subr.mxu0 0.0
        %535 = vmatpush1.msra.mxu0 %v469
        %536 = vmatprep.subr.mxu0 0.0
        %537 = vmatpush2.msra.mxu0 0.0
        %538 = vmatprep.subr.mxu0 0.0
        %539 = vmatpush2.msra.mxu0 0.0
        %540 = vmatprep.subr.mxu0 0.0
        %541 = vmatpush2.msra.mxu0 0.0
        %542 = vmatprep.subr.mxu0 0.0
        %543 = vmatpush2.msra.mxu0 0.0
        %544 = vmatprep.subr.mxu0 0.0
        %545 = vmatpush2.msra.mxu0 0.0
        %546 = vmatprep.subr.mxu0 0.0
        %547 = vmatpush2.msra.mxu0 0.0
        %548 = vmatprep.subr.mxu0 0.0
        %549 = vmatpush2.msra.mxu0 0.0
        %550 = vmatprep.subr.mxu0 0.0
        %551 = vmatpush2.msra.mxu0 0.0
        %552 = vmatprep.subr.mxu0 0.0
        %553 = vmatpush2.msra.mxu0 0.0
        %554 = vmatprep.subr.mxu0 0.0
        %555 = vmatpush2.msra.mxu0 0.0
        %556 = vmatprep.subr.mxu0 0.0
        %557 = vmatpush2.msra.mxu0 0.0
        %558 = vmatprep.subr.mxu0 0.0
        %559 = vmatpush2.msra.mxu0 0.0
        %560 = vmatprep.subr.mxu0 0.0
        %561 = vmatpush2.msra.mxu0 0.0
        %562 = vmatprep.subr.mxu0 0.0
        %563 = vmatpush2.msra.mxu0 0.0
        %564 = vmatprep.subr.mxu0 0.0
        %565 = vmatpush2.msra.mxu0 0.0
        %566 = vmatprep.subr.mxu0 0.0
        %567 = vmatpush2.msra.mxu0 0.0
        %568 = vmatprep.mubr.f32.mxu0 0.0
        %569 = vmatmul.mubr.f32.gmra.mxu0 %v481
        %v570 = vpop.f32.mrf.mxu0
        %v571 = vadd.f32 0.0, %v570
        %v572 = vpop.f32.mrf.mxu0
        %573 = vmatprep.mubr.f32.mxu0 0.0
        %574 = vmatmul.mubr.f32.gmra.mxu0 %v484
        %v575 = vpop.f32.mrf.mxu0
        %v576 = vadd.f32 0.0, %v575
        %v577 = vpop.f32.mrf.mxu0
        %578 = vmatprep.mubr.f32.mxu0 0.0
        %579 = vmatmul.mubr.f32.gmra.mxu0 %v487
        %v580 = vpop.f32.mrf.mxu0
        %v581 = vadd.f32 0.0, %v580
        %v582 = vpop.f32.mrf.mxu0
        %583 = vmatprep.mubr.f32.mxu0 0.0
        %584 = vmatmul.mubr.f32.gmra.mxu0 %v490
        %v585 = vpop.f32.mrf.mxu0
        %v586 = vadd.f32 0.0, %v585
        %v587 = vpop.f32.mrf.mxu0
        %588 = vmatprep.mubr.f32.mxu0 0.0
        %589 = vmatmul.mubr.f32.gmra.mxu0 %v493
        %v590 = vpop.f32.mrf.mxu0
        %v591 = vadd.f32 0.0, %v590
        %v592 = vpop.f32.mrf.mxu0
        %593 = vmatprep.mubr.f32.mxu0 0.0
        %594 = vmatmul.mubr.f32.gmra.mxu0 %v496
        %v595 = vpop.f32.mrf.mxu0
        %v596 = vadd.f32 0.0, %v595
        %v597 = vpop.f32.mrf.mxu0
        %598 = vmatprep.mubr.f32.mxu0 0.0
        %599 = vmatmul.mubr.f32.gmra.mxu0 %v499
        %v600 = vpop.f32.mrf.mxu0
        %v601 = vadd.f32 0.0, %v600
        %v602 = vpop.f32.mrf.mxu0
        %603 = vmatprep.mubr.f32.mxu0 0.0
        %604 = vmatmul.mubr.f32.gmra.mxu0 %v502
        %v605 = vpop.f32.mrf.mxu0
        %v606 = vadd.f32 0.0, %v605
        %v607 = vpop.f32.mrf.mxu0
        %608 = vdwg.mxu0
        %v609 = vlaneseq
        %vm610 = vcmp.ge.s32.totalorder %v609, 0
        %vm611 = vcmp.lt.s32.totalorder %v609, 512
        %vm612 = vmand %vm610, %vm611
        %613 = vst.msk [vmem:[#allocation2] sm:$0xf] %vm612, 0.0
        %614 = vst.msk [vmem:[#allocation3] sm:$0xf] %vm612, 0.0
        %623 = vrot.lane.b32.xlu0 %v571, 127
        %v624 = vpop.permute.xlu0 %623
        %625 = vrot.lane.b32.xlu0 %v576, 127
        %v626 = vpop.permute.xlu0 %625
        %627 = vrot.lane.b32.xlu0 %v581, 127
        %v628 = vpop.permute.xlu0 %627
        %629 = vrot.lane.b32.xlu0 %v586, 127
        %v630 = vpop.permute.xlu0 %629
        %631 = vrot.lane.b32.xlu0 %v591, 127
        %v632 = vpop.permute.xlu0 %631
        %633 = vrot.lane.b32.xlu0 %v596, 127
        %v634 = vpop.permute.xlu0 %633
        %635 = vrot.lane.b32.xlu0 %v601, 127
        %v636 = vpop.permute.xlu0 %635
        %637 = vrot.lane.b32.xlu0 %v606, 127
        %v638 = vpop.permute.xlu0 %637
        %v647 = vadd.f32 %v571, %v624
        %v648 = vadd.f32 %v576, %v626
        %v649 = vadd.f32 %v581, %v628
        %v650 = vadd.f32 %v586, %v630
        %v651 = vadd.f32 %v591, %v632
        %v652 = vadd.f32 %v596, %v634
        %v653 = vadd.f32 %v601, %v636
        %v654 = vadd.f32 %v606, %v638
        %v655 = vxor.u32 %v647, 2147483648
        %v656 = vxor.u32 %v648, 2147483648
        %v657 = vxor.u32 %v649, 2147483648
        %v658 = vxor.u32 %v650, 2147483648
        %v659 = vxor.u32 %v651, 2147483648
        %v660 = vxor.u32 %v652, 2147483648
        %v661 = vxor.u32 %v653, 2147483648
        %v662 = vxor.u32 %v654, 2147483648
        %v663 = vmul.f32 %v655, 1.442695
        %v664 = vpow.pop %v663
        %v665 = vmul.f32 %v656, 1.442695
        %v666 = vpow.pop %v665
        %v667 = vmul.f32 %v657, 1.442695
        %v668 = vpow.pop %v667
        %v669 = vmul.f32 %v658, 1.442695
        %v670 = vpow.pop %v669
        %v671 = vmul.f32 %v659, 1.442695
        %v672 = vpow.pop %v671
        %v673 = vmul.f32 %v660, 1.442695
        %v674 = vpow.pop %v673
        %v675 = vmul.f32 %v661, 1.442695
        %v676 = vpow.pop %v675
        %v677 = vmul.f32 %v662, 1.442695
        %v678 = vpow.pop %v677
        %v679 = vadd.f32 %v664, 1.0
        %v680 = vadd.f32 %v666, 1.0
        %v681 = vadd.f32 %v668, 1.0
        %v682 = vadd.f32 %v670, 1.0
        %v683 = vadd.f32 %v672, 1.0
        %v684 = vadd.f32 %v674, 1.0
        %v685 = vadd.f32 %v676, 1.0
        %v686 = vadd.f32 %v678, 1.0
        %v687 = vrcp.pop %v679
        %v688 = vmul.f32 1.0, %v687
        %v689 = vrcp.pop %v680
        %v690 = vmul.f32 1.0, %v689
        %v691 = vrcp.pop %v681
        %v692 = vmul.f32 1.0, %v691
        %v693 = vrcp.pop %v682
        %v694 = vmul.f32 1.0, %v693
        %v695 = vrcp.pop %v683
        %v696 = vmul.f32 1.0, %v695
        %v697 = vrcp.pop %v684
        %v698 = vmul.f32 1.0, %v697
        %v699 = vrcp.pop %v685
        %v700 = vmul.f32 1.0, %v699
        %v701 = vrcp.pop %v686
        %v702 = vmul.f32 1.0, %v701
        %v703 = vld [vmem:[%s237] sm:$0xff]
        %v704 = vld [vmem:[%s237 + $0x8] sm:$0xff]
        %v705 = vld [vmem:[%s237 + $0x10] sm:$0xff]
        %v706 = vld [vmem:[%s237 + $0x18] sm:$0xff]
        %v707 = vld [vmem:[%s237 + $0x20] sm:$0xff]
        %v708 = vld [vmem:[%s237 + $0x28] sm:$0xff]
        %v709 = vld [vmem:[%s237 + $0x30] sm:$0xff]
        %v710 = vld [vmem:[%s237 + $0x38] sm:$0xff]
        %v711 = vld [vmem:[%s237 + $0x40] sm:$0xff]
        %v712 = vld [vmem:[%s237 + $0x48] sm:$0xff]
        %v713 = vld [vmem:[%s237 + $0x50] sm:$0xff]
        %v714 = vld [vmem:[%s237 + $0x58] sm:$0xff]
        %v715 = vld [vmem:[%s237 + $0x60] sm:$0xff]
        %v716 = vld [vmem:[%s237 + $0x68] sm:$0xff]
        %v717 = vld [vmem:[%s237 + $0x70] sm:$0xff]
        %v718 = vld [vmem:[%s237 + $0x78] sm:$0xff]
        %720 = vset.pattern.permute.xlu0 0
        %721 = vperm.xlu0 %720, %v688
        %v722 = vpop.permute.xlu0 %721
        %725 = vset.pattern.permute.xlu0 0
        %726 = vperm.xlu0 %725, %v690
        %v727 = vpop.permute.xlu0 %726
        %730 = vset.pattern.permute.xlu0 0
        %731 = vperm.xlu0 %730, %v692
        %v732 = vpop.permute.xlu0 %731
        %735 = vset.pattern.permute.xlu0 0
        %736 = vperm.xlu0 %735, %v694
        %v737 = vpop.permute.xlu0 %736
        %740 = vset.pattern.permute.xlu0 0
        %741 = vperm.xlu0 %740, %v696
        %v742 = vpop.permute.xlu0 %741
        %745 = vset.pattern.permute.xlu0 0
        %746 = vperm.xlu0 %745, %v698
        %v747 = vpop.permute.xlu0 %746
        %750 = vset.pattern.permute.xlu0 0
        %751 = vperm.xlu0 %750, %v700
        %v752 = vpop.permute.xlu0 %751
        %755 = vset.pattern.permute.xlu0 0
        %756 = vperm.xlu0 %755, %v702
        %v757 = vpop.permute.xlu0 %756
        %v759 = vmul.f32 %v703, %v722
        %v760 = vmul.f32 %v704, %v722
        %v761 = vmul.f32 %v705, %v727
        %v762 = vmul.f32 %v706, %v727
        %v763 = vmul.f32 %v707, %v732
        %v764 = vmul.f32 %v708, %v732
        %v765 = vmul.f32 %v709, %v737
        %v766 = vmul.f32 %v710, %v737
        %v767 = vmul.f32 %v711, %v742
        %v768 = vmul.f32 %v712, %v742
        %v769 = vmul.f32 %v713, %v747
        %v770 = vmul.f32 %v714, %v747
        %v771 = vmul.f32 %v715, %v752
        %v772 = vmul.f32 %v716, %v752
        %v773 = vmul.f32 %v717, %v757
        %v774 = vmul.f32 %v718, %v757
        %v775 = vadd.f32 %v759, %v761
        %v776 = vadd.f32 %v775, %v763
        %v777 = vadd.f32 %v776, %v765
        %v778 = vadd.f32 %v777, %v767
        %v779 = vadd.f32 %v778, %v769
        %v780 = vadd.f32 %v779, %v771
        %v781 = vadd.f32 %v780, %v773
        %v782 = vrot.slane %v781, 4
        %v783 = vadd.f32 %v781, %v782
        %v784 = vrot.slane %v783, 2
        %v785 = vadd.f32 %v783, %v784
        %v786 = vrot.slane %v785, 1
        %v787 = vadd.f32 %v785, %v786
        %v788 = vadd.f32 %v760, %v762
        %v789 = vadd.f32 %v788, %v764
        %v790 = vadd.f32 %v789, %v766
        %v791 = vadd.f32 %v790, %v768
        %v792 = vadd.f32 %v791, %v770
        %v793 = vadd.f32 %v792, %v772
        %v794 = vadd.f32 %v793, %v774
        %v795 = vrot.slane %v794, 4
        %v796 = vadd.f32 %v794, %v795
        %v797 = vrot.slane %v796, 2
        %v798 = vadd.f32 %v796, %v797
        %v799 = vrot.slane %v798, 1
        %v800 = vadd.f32 %v798, %v799
        %v801 = vrcp.pop 64.0
        %v802 = vmul.f32 %v787, %v801
        %v803 = vmul.f32 %v800, %v801
        %v806 = vcombine.low %v802, %v803
        %v808 = vunpack.c.l.s4 1966171168
        %v809 = vunpack.c.0.s8 %v808
        %v810 = vlaneseq
        %v811 = vshrl.u32 %v810, 7
        %v812 = vsub.s32 %v809, %v811
        %v813 = vrot.slane %v806, %v812
        %v815 = vunpack.c.l.s4 1966171168
        %v816 = vunpack.c.0.s8 %v815
        %v817 = vlaneseq
        %v818 = vshrl.u32 %v817, 7
        %v819 = vsub.s32 %v816, %v818
        %v820 = vrot.slane %v813, %v819
        %vm822 = vcmp.lt.s32.totalorder %v609, 256
        %vm823 = vmand %vm610, %vm822
        %824 = vst.msk [vmem:[#allocation2 + $0x1] sm:$0x3] %vm823, %v820
        %v825 = vmax.f32 %v759, %v763
        %v826 = vmax.f32 %v761, %v765
        %v827 = vmax.f32 %v825, %v767
        %v828 = vmax.f32 %v826, %v769
        %v829 = vmax.f32 %v827, %v771
        %v830 = vmax.f32 %v828, %v773
        %v831 = vmax.f32 %v829, %v830
        %v832 = vrot.slane %v831, 4
        %v833 = vmax.f32 %v831, %v832
        %v834 = vrot.slane %v833, 2
        %v835 = vmax.f32 %v833, %v834
        %v836 = vrot.slane %v835, 1
        %v837 = vmax.f32 %v835, %v836
        %v838 = vmax.f32 %v760, %v764
        %v839 = vmax.f32 %v762, %v766
        %v840 = vmax.f32 %v838, %v768
        %v841 = vmax.f32 %v839, %v770
        %v842 = vmax.f32 %v840, %v772
        %v843 = vmax.f32 %v841, %v774
        %v844 = vmax.f32 %v842, %v843
        %v845 = vrot.slane %v844, 4
        %v846 = vmax.f32 %v844, %v845
        %v847 = vrot.slane %v846, 2
        %v848 = vmax.f32 %v846, %v847
        %v849 = vrot.slane %v848, 1
        %v850 = vmax.f32 %v848, %v849
        %v853 = vcombine.low %v837, %v850
        %v855 = vunpack.c.l.s4 1966171168
        %v856 = vunpack.c.0.s8 %v855
        %v857 = vlaneseq
        %v858 = vshrl.u32 %v857, 7
        %v859 = vsub.s32 %v856, %v858
        %v860 = vrot.slane %v853, %v859
        %v862 = vunpack.c.l.s4 1966171168
        %v863 = vunpack.c.0.s8 %v862
        %v864 = vlaneseq
        %v865 = vshrl.u32 %v864, 7
        %v866 = vsub.s32 %v863, %v865
        %v867 = vrot.slane %v860, %v866
        %869 = vst.msk [vmem:[#allocation3 + $0x1] sm:$0x3] %vm823, %v867
        %v870 = vld [vmem:[#allocation2] sm:$0x7]
        %v871 = vld [vmem:[#allocation7] ss:$8 sm:$0x3]
        %873 = vrot.lane.b32.xlu0 %v871, 77
        %v874 = vpop.permute.xlu0 %873
        %v875 = vrot.slane %v874, 7
        %vm876 = vcmask 629760
        %v877 = vsel %vm876, %v875, %v874
        %v879 = vmul.f32 %v870, %v877
        %v880 = vld [vmem:[#allocation3] sm:$0x7]
        %v881 = vld [vmem:[#allocation9] ss:$8 sm:$0x3]
        %883 = vrot.lane.b32.xlu0 %v881, 77
        %v884 = vpop.permute.xlu0 %883
        %v885 = vrot.slane %v884, 7
        %v886 = vsel %vm876, %v885, %v884
        %v888 = vmul.f32 %v880, %v886
        %v889 = vadd.f32 %v879, %v888
        %v890 = vadd.f32 %v889, 0.0
        %s891 = scalar_lea.vmem [#allocation7], 1
        %v892 = vld [vmem:[%s891] ss:$8 sm:$0x3]
        %894 = vrot.lane.b32.xlu0 %v892, 78
        %v895 = vpop.permute.xlu0 %894
        %v896 = vrot.slane %v895, 7
        %vm897 = vcmask 637952
        %v898 = vsel %vm897, %v896, %v895
        %v900 = vmul.f32 %v870, %v898
        %s901 = scalar_lea.vmem [#allocation9], 1
        %v902 = vld [vmem:[%s901] ss:$8 sm:$0x3]
        %904 = vrot.lane.b32.xlu0 %v902, 78
        %v905 = vpop.permute.xlu0 %904
        %v906 = vrot.slane %v905, 7
        %v907 = vsel %vm897, %v906, %v905
        %v909 = vmul.f32 %v880, %v907
        %v910 = vadd.f32 %v900, %v909
        %912 = vrot.lane.b32.xlu0 %v910, 127
        %v913 = vpop.permute.xlu0 %912
        %v914 = vrot.slane %v913, 1
        %vm915 = vcmask 1039360
        %v916 = vsel %vm915, %v913, %v914
        %v918 = vadd.f32 %v890, %v916
        %s919 = scalar_lea.vmem [#allocation7], 2
        %v920 = vld [vmem:[%s919] ss:$8 sm:$0x3]
        %922 = vrot.lane.b32.xlu0 %v920, 79
        %v923 = vpop.permute.xlu0 %922
        %v924 = vrot.slane %v923, 7
        %vm925 = vcmask 646144
        %v926 = vsel %vm925, %v924, %v923
        %v928 = vmul.f32 %v870, %v926
        %s929 = scalar_lea.vmem [#allocation9], 2
        %v930 = vld [vmem:[%s929] ss:$8 sm:$0x3]
        %932 = vrot.lane.b32.xlu0 %v930, 79
        %v933 = vpop.permute.xlu0 %932
        %v934 = vrot.slane %v933, 7
        %v935 = vsel %vm925, %v934, %v933
        %v937 = vmul.f32 %v880, %v935
        %v938 = vadd.f32 %v928, %v937
        %940 = vrot.lane.b32.xlu0 %v938, 126
        %v941 = vpop.permute.xlu0 %940
        %v942 = vrot.slane %v941, 1
        %vm943 = vcmask 1031168
        %v944 = vsel %vm943, %v941, %v942
        %v946 = vadd.f32 %v918, %v944
        %s947 = scalar_lea.vmem [#allocation7], 3
        %v948 = vld [vmem:[%s947] ss:$8 sm:$0x3]
        %950 = vrot.lane.b32.xlu0 %v948, 80
        %v951 = vpop.permute.xlu0 %950
        %v952 = vrot.slane %v951, 7
        %vm953 = vcmask 654336
        %v954 = vsel %vm953, %v952, %v951
        %v956 = vmul.f32 %v870, %v954
        %s957 = scalar_lea.vmem [#allocation9], 3
        %v958 = vld [vmem:[%s957] ss:$8 sm:$0x3]
        %960 = vrot.lane.b32.xlu0 %v958, 80
        %v961 = vpop.permute.xlu0 %960
        %v962 = vrot.slane %v961, 7
        %v963 = vsel %vm953, %v962, %v961
        %v965 = vmul.f32 %v880, %v963
        %v966 = vadd.f32 %v956, %v965
        %968 = vrot.lane.b32.xlu0 %v966, 125
        %v969 = vpop.permute.xlu0 %968
        %v970 = vrot.slane %v969, 1
        %vm971 = vcmask 1022976
        %v972 = vsel %vm971, %v969, %v970
        %v974 = vadd.f32 %v946, %v972
        %s975 = scalar_lea.vmem [#allocation7], 4
        %v976 = vld [vmem:[%s975] ss:$8 sm:$0x3]
        %978 = vrot.lane.b32.xlu0 %v976, 81
        %v979 = vpop.permute.xlu0 %978
        %v980 = vrot.slane %v979, 7
        %vm981 = vcmask 662528
        %v982 = vsel %vm981, %v980, %v979
        %v984 = vmul.f32 %v870, %v982
        %s985 = scalar_lea.vmem [#allocation9], 4
        %v986 = vld [vmem:[%s985] ss:$8 sm:$0x3]
        %988 = vrot.lane.b32.xlu0 %v986, 81
        %v989 = vpop.permute.xlu0 %988
        %v990 = vrot.slane %v989, 7
        %v991 = vsel %vm981, %v990, %v989
        %v993 = vmul.f32 %v880, %v991
        %v994 = vadd.f32 %v984, %v993
        %996 = vrot.lane.b32.xlu0 %v994, 124
        %v997 = vpop.permute.xlu0 %996
        %v998 = vrot.slane %v997, 1
        %vm999 = vcmask 1014784
        %v1000 = vsel %vm999, %v997, %v998
        %v1002 = vadd.f32 %v974, %v1000
        %s1003 = scalar_lea.vmem [#allocation7], 5
        %v1004 = vld [vmem:[%s1003] ss:$8 sm:$0x3]
        %1006 = vrot.lane.b32.xlu0 %v1004, 82
        %v1007 = vpop.permute.xlu0 %1006
        %v1008 = vrot.slane %v1007, 7
        %vm1009 = vcmask 670720
        %v1010 = vsel %vm1009, %v1008, %v1007
        %v1012 = vmul.f32 %v870, %v1010
        %s1013 = scalar_lea.vmem [#allocation9], 5
        %v1014 = vld [vmem:[%s1013] ss:$8 sm:$0x3]
        %1016 = vrot.lane.b32.xlu0 %v1014, 82
        %v1017 = vpop.permute.xlu0 %1016
        %v1018 = vrot.slane %v1017, 7
        %v1019 = vsel %vm1009, %v1018, %v1017
        %v1021 = vmul.f32 %v880, %v1019
        %v1022 = vadd.f32 %v1012, %v1021
        %1024 = vrot.lane.b32.xlu0 %v1022, 123
        %v1025 = vpop.permute.xlu0 %1024
        %v1026 = vrot.slane %v1025, 1
        %vm1027 = vcmask 1006592
        %v1028 = vsel %vm1027, %v1025, %v1026
        %v1030 = vadd.f32 %v1002, %v1028
        %s1031 = scalar_lea.vmem [#allocation7], 6
        %v1032 = vld [vmem:[%s1031] ss:$8 sm:$0x3]
        %1034 = vrot.lane.b32.xlu0 %v1032, 83
        %v1035 = vpop.permute.xlu0 %1034
        %v1036 = vrot.slane %v1035, 7
        %vm1037 = vcmask 678912
        %v1038 = vsel %vm1037, %v1036, %v1035
        %v1040 = vmul.f32 %v870, %v1038
        %s1041 = scalar_lea.vmem [#allocation9], 6
        %v1042 = vld [vmem:[%s1041] ss:$8 sm:$0x3]
        %1044 = vrot.lane.b32.xlu0 %v1042, 83
        %v1045 = vpop.permute.xlu0 %1044
        %v1046 = vrot.slane %v1045, 7
        %v1047 = vsel %vm1037, %v1046, %v1045
        %v1049 = vmul.f32 %v880, %v1047
        %v1050 = vadd.f32 %v1040, %v1049
        %1052 = vrot.lane.b32.xlu0 %v1050, 122
        %v1053 = vpop.permute.xlu0 %1052
        %v1054 = vrot.slane %v1053, 1
        %vm1055 = vcmask 998400
        %v1056 = vsel %vm1055, %v1053, %v1054
        %v1058 = vadd.f32 %v1030, %v1056
        %s1059 = scalar_lea.vmem [#allocation7], 7
        %v1060 = vld [vmem:[%s1059] ss:$8 sm:$0x3]
        %1062 = vrot.lane.b32.xlu0 %v1060, 93
        %v1063 = vpop.permute.xlu0 %1062
        %v1064 = vrot.slane %v1063, 7
        %vm1065 = vcmask 760832
        %v1066 = vsel %vm1065, %v1064, %v1063
        %v1068 = vmul.f32 %v870, %v1066
        %s1069 = scalar_lea.vmem [#allocation9], 7
        %v1070 = vld [vmem:[%s1069] ss:$8 sm:$0x3]
        %1072 = vrot.lane.b32.xlu0 %v1070, 93
        %v1073 = vpop.permute.xlu0 %1072
        %v1074 = vrot.slane %v1073, 7
        %v1075 = vsel %vm1065, %v1074, %v1073
        %v1077 = vmul.f32 %v880, %v1075
        %v1078 = vadd.f32 %v1068, %v1077
        %1080 = vrot.lane.b32.xlu0 %v1078, 112
        %v1081 = vpop.permute.xlu0 %1080
        %v1082 = vrot.slane %v1081, 1
        %vm1083 = vcmask 916480
        %v1084 = vsel %vm1083, %v1081, %v1082
        %v1086 = vadd.f32 %v1058, %v1084
        %s1087 = scalar_lea.vmem [#allocation7], 16
        %v1088 = vld [vmem:[%s1087] ss:$8 sm:$0x3]
        %1090 = vrot.lane.b32.xlu0 %v1088, 94
        %v1091 = vpop.permute.xlu0 %1090
        %v1092 = vrot.slane %v1091, 7
        %vm1093 = vcmask 769024
        %v1094 = vsel %vm1093, %v1092, %v1091
        %v1096 = vmul.f32 %v870, %v1094
        %s1097 = scalar_lea.vmem [#allocation9], 16
        %v1098 = vld [vmem:[%s1097] ss:$8 sm:$0x3]
        %1100 = vrot.lane.b32.xlu0 %v1098, 94
        %v1101 = vpop.permute.xlu0 %1100
        %v1102 = vrot.slane %v1101, 7
        %v1103 = vsel %vm1093, %v1102, %v1101
        %v1105 = vmul.f32 %v880, %v1103
        %v1106 = vadd.f32 %v1096, %v1105
        %1108 = vrot.lane.b32.xlu0 %v1106, 111
        %v1109 = vpop.permute.xlu0 %1108
        %v1110 = vrot.slane %v1109, 1
        %vm1111 = vcmask 908288
        %v1112 = vsel %vm1111, %v1109, %v1110
        %v1114 = vadd.f32 %v1086, %v1112
        %s1115 = scalar_lea.vmem [#allocation7], 17
        %v1116 = vld [vmem:[%s1115] ss:$8 sm:$0x3]
        %1118 = vrot.lane.b32.xlu0 %v1116, 95
        %v1119 = vpop.permute.xlu0 %1118
        %v1120 = vrot.slane %v1119, 7
        %vm1121 = vcmask 777216
        %v1122 = vsel %vm1121, %v1120, %v1119
        %v1124 = vmul.f32 %v870, %v1122
        %s1125 = scalar_lea.vmem [#allocation9], 17
        %v1126 = vld [vmem:[%s1125] ss:$8 sm:$0x3]
        %1128 = vrot.lane.b32.xlu0 %v1126, 95
        %v1129 = vpop.permute.xlu0 %1128
        %v1130 = vrot.slane %v1129, 7
        %v1131 = vsel %vm1121, %v1130, %v1129
        %v1133 = vmul.f32 %v880, %v1131
        %v1134 = vadd.f32 %v1124, %v1133
        %1136 = vrot.lane.b32.xlu0 %v1134, 110
        %v1137 = vpop.permute.xlu0 %1136
        %v1138 = vrot.slane %v1137, 1
        %vm1139 = vcmask 900096
        %v1140 = vsel %vm1139, %v1137, %v1138
        %v1142 = vadd.f32 %v1114, %v1140
        %s1143 = scalar_lea.vmem [#allocation7], 18
        %v1144 = vld [vmem:[%s1143] ss:$8 sm:$0x3]
        %1146 = vrot.lane.b32.xlu0 %v1144, 96
        %v1147 = vpop.permute.xlu0 %1146
        %v1148 = vrot.slane %v1147, 7
        %vm1149 = vcmask 785408
        %v1150 = vsel %vm1149, %v1148, %v1147
        %v1152 = vmul.f32 %v870, %v1150
        %s1153 = scalar_lea.vmem [#allocation9], 18
        %v1154 = vld [vmem:[%s1153] ss:$8 sm:$0x3]
        %1156 = vrot.lane.b32.xlu0 %v1154, 96
        %v1157 = vpop.permute.xlu0 %1156
        %v1158 = vrot.slane %v1157, 7
        %v1159 = vsel %vm1149, %v1158, %v1157
        %v1161 = vmul.f32 %v880, %v1159
        %v1162 = vadd.f32 %v1152, %v1161
        %1164 = vrot.lane.b32.xlu0 %v1162, 109
        %v1165 = vpop.permute.xlu0 %1164
        %v1166 = vrot.slane %v1165, 1
        %vm1167 = vcmask 891904
        %v1168 = vsel %vm1167, %v1165, %v1166
        %v1170 = vadd.f32 %v1142, %v1168
        %s1171 = scalar_lea.vmem [#allocation7], 19
        %v1172 = vld [vmem:[%s1171] ss:$8 sm:$0x3]
        %1174 = vrot.lane.b32.xlu0 %v1172, 97
        %v1175 = vpop.permute.xlu0 %1174
        %v1176 = vrot.slane %v1175, 7
        %vm1177 = vcmask 793600
        %v1178 = vsel %vm1177, %v1176, %v1175
        %v1180 = vmul.f32 %v870, %v1178
        %s1181 = scalar_lea.vmem [#allocation9], 19
        %v1182 = vld [vmem:[%s1181] ss:$8 sm:$0x3]
        %1184 = vrot.lane.b32.xlu0 %v1182, 97
        %v1185 = vpop.permute.xlu0 %1184
        %v1186 = vrot.slane %v1185, 7
        %v1187 = vsel %vm1177, %v1186, %v1185
        %v1189 = vmul.f32 %v880, %v1187
        %v1190 = vadd.f32 %v1180, %v1189
        %1192 = vrot.lane.b32.xlu0 %v1190, 108
        %v1193 = vpop.permute.xlu0 %1192
        %v1194 = vrot.slane %v1193, 1
        %vm1195 = vcmask 883712
        %v1196 = vsel %vm1195, %v1193, %v1194
        %v1198 = vadd.f32 %v1170, %v1196
        %s1199 = scalar_lea.vmem [#allocation7], 20
        %v1200 = vld [vmem:[%s1199] ss:$8 sm:$0x3]
        %1202 = vrot.lane.b32.xlu0 %v1200, 98
        %v1203 = vpop.permute.xlu0 %1202
        %v1204 = vrot.slane %v1203, 7
        %vm1205 = vcmask 801792
        %v1206 = vsel %vm1205, %v1204, %v1203
        %v1208 = vmul.f32 %v870, %v1206
        %s1209 = scalar_lea.vmem [#allocation9], 20
        %v1210 = vld [vmem:[%s1209] ss:$8 sm:$0x3]
        %1212 = vrot.lane.b32.xlu0 %v1210, 98
        %v1213 = vpop.permute.xlu0 %1212
        %v1214 = vrot.slane %v1213, 7
        %v1215 = vsel %vm1205, %v1214, %v1213
        %v1217 = vmul.f32 %v880, %v1215
        %v1218 = vadd.f32 %v1208, %v1217
        %1220 = vrot.lane.b32.xlu0 %v1218, 107
        %v1221 = vpop.permute.xlu0 %1220
        %v1222 = vrot.slane %v1221, 1
        %vm1223 = vcmask 875520
        %v1224 = vsel %vm1223, %v1221, %v1222
        %v1226 = vadd.f32 %v1198, %v1224
        %s1227 = scalar_lea.vmem [#allocation7], 21
        %v1228 = vld [vmem:[%s1227] ss:$8 sm:$0x3]
        %1230 = vrot.lane.b32.xlu0 %v1228, 99
        %v1231 = vpop.permute.xlu0 %1230
        %v1232 = vrot.slane %v1231, 7
        %vm1233 = vcmask 809984
        %v1234 = vsel %vm1233, %v1232, %v1231
        %v1236 = vmul.f32 %v870, %v1234
        %s1237 = scalar_lea.vmem [#allocation9], 21
        %v1238 = vld [vmem:[%s1237] ss:$8 sm:$0x3]
        %1240 = vrot.lane.b32.xlu0 %v1238, 99
        %v1241 = vpop.permute.xlu0 %1240
        %v1242 = vrot.slane %v1241, 7
        %v1243 = vsel %vm1233, %v1242, %v1241
        %v1245 = vmul.f32 %v880, %v1243
        %v1246 = vadd.f32 %v1236, %v1245
        %1248 = vrot.lane.b32.xlu0 %v1246, 106
        %v1249 = vpop.permute.xlu0 %1248
        %v1250 = vrot.slane %v1249, 1
        %vm1251 = vcmask 867328
        %v1252 = vsel %vm1251, %v1249, %v1250
        %v1254 = vadd.f32 %v1226, %v1252
        %s1255 = scalar_lea.vmem [#allocation7], 22
        %v1256 = vld [vmem:[%s1255] ss:$8 sm:$0x3]
        %1258 = vrot.lane.b32.xlu0 %v1256, 109
        %v1259 = vpop.permute.xlu0 %1258
        %v1260 = vrot.slane %v1259, 7
        %v1261 = vsel %vm1167, %v1260, %v1259
        %v1263 = vmul.f32 %v870, %v1261
        %s1264 = scalar_lea.vmem [#allocation9], 22
        %v1265 = vld [vmem:[%s1264] ss:$8 sm:$0x3]
        %1267 = vrot.lane.b32.xlu0 %v1265, 109
        %v1268 = vpop.permute.xlu0 %1267
        %v1269 = vrot.slane %v1268, 7
        %v1270 = vsel %vm1167, %v1269, %v1268
        %v1272 = vmul.f32 %v880, %v1270
        %v1273 = vadd.f32 %v1263, %v1272
        %1275 = vrot.lane.b32.xlu0 %v1273, 96
        %v1276 = vpop.permute.xlu0 %1275
        %v1277 = vrot.slane %v1276, 1
        %v1278 = vsel %vm1149, %v1276, %v1277
        %v1280 = vadd.f32 %v1254, %v1278
        %s1281 = scalar_lea.vmem [#allocation7], 23
        %v1282 = vld [vmem:[%s1281] ss:$8 sm:$0x3]
        %1284 = vrot.lane.b32.xlu0 %v1282, 110
        %v1285 = vpop.permute.xlu0 %1284
        %v1286 = vrot.slane %v1285, 7
        %v1287 = vsel %vm1139, %v1286, %v1285
        %v1289 = vmul.f32 %v870, %v1287
        %s1290 = scalar_lea.vmem [#allocation9], 23
        %v1291 = vld [vmem:[%s1290] ss:$8 sm:$0x3]
        %1293 = vrot.lane.b32.xlu0 %v1291, 110
        %v1294 = vpop.permute.xlu0 %1293
        %v1295 = vrot.slane %v1294, 7
        %v1296 = vsel %vm1139, %v1295, %v1294
        %v1298 = vmul.f32 %v880, %v1296
        %v1299 = vadd.f32 %v1289, %v1298
        %1301 = vrot.lane.b32.xlu0 %v1299, 95
        %v1302 = vpop.permute.xlu0 %1301
        %v1303 = vrot.slane %v1302, 1
        %v1304 = vsel %vm1121, %v1302, %v1303
        %v1306 = vadd.f32 %v1280, %v1304
        %s1307 = scalar_lea.vmem [#allocation7], 32
        %v1308 = vld [vmem:[%s1307] ss:$8 sm:$0x3]
        %1310 = vrot.lane.b32.xlu0 %v1308, 111
        %v1311 = vpop.permute.xlu0 %1310
        %v1312 = vrot.slane %v1311, 7
        %v1313 = vsel %vm1111, %v1312, %v1311
        %v1315 = vmul.f32 %v870, %v1313
        %s1316 = scalar_lea.vmem [#allocation9], 32
        %v1317 = vld [vmem:[%s1316] ss:$8 sm:$0x3]
        %1319 = vrot.lane.b32.xlu0 %v1317, 111
        %v1320 = vpop.permute.xlu0 %1319
        %v1321 = vrot.slane %v1320, 7
        %v1322 = vsel %vm1111, %v1321, %v1320
        %v1324 = vmul.f32 %v880, %v1322
        %v1325 = vadd.f32 %v1315, %v1324
        %1327 = vrot.lane.b32.xlu0 %v1325, 94
        %v1328 = vpop.permute.xlu0 %1327
        %v1329 = vrot.slane %v1328, 1
        %v1330 = vsel %vm1093, %v1328, %v1329
        %v1332 = vadd.f32 %v1306, %v1330
        %s1333 = scalar_lea.vmem [#allocation7], 33
        %v1334 = vld [vmem:[%s1333] ss:$8 sm:$0x3]
        %1336 = vrot.lane.b32.xlu0 %v1334, 112
        %v1337 = vpop.permute.xlu0 %1336
        %v1338 = vrot.slane %v1337, 7
        %v1339 = vsel %vm1083, %v1338, %v1337
        %v1341 = vmul.f32 %v870, %v1339
        %s1342 = scalar_lea.vmem [#allocation9], 33
        %v1343 = vld [vmem:[%s1342] ss:$8 sm:$0x3]
        %1345 = vrot.lane.b32.xlu0 %v1343, 112
        %v1346 = vpop.permute.xlu0 %1345
        %v1347 = vrot.slane %v1346, 7
        %v1348 = vsel %vm1083, %v1347, %v1346
        %v1350 = vmul.f32 %v880, %v1348
        %v1351 = vadd.f32 %v1341, %v1350
        %1353 = vrot.lane.b32.xlu0 %v1351, 93
        %v1354 = vpop.permute.xlu0 %1353
        %v1355 = vrot.slane %v1354, 1
        %v1356 = vsel %vm1065, %v1354, %v1355
        %v1358 = vadd.f32 %v1332, %v1356
        %s1359 = scalar_lea.vmem [#allocation7], 34
        %v1360 = vld [vmem:[%s1359] ss:$8 sm:$0x3]
        %1362 = vrot.lane.b32.xlu0 %v1360, 113
        %v1363 = vpop.permute.xlu0 %1362
        %v1364 = vrot.slane %v1363, 7
        %vm1365 = vcmask 924672
        %v1366 = vsel %vm1365, %v1364, %v1363
        %v1368 = vmul.f32 %v870, %v1366
        %s1369 = scalar_lea.vmem [#allocation9], 34
        %v1370 = vld [vmem:[%s1369] ss:$8 sm:$0x3]
        %1372 = vrot.lane.b32.xlu0 %v1370, 113
        %v1373 = vpop.permute.xlu0 %1372
        %v1374 = vrot.slane %v1373, 7
        %v1375 = vsel %vm1365, %v1374, %v1373
        %v1377 = vmul.f32 %v880, %v1375
        %v1378 = vadd.f32 %v1368, %v1377
        %1380 = vrot.lane.b32.xlu0 %v1378, 92
        %v1381 = vpop.permute.xlu0 %1380
        %v1382 = vrot.slane %v1381, 1
        %vm1383 = vcmask 752640
        %v1384 = vsel %vm1383, %v1381, %v1382
        %v1386 = vadd.f32 %v1358, %v1384
        %s1387 = scalar_lea.vmem [#allocation7], 35
        %v1388 = vld [vmem:[%s1387] ss:$8 sm:$0x3]
        %1390 = vrot.lane.b32.xlu0 %v1388, 114
        %v1391 = vpop.permute.xlu0 %1390
        %v1392 = vrot.slane %v1391, 7
        %vm1393 = vcmask 932864
        %v1394 = vsel %vm1393, %v1392, %v1391
        %v1396 = vmul.f32 %v870, %v1394
        %s1397 = scalar_lea.vmem [#allocation9], 35
        %v1398 = vld [vmem:[%s1397] ss:$8 sm:$0x3]
        %1400 = vrot.lane.b32.xlu0 %v1398, 114
        %v1401 = vpop.permute.xlu0 %1400
        %v1402 = vrot.slane %v1401, 7
        %v1403 = vsel %vm1393, %v1402, %v1401
        %v1405 = vmul.f32 %v880, %v1403
        %v1406 = vadd.f32 %v1396, %v1405
        %1408 = vrot.lane.b32.xlu0 %v1406, 91
        %v1409 = vpop.permute.xlu0 %1408
        %v1410 = vrot.slane %v1409, 1
        %vm1411 = vcmask 744448
        %v1412 = vsel %vm1411, %v1409, %v1410
        %v1414 = vadd.f32 %v1386, %v1412
        %s1415 = scalar_lea.vmem [#allocation7], 36
        %v1416 = vld [vmem:[%s1415] ss:$8 sm:$0x3]
        %1418 = vrot.lane.b32.xlu0 %v1416, 115
        %v1419 = vpop.permute.xlu0 %1418
        %v1420 = vrot.slane %v1419, 7
        %vm1421 = vcmask 941056
        %v1422 = vsel %vm1421, %v1420, %v1419
        %v1424 = vmul.f32 %v870, %v1422
        %s1425 = scalar_lea.vmem [#allocation9], 36
        %v1426 = vld [vmem:[%s1425] ss:$8 sm:$0x3]
        %1428 = vrot.lane.b32.xlu0 %v1426, 115
        %v1429 = vpop.permute.xlu0 %1428
        %v1430 = vrot.slane %v1429, 7
        %v1431 = vsel %vm1421, %v1430, %v1429
        %v1433 = vmul.f32 %v880, %v1431
        %v1434 = vadd.f32 %v1424, %v1433
        %1436 = vrot.lane.b32.xlu0 %v1434, 90
        %v1437 = vpop.permute.xlu0 %1436
        %v1438 = vrot.slane %v1437, 1
        %vm1439 = vcmask 736256
        %v1440 = vsel %vm1439, %v1437, %v1438
        %v1442 = vadd.f32 %v1414, %v1440
        %s1443 = scalar_lea.vmem [#allocation7], 37
        %v1444 = vld [vmem:[%s1443] ss:$8 sm:$0x3]
        %1446 = vrot.lane.b32.xlu0 %v1444, 125
        %v1447 = vpop.permute.xlu0 %1446
        %v1448 = vrot.slane %v1447, 7
        %v1449 = vsel %vm971, %v1448, %v1447
        %v1451 = vmul.f32 %v870, %v1449
        %s1452 = scalar_lea.vmem [#allocation9], 37
        %v1453 = vld [vmem:[%s1452] ss:$8 sm:$0x3]
        %1455 = vrot.lane.b32.xlu0 %v1453, 125
        %v1456 = vpop.permute.xlu0 %1455
        %v1457 = vrot.slane %v1456, 7
        %v1458 = vsel %vm971, %v1457, %v1456
        %v1460 = vmul.f32 %v880, %v1458
        %v1461 = vadd.f32 %v1451, %v1460
        %1463 = vrot.lane.b32.xlu0 %v1461, 80
        %v1464 = vpop.permute.xlu0 %1463
        %v1465 = vrot.slane %v1464, 1
        %v1466 = vsel %vm953, %v1464, %v1465
        %v1468 = vadd.f32 %v1442, %v1466
        %s1469 = scalar_lea.vmem [#allocation7], 38
        %v1470 = vld [vmem:[%s1469] ss:$8 sm:$0x3]
        %1472 = vrot.lane.b32.xlu0 %v1470, 126
        %v1473 = vpop.permute.xlu0 %1472
        %v1474 = vrot.slane %v1473, 7
        %v1475 = vsel %vm943, %v1474, %v1473
        %v1477 = vmul.f32 %v870, %v1475
        %s1478 = scalar_lea.vmem [#allocation9], 38
        %v1479 = vld [vmem:[%s1478] ss:$8 sm:$0x3]
        %1481 = vrot.lane.b32.xlu0 %v1479, 126
        %v1482 = vpop.permute.xlu0 %1481
        %v1483 = vrot.slane %v1482, 7
        %v1484 = vsel %vm943, %v1483, %v1482
        %v1486 = vmul.f32 %v880, %v1484
        %v1487 = vadd.f32 %v1477, %v1486
        %1489 = vrot.lane.b32.xlu0 %v1487, 79
        %v1490 = vpop.permute.xlu0 %1489
        %v1491 = vrot.slane %v1490, 1
        %v1492 = vsel %vm925, %v1490, %v1491
        %v1494 = vadd.f32 %v1468, %v1492
        %s1495 = scalar_lea.vmem [#allocation7], 39
        %v1496 = vld [vmem:[%s1495] ss:$8 sm:$0x3]
        %1498 = vrot.lane.b32.xlu0 %v1496, 127
        %v1499 = vpop.permute.xlu0 %1498
        %v1500 = vrot.slane %v1499, 7
        %v1501 = vsel %vm915, %v1500, %v1499
        %v1503 = vmul.f32 %v870, %v1501
        %s1504 = scalar_lea.vmem [#allocation9], 39
        %v1505 = vld [vmem:[%s1504] ss:$8 sm:$0x3]
        %1507 = vrot.lane.b32.xlu0 %v1505, 127
        %v1508 = vpop.permute.xlu0 %1507
        %v1509 = vrot.slane %v1508, 7
        %v1510 = vsel %vm915, %v1509, %v1508
        %v1512 = vmul.f32 %v880, %v1510
        %v1513 = vadd.f32 %v1503, %v1512
        %1515 = vrot.lane.b32.xlu0 %v1513, 78
        %v1516 = vpop.permute.xlu0 %1515
        %v1517 = vrot.slane %v1516, 1
        %v1518 = vsel %vm897, %v1516, %v1517
        %v1520 = vadd.f32 %v1494, %v1518
        %v1521 = vld [vmem:[#allocation2 + $0x1] sm:$0x3]
        %s1522 = scalar_lea.vmem [#allocation7], 48
        %v1523 = vld [vmem:[%s1522] ss:$8 sm:$0x3]
        %v1524 = vmul.f32 %v1521, %v1523
        %v1525 = vld [vmem:[#allocation3 + $0x1] sm:$0x3]
        %s1526 = scalar_lea.vmem [#allocation9], 48
        %v1527 = vld [vmem:[%s1526] ss:$8 sm:$0x3]
        %v1528 = vmul.f32 %v1525, %v1527
        %v1529 = vadd.f32 %v1524, %v1528
        %1531 = vrot.lane.b32.xlu0 %v1529, 77
        %v1532 = vpop.permute.xlu0 %1531
        %v1533 = vrot.slane %v1532, 7
        %v1534 = vsel %vm876, %v1533, %v1532
        %v1536 = vadd.f32 %v1520, %v1534
        %v1537 = vld [vmem:[#allocation2 + $0x1] sm:$0x7]
        %s1538 = scalar_lea.vmem [#allocation7], 49
        %v1539 = vld [vmem:[%s1538] ss:$8 sm:$0x3]
        %1541 = vrot.lane.b32.xlu0 %v1539, 1
        %v1542 = vpop.permute.xlu0 %1541
        %v1543 = vrot.slane %v1542, 7
        %vm1544 = vcmask 7168
        %v1545 = vsel %vm1544, %v1543, %v1542
        %v1547 = vmul.f32 %v1537, %v1545
        %v1548 = vld [vmem:[#allocation3 + $0x1] sm:$0x7]
        %s1549 = scalar_lea.vmem [#allocation9], 49
        %v1550 = vld [vmem:[%s1549] ss:$8 sm:$0x3]
        %1552 = vrot.lane.b32.xlu0 %v1550, 1
        %v1553 = vpop.permute.xlu0 %1552
        %v1554 = vrot.slane %v1553, 7
        %v1555 = vsel %vm1544, %v1554, %v1553
        %v1557 = vmul.f32 %v1548, %v1555
        %v1558 = vadd.f32 %v1547, %v1557
        %1560 = vrot.lane.b32.xlu0 %v1558, 76
        %v1561 = vpop.permute.xlu0 %1560
        %v1562 = vrot.slane %v1561, 7
        %vm1563 = vcmask 621568
        %v1564 = vsel %vm1563, %v1562, %v1561
        %v1566 = vadd.f32 %v1536, %v1564
        %s1567 = scalar_lea.vmem [#allocation7], 50
        %v1568 = vld [vmem:[%s1567] ss:$8 sm:$0x3]
        %1570 = vrot.lane.b32.xlu0 %v1568, 2
        %v1571 = vpop.permute.xlu0 %1570
        %v1572 = vrot.slane %v1571, 7
        %vm1573 = vcmask 15360
        %v1574 = vsel %vm1573, %v1572, %v1571
        %v1576 = vmul.f32 %v1537, %v1574
        %s1577 = scalar_lea.vmem [#allocation9], 50
        %v1578 = vld [vmem:[%s1577] ss:$8 sm:$0x3]
        %1580 = vrot.lane.b32.xlu0 %v1578, 2
        %v1581 = vpop.permute.xlu0 %1580
        %v1582 = vrot.slane %v1581, 7
        %v1583 = vsel %vm1573, %v1582, %v1581
        %v1585 = vmul.f32 %v1548, %v1583
        %v1586 = vadd.f32 %v1576, %v1585
        %1588 = vrot.lane.b32.xlu0 %v1586, 75
        %v1589 = vpop.permute.xlu0 %1588
        %v1590 = vrot.slane %v1589, 7
        %vm1591 = vcmask 613376
        %v1592 = vsel %vm1591, %v1590, %v1589
        %v1594 = vadd.f32 %v1566, %v1592
        %s1595 = scalar_lea.vmem [#allocation7], 51
        %v1596 = vld [vmem:[%s1595] ss:$8 sm:$0x3]
        %1598 = vrot.lane.b32.xlu0 %v1596, 3
        %v1599 = vpop.permute.xlu0 %1598
        %v1600 = vrot.slane %v1599, 7
        %vm1601 = vcmask 23552
        %v1602 = vsel %vm1601, %v1600, %v1599
        %v1604 = vmul.f32 %v1537, %v1602
        %s1605 = scalar_lea.vmem [#allocation9], 51
        %v1606 = vld [vmem:[%s1605] ss:$8 sm:$0x3]
        %1608 = vrot.lane.b32.xlu0 %v1606, 3
        %v1609 = vpop.permute.xlu0 %1608
        %v1610 = vrot.slane %v1609, 7
        %v1611 = vsel %vm1601, %v1610, %v1609
        %v1613 = vmul.f32 %v1548, %v1611
        %v1614 = vadd.f32 %v1604, %v1613
        %1616 = vrot.lane.b32.xlu0 %v1614, 74
        %v1617 = vpop.permute.xlu0 %1616
        %v1618 = vrot.slane %v1617, 7
        %vm1619 = vcmask 605184
        %v1620 = vsel %vm1619, %v1618, %v1617
        %v1622 = vadd.f32 %v1594, %v1620
        %s1623 = scalar_lea.vmem [#allocation7], 52
        %v1624 = vld [vmem:[%s1623] ss:$8 sm:$0x3]
        %1626 = vrot.lane.b32.xlu0 %v1624, 13
        %v1627 = vpop.permute.xlu0 %1626
        %v1628 = vrot.slane %v1627, 7
        %vm1629 = vcmask 105472
        %v1630 = vsel %vm1629, %v1628, %v1627
        %v1632 = vmul.f32 %v1537, %v1630
        %s1633 = scalar_lea.vmem [#allocation9], 52
        %v1634 = vld [vmem:[%s1633] ss:$8 sm:$0x3]
        %1636 = vrot.lane.b32.xlu0 %v1634, 13
        %v1637 = vpop.permute.xlu0 %1636
        %v1638 = vrot.slane %v1637, 7
        %v1639 = vsel %vm1629, %v1638, %v1637
        %v1641 = vmul.f32 %v1548, %v1639
        %v1642 = vadd.f32 %v1632, %v1641
        %1644 = vrot.lane.b32.xlu0 %v1642, 64
        %v1645 = vpop.permute.xlu0 %1644
        %v1646 = vrot.slane %v1645, 7
        %v1647 = vsel %vm387, %v1646, %v1645
        %v1649 = vadd.f32 %v1622, %v1647
        %s1650 = scalar_lea.vmem [#allocation7], 53
        %v1651 = vld [vmem:[%s1650] ss:$8 sm:$0x3]
        %1653 = vrot.lane.b32.xlu0 %v1651, 14
        %v1654 = vpop.permute.xlu0 %1653
        %v1655 = vrot.slane %v1654, 7
        %vm1656 = vcmask 113664
        %v1657 = vsel %vm1656, %v1655, %v1654
        %v1659 = vmul.f32 %v1537, %v1657
        %s1660 = scalar_lea.vmem [#allocation9], 53
        %v1661 = vld [vmem:[%s1660] ss:$8 sm:$0x3]
        %1663 = vrot.lane.b32.xlu0 %v1661, 14
        %v1664 = vpop.permute.xlu0 %1663
        %v1665 = vrot.slane %v1664, 7
        %v1666 = vsel %vm1656, %v1665, %v1664
        %v1668 = vmul.f32 %v1548, %v1666
        %v1669 = vadd.f32 %v1659, %v1668
        %1671 = vrot.lane.b32.xlu0 %v1669, 63
        %v1672 = vpop.permute.xlu0 %1671
        %v1673 = vrot.slane %v1672, 7
        %vm1674 = vcmask 515072
        %v1675 = vsel %vm1674, %v1673, %v1672
        %v1677 = vadd.f32 %v1649, %v1675
        %s1678 = scalar_lea.vmem [#allocation7], 54
        %v1679 = vld [vmem:[%s1678] ss:$8 sm:$0x3]
        %1681 = vrot.lane.b32.xlu0 %v1679, 15
        %v1682 = vpop.permute.xlu0 %1681
        %v1683 = vrot.slane %v1682, 7
        %vm1684 = vcmask 121856
        %v1685 = vsel %vm1684, %v1683, %v1682
        %v1687 = vmul.f32 %v1537, %v1685
        %s1688 = scalar_lea.vmem [#allocation9], 54
        %v1689 = vld [vmem:[%s1688] ss:$8 sm:$0x3]
        %1691 = vrot.lane.b32.xlu0 %v1689, 15
        %v1692 = vpop.permute.xlu0 %1691
        %v1693 = vrot.slane %v1692, 7
        %v1694 = vsel %vm1684, %v1693, %v1692
        %v1696 = vmul.f32 %v1548, %v1694
        %v1697 = vadd.f32 %v1687, %v1696
        %1699 = vrot.lane.b32.xlu0 %v1697, 62
        %v1700 = vpop.permute.xlu0 %1699
        %v1701 = vrot.slane %v1700, 7
        %vm1702 = vcmask 506880
        %v1703 = vsel %vm1702, %v1701, %v1700
        %v1705 = vadd.f32 %v1677, %v1703
        %s1706 = scalar_lea.vmem [#allocation7], 55
        %v1707 = vld [vmem:[%s1706] ss:$8 sm:$0x3]
        %1709 = vrot.lane.b32.xlu0 %v1707, 16
        %v1710 = vpop.permute.xlu0 %1709
        %v1711 = vrot.slane %v1710, 7
        %v1712 = vsel %vm479, %v1711, %v1710
        %v1714 = vmul.f32 %v1537, %v1712
        %s1715 = scalar_lea.vmem [#allocation9], 55
        %v1716 = vld [vmem:[%s1715] ss:$8 sm:$0x3]
        %1718 = vrot.lane.b32.xlu0 %v1716, 16
        %v1719 = vpop.permute.xlu0 %1718
        %v1720 = vrot.slane %v1719, 7
        %v1721 = vsel %vm479, %v1720, %v1719
        %v1723 = vmul.f32 %v1548, %v1721
        %v1724 = vadd.f32 %v1714, %v1723
        %1726 = vrot.lane.b32.xlu0 %v1724, 61
        %v1727 = vpop.permute.xlu0 %1726
        %v1728 = vrot.slane %v1727, 7
        %vm1729 = vcmask 498688
        %v1730 = vsel %vm1729, %v1728, %v1727
        %v1732 = vadd.f32 %v1705, %v1730
        %s1733 = scalar_lea.vmem [#allocation7], 64
        %v1734 = vld [vmem:[%s1733] ss:$8 sm:$0x3]
        %1736 = vrot.lane.b32.xlu0 %v1734, 17
        %v1737 = vpop.permute.xlu0 %1736
        %v1738 = vrot.slane %v1737, 7
        %vm1739 = vcmask 138240
        %v1740 = vsel %vm1739, %v1738, %v1737
        %v1742 = vmul.f32 %v1537, %v1740
        %s1743 = scalar_lea.vmem [#allocation9], 64
        %v1744 = vld [vmem:[%s1743] ss:$8 sm:$0x3]
        %1746 = vrot.lane.b32.xlu0 %v1744, 17
        %v1747 = vpop.permute.xlu0 %1746
        %v1748 = vrot.slane %v1747, 7
        %v1749 = vsel %vm1739, %v1748, %v1747
        %v1751 = vmul.f32 %v1548, %v1749
        %v1752 = vadd.f32 %v1742, %v1751
        %1754 = vrot.lane.b32.xlu0 %v1752, 60
        %v1755 = vpop.permute.xlu0 %1754
        %v1756 = vrot.slane %v1755, 7
        %vm1757 = vcmask 490496
        %v1758 = vsel %vm1757, %v1756, %v1755
        %v1760 = vadd.f32 %v1732, %v1758
        %s1761 = scalar_lea.vmem [#allocation7], 65
        %v1762 = vld [vmem:[%s1761] ss:$8 sm:$0x3]
        %1764 = vrot.lane.b32.xlu0 %v1762, 18
        %v1765 = vpop.permute.xlu0 %1764
        %v1766 = vrot.slane %v1765, 7
        %vm1767 = vcmask 146432
        %v1768 = vsel %vm1767, %v1766, %v1765
        %v1770 = vmul.f32 %v1537, %v1768
        %s1771 = scalar_lea.vmem [#allocation9], 65
        %v1772 = vld [vmem:[%s1771] ss:$8 sm:$0x3]
        %1774 = vrot.lane.b32.xlu0 %v1772, 18
        %v1775 = vpop.permute.xlu0 %1774
        %v1776 = vrot.slane %v1775, 7
        %v1777 = vsel %vm1767, %v1776, %v1775
        %v1779 = vmul.f32 %v1548, %v1777
        %v1780 = vadd.f32 %v1770, %v1779
        %1782 = vrot.lane.b32.xlu0 %v1780, 59
        %v1783 = vpop.permute.xlu0 %1782
        %v1784 = vrot.slane %v1783, 7
        %vm1785 = vcmask 482304
        %v1786 = vsel %vm1785, %v1784, %v1783
        %v1788 = vadd.f32 %v1760, %v1786
        %s1789 = scalar_lea.vmem [#allocation7], 66
        %v1790 = vld [vmem:[%s1789] ss:$8 sm:$0x3]
        %1792 = vrot.lane.b32.xlu0 %v1790, 19
        %v1793 = vpop.permute.xlu0 %1792
        %v1794 = vrot.slane %v1793, 7
        %vm1795 = vcmask 154624
        %v1796 = vsel %vm1795, %v1794, %v1793
        %v1798 = vmul.f32 %v1537, %v1796
        %s1799 = scalar_lea.vmem [#allocation9], 66
        %v1800 = vld [vmem:[%s1799] ss:$8 sm:$0x3]
        %1802 = vrot.lane.b32.xlu0 %v1800, 19
        %v1803 = vpop.permute.xlu0 %1802
        %v1804 = vrot.slane %v1803, 7
        %v1805 = vsel %vm1795, %v1804, %v1803
        %v1807 = vmul.f32 %v1548, %v1805
        %v1808 = vadd.f32 %v1798, %v1807
        %1810 = vrot.lane.b32.xlu0 %v1808, 58
        %v1811 = vpop.permute.xlu0 %1810
        %v1812 = vrot.slane %v1811, 7
        %vm1813 = vcmask 474112
        %v1814 = vsel %vm1813, %v1812, %v1811
        %v1816 = vadd.f32 %v1788, %v1814
        %s1817 = scalar_lea.vmem [#allocation7], 67
        %v1818 = vld [vmem:[%s1817] ss:$8 sm:$0x3]
        %1820 = vrot.lane.b32.xlu0 %v1818, 29
        %v1821 = vpop.permute.xlu0 %1820
        %v1822 = vrot.slane %v1821, 7
        %vm1823 = vcmask 236544
        %v1824 = vsel %vm1823, %v1822, %v1821
        %v1826 = vmul.f32 %v1537, %v1824
        %s1827 = scalar_lea.vmem [#allocation9], 67
        %v1828 = vld [vmem:[%s1827] ss:$8 sm:$0x3]
        %1830 = vrot.lane.b32.xlu0 %v1828, 29
        %v1831 = vpop.permute.xlu0 %1830
        %v1832 = vrot.slane %v1831, 7
        %v1833 = vsel %vm1823, %v1832, %v1831
        %v1835 = vmul.f32 %v1548, %v1833
        %v1836 = vadd.f32 %v1826, %v1835
        %1838 = vrot.lane.b32.xlu0 %v1836, 48
        %v1839 = vpop.permute.xlu0 %1838
        %v1840 = vrot.slane %v1839, 7
        %vm1841 = vcmask 392192
        %v1842 = vsel %vm1841, %v1840, %v1839
        %v1844 = vadd.f32 %v1816, %v1842
        %s1845 = scalar_lea.vmem [#allocation7], 68
        %v1846 = vld [vmem:[%s1845] ss:$8 sm:$0x3]
        %1848 = vrot.lane.b32.xlu0 %v1846, 30
        %v1849 = vpop.permute.xlu0 %1848
        %v1850 = vrot.slane %v1849, 7
        %vm1851 = vcmask 244736
        %v1852 = vsel %vm1851, %v1850, %v1849
        %v1854 = vmul.f32 %v1537, %v1852
        %s1855 = scalar_lea.vmem [#allocation9], 68
        %v1856 = vld [vmem:[%s1855] ss:$8 sm:$0x3]
        %1858 = vrot.lane.b32.xlu0 %v1856, 30
        %v1859 = vpop.permute.xlu0 %1858
        %v1860 = vrot.slane %v1859, 7
        %v1861 = vsel %vm1851, %v1860, %v1859
        %v1863 = vmul.f32 %v1548, %v1861
        %v1864 = vadd.f32 %v1854, %v1863
        %1866 = vrot.lane.b32.xlu0 %v1864, 47
        %v1867 = vpop.permute.xlu0 %1866
        %v1868 = vrot.slane %v1867, 7
        %vm1869 = vcmask 384000
        %v1870 = vsel %vm1869, %v1868, %v1867
        %v1872 = vadd.f32 %v1844, %v1870
        %s1873 = scalar_lea.vmem [#allocation7], 69
        %v1874 = vld [vmem:[%s1873] ss:$8 sm:$0x3]
        %1876 = vrot.lane.b32.xlu0 %v1874, 31
        %v1877 = vpop.permute.xlu0 %1876
        %v1878 = vrot.slane %v1877, 7
        %vm1879 = vcmask 252928
        %v1880 = vsel %vm1879, %v1878, %v1877
        %v1882 = vmul.f32 %v1537, %v1880
        %s1883 = scalar_lea.vmem [#allocation9], 69
        %v1884 = vld [vmem:[%s1883] ss:$8 sm:$0x3]
        %1886 = vrot.lane.b32.xlu0 %v1884, 31
        %v1887 = vpop.permute.xlu0 %1886
        %v1888 = vrot.slane %v1887, 7
        %v1889 = vsel %vm1879, %v1888, %v1887
        %v1891 = vmul.f32 %v1548, %v1889
        %v1892 = vadd.f32 %v1882, %v1891
        %1894 = vrot.lane.b32.xlu0 %v1892, 46
        %v1895 = vpop.permute.xlu0 %1894
        %v1896 = vrot.slane %v1895, 7
        %vm1897 = vcmask 375808
        %v1898 = vsel %vm1897, %v1896, %v1895
        %v1900 = vadd.f32 %v1872, %v1898
        %s1901 = scalar_lea.vmem [#allocation7], 70
        %v1902 = vld [vmem:[%s1901] ss:$8 sm:$0x3]
        %1904 = vrot.lane.b32.xlu0 %v1902, 32
        %v1905 = vpop.permute.xlu0 %1904
        %v1906 = vrot.slane %v1905, 7
        %vm1907 = vcmask 261120
        %v1908 = vsel %vm1907, %v1906, %v1905
        %v1910 = vmul.f32 %v1537, %v1908
        %s1911 = scalar_lea.vmem [#allocation9], 70
        %v1912 = vld [vmem:[%s1911] ss:$8 sm:$0x3]
        %1914 = vrot.lane.b32.xlu0 %v1912, 32
        %v1915 = vpop.permute.xlu0 %1914
        %v1916 = vrot.slane %v1915, 7
        %v1917 = vsel %vm1907, %v1916, %v1915
        %v1919 = vmul.f32 %v1548, %v1917
        %v1920 = vadd.f32 %v1910, %v1919
        %1922 = vrot.lane.b32.xlu0 %v1920, 45
        %v1923 = vpop.permute.xlu0 %1922
        %v1924 = vrot.slane %v1923, 7
        %vm1925 = vcmask 367616
        %v1926 = vsel %vm1925, %v1924, %v1923
        %v1928 = vadd.f32 %v1900, %v1926
        %s1929 = scalar_lea.vmem [#allocation7], 71
        %v1930 = vld [vmem:[%s1929] ss:$8 sm:$0x3]
        %1932 = vrot.lane.b32.xlu0 %v1930, 33
        %v1933 = vpop.permute.xlu0 %1932
        %v1934 = vrot.slane %v1933, 7
        %vm1935 = vcmask 269312
        %v1936 = vsel %vm1935, %v1934, %v1933
        %v1938 = vmul.f32 %v1537, %v1936
        %s1939 = scalar_lea.vmem [#allocation9], 71
        %v1940 = vld [vmem:[%s1939] ss:$8 sm:$0x3]
        %1942 = vrot.lane.b32.xlu0 %v1940, 33
        %v1943 = vpop.permute.xlu0 %1942
        %v1944 = vrot.slane %v1943, 7
        %v1945 = vsel %vm1935, %v1944, %v1943
        %v1947 = vmul.f32 %v1548, %v1945
        %v1948 = vadd.f32 %v1938, %v1947
        %1950 = vrot.lane.b32.xlu0 %v1948, 44
        %v1951 = vpop.permute.xlu0 %1950
        %v1952 = vrot.slane %v1951, 7
        %vm1953 = vcmask 359424
        %v1954 = vsel %vm1953, %v1952, %v1951
        %v1956 = vadd.f32 %v1928, %v1954
        %s1957 = scalar_lea.vmem [#allocation7], 80
        %v1958 = vld [vmem:[%s1957] ss:$8 sm:$0x3]
        %1960 = vrot.lane.b32.xlu0 %v1958, 34
        %v1961 = vpop.permute.xlu0 %1960
        %v1962 = vrot.slane %v1961, 7
        %vm1963 = vcmask 277504
        %v1964 = vsel %vm1963, %v1962, %v1961
        %v1966 = vmul.f32 %v1537, %v1964
        %s1967 = scalar_lea.vmem [#allocation9], 80
        %v1968 = vld [vmem:[%s1967] ss:$8 sm:$0x3]
        %1970 = vrot.lane.b32.xlu0 %v1968, 34
        %v1971 = vpop.permute.xlu0 %1970
        %v1972 = vrot.slane %v1971, 7
        %v1973 = vsel %vm1963, %v1972, %v1971
        %v1975 = vmul.f32 %v1548, %v1973
        %v1976 = vadd.f32 %v1966, %v1975
        %1978 = vrot.lane.b32.xlu0 %v1976, 43
        %v1979 = vpop.permute.xlu0 %1978
        %v1980 = vrot.slane %v1979, 7
        %vm1981 = vcmask 351232
        %v1982 = vsel %vm1981, %v1980, %v1979
        %v1984 = vadd.f32 %v1956, %v1982
        %s1985 = scalar_lea.vmem [#allocation7], 81
        %v1986 = vld [vmem:[%s1985] ss:$8 sm:$0x3]
        %1988 = vrot.lane.b32.xlu0 %v1986, 35
        %v1989 = vpop.permute.xlu0 %1988
        %v1990 = vrot.slane %v1989, 7
        %vm1991 = vcmask 285696
        %v1992 = vsel %vm1991, %v1990, %v1989
        %v1994 = vmul.f32 %v1537, %v1992
        %s1995 = scalar_lea.vmem [#allocation9], 81
        %v1996 = vld [vmem:[%s1995] ss:$8 sm:$0x3]
        %1998 = vrot.lane.b32.xlu0 %v1996, 35
        %v1999 = vpop.permute.xlu0 %1998
        %v2000 = vrot.slane %v1999, 7
        %v2001 = vsel %vm1991, %v2000, %v1999
        %v2003 = vmul.f32 %v1548, %v2001
        %v2004 = vadd.f32 %v1994, %v2003
        %2006 = vrot.lane.b32.xlu0 %v2004, 42
        %v2007 = vpop.permute.xlu0 %2006
        %v2008 = vrot.slane %v2007, 7
        %vm2009 = vcmask 343040
        %v2010 = vsel %vm2009, %v2008, %v2007
        %v2012 = vadd.f32 %v1984, %v2010
        %s2013 = scalar_lea.vmem [#allocation7], 82
        %v2014 = vld [vmem:[%s2013] ss:$8 sm:$0x3]
        %2016 = vrot.lane.b32.xlu0 %v2014, 45
        %v2017 = vpop.permute.xlu0 %2016
        %v2018 = vrot.slane %v2017, 7
        %v2019 = vsel %vm1925, %v2018, %v2017
        %v2021 = vmul.f32 %v1537, %v2019
        %s2022 = scalar_lea.vmem [#allocation9], 82
        %v2023 = vld [vmem:[%s2022] ss:$8 sm:$0x3]
        %2025 = vrot.lane.b32.xlu0 %v2023, 45
        %v2026 = vpop.permute.xlu0 %2025
        %v2027 = vrot.slane %v2026, 7
        %v2028 = vsel %vm1925, %v2027, %v2026
        %v2030 = vmul.f32 %v1548, %v2028
        %v2031 = vadd.f32 %v2021, %v2030
        %2033 = vrot.lane.b32.xlu0 %v2031, 32
        %v2034 = vpop.permute.xlu0 %2033
        %v2035 = vrot.slane %v2034, 7
        %v2036 = vsel %vm1907, %v2035, %v2034
        %v2038 = vadd.f32 %v2012, %v2036
        %s2039 = scalar_lea.vmem [#allocation7], 83
        %v2040 = vld [vmem:[%s2039] ss:$8 sm:$0x3]
        %2042 = vrot.lane.b32.xlu0 %v2040, 46
        %v2043 = vpop.permute.xlu0 %2042
        %v2044 = vrot.slane %v2043, 7
        %v2045 = vsel %vm1897, %v2044, %v2043
        %v2047 = vmul.f32 %v1537, %v2045
        %s2048 = scalar_lea.vmem [#allocation9], 83
        %v2049 = vld [vmem:[%s2048] ss:$8 sm:$0x3]
        %2051 = vrot.lane.b32.xlu0 %v2049, 46
        %v2052 = vpop.permute.xlu0 %2051
        %v2053 = vrot.slane %v2052, 7
        %v2054 = vsel %vm1897, %v2053, %v2052
        %v2056 = vmul.f32 %v1548, %v2054
        %v2057 = vadd.f32 %v2047, %v2056
        %2059 = vrot.lane.b32.xlu0 %v2057, 31
        %v2060 = vpop.permute.xlu0 %2059
        %v2061 = vrot.slane %v2060, 7
        %v2062 = vsel %vm1879, %v2061, %v2060
        %v2064 = vadd.f32 %v2038, %v2062
        %s2065 = scalar_lea.vmem [#allocation7], 84
        %v2066 = vld [vmem:[%s2065] ss:$8 sm:$0x3]
        %2068 = vrot.lane.b32.xlu0 %v2066, 47
        %v2069 = vpop.permute.xlu0 %2068
        %v2070 = vrot.slane %v2069, 7
        %v2071 = vsel %vm1869, %v2070, %v2069
        %v2073 = vmul.f32 %v1537, %v2071
        %s2074 = scalar_lea.vmem [#allocation9], 84
        %v2075 = vld [vmem:[%s2074] ss:$8 sm:$0x3]
        %2077 = vrot.lane.b32.xlu0 %v2075, 47
        %v2078 = vpop.permute.xlu0 %2077
        %v2079 = vrot.slane %v2078, 7
        %v2080 = vsel %vm1869, %v2079, %v2078
        %v2082 = vmul.f32 %v1548, %v2080
        %v2083 = vadd.f32 %v2073, %v2082
        %2085 = vrot.lane.b32.xlu0 %v2083, 30
        %v2086 = vpop.permute.xlu0 %2085
        %v2087 = vrot.slane %v2086, 7
        %v2088 = vsel %vm1851, %v2087, %v2086
        %v2090 = vadd.f32 %v2064, %v2088
        %s2091 = scalar_lea.vmem [#allocation7], 85
        %v2092 = vld [vmem:[%s2091] ss:$8 sm:$0x3]
        %2094 = vrot.lane.b32.xlu0 %v2092, 48
        %v2095 = vpop.permute.xlu0 %2094
        %v2096 = vrot.slane %v2095, 7
        %v2097 = vsel %vm1841, %v2096, %v2095
        %v2099 = vmul.f32 %v1537, %v2097
        %s2100 = scalar_lea.vmem [#allocation9], 85
        %v2101 = vld [vmem:[%s2100] ss:$8 sm:$0x3]
        %2103 = vrot.lane.b32.xlu0 %v2101, 48
        %v2104 = vpop.permute.xlu0 %2103
        %v2105 = vrot.slane %v2104, 7
        %v2106 = vsel %vm1841, %v2105, %v2104
        %v2108 = vmul.f32 %v1548, %v2106
        %v2109 = vadd.f32 %v2099, %v2108
        %2111 = vrot.lane.b32.xlu0 %v2109, 29
        %v2112 = vpop.permute.xlu0 %2111
        %v2113 = vrot.slane %v2112, 7
        %v2114 = vsel %vm1823, %v2113, %v2112
        %v2116 = vadd.f32 %v2090, %v2114
        %s2117 = scalar_lea.vmem [#allocation7], 86
        %v2118 = vld [vmem:[%s2117] ss:$8 sm:$0x3]
        %2120 = vrot.lane.b32.xlu0 %v2118, 49
        %v2121 = vpop.permute.xlu0 %2120
        %v2122 = vrot.slane %v2121, 7
        %vm2123 = vcmask 400384
        %v2124 = vsel %vm2123, %v2122, %v2121
        %v2126 = vmul.f32 %v1537, %v2124
        %s2127 = scalar_lea.vmem [#allocation9], 86
        %v2128 = vld [vmem:[%s2127] ss:$8 sm:$0x3]
        %2130 = vrot.lane.b32.xlu0 %v2128, 49
        %v2131 = vpop.permute.xlu0 %2130
        %v2132 = vrot.slane %v2131, 7
        %v2133 = vsel %vm2123, %v2132, %v2131
        %v2135 = vmul.f32 %v1548, %v2133
        %v2136 = vadd.f32 %v2126, %v2135
        %2138 = vrot.lane.b32.xlu0 %v2136, 28
        %v2139 = vpop.permute.xlu0 %2138
        %v2140 = vrot.slane %v2139, 7
        %vm2141 = vcmask 228352
        %v2142 = vsel %vm2141, %v2140, %v2139
        %v2144 = vadd.f32 %v2116, %v2142
        %s2145 = scalar_lea.vmem [#allocation7], 87
        %v2146 = vld [vmem:[%s2145] ss:$8 sm:$0x3]
        %2148 = vrot.lane.b32.xlu0 %v2146, 50
        %v2149 = vpop.permute.xlu0 %2148
        %v2150 = vrot.slane %v2149, 7
        %vm2151 = vcmask 408576
        %v2152 = vsel %vm2151, %v2150, %v2149
        %v2154 = vmul.f32 %v1537, %v2152
        %s2155 = scalar_lea.vmem [#allocation9], 87
        %v2156 = vld [vmem:[%s2155] ss:$8 sm:$0x3]
        %2158 = vrot.lane.b32.xlu0 %v2156, 50
        %v2159 = vpop.permute.xlu0 %2158
        %v2160 = vrot.slane %v2159, 7
        %v2161 = vsel %vm2151, %v2160, %v2159
        %v2163 = vmul.f32 %v1548, %v2161
        %v2164 = vadd.f32 %v2154, %v2163
        %2166 = vrot.lane.b32.xlu0 %v2164, 27
        %v2167 = vpop.permute.xlu0 %2166
        %v2168 = vrot.slane %v2167, 7
        %vm2169 = vcmask 220160
        %v2170 = vsel %vm2169, %v2168, %v2167
        %v2172 = vadd.f32 %v2144, %v2170
        %s2173 = scalar_lea.vmem [#allocation7], 96
        %v2174 = vld [vmem:[%s2173] ss:$8 sm:$0x3]
        %2176 = vrot.lane.b32.xlu0 %v2174, 51
        %v2177 = vpop.permute.xlu0 %2176
        %v2178 = vrot.slane %v2177, 7
        %vm2179 = vcmask 416768
        %v2180 = vsel %vm2179, %v2178, %v2177
        %v2182 = vmul.f32 %v1537, %v2180
        %s2183 = scalar_lea.vmem [#allocation9], 96
        %v2184 = vld [vmem:[%s2183] ss:$8 sm:$0x3]
        %2186 = vrot.lane.b32.xlu0 %v2184, 51
        %v2187 = vpop.permute.xlu0 %2186
        %v2188 = vrot.slane %v2187, 7
        %v2189 = vsel %vm2179, %v2188, %v2187
        %v2191 = vmul.f32 %v1548, %v2189
        %v2192 = vadd.f32 %v2182, %v2191
        %2194 = vrot.lane.b32.xlu0 %v2192, 26
        %v2195 = vpop.permute.xlu0 %2194
        %v2196 = vrot.slane %v2195, 7
        %vm2197 = vcmask 211968
        %v2198 = vsel %vm2197, %v2196, %v2195
        %v2200 = vadd.f32 %v2172, %v2198
        %v2201 = vxor.u32 %v2200, 2147483648
        %v2202 = vmul.f32 %v2201, 1.442695
        %v2203 = vpow.pop %v2202
        %v2204 = vadd.f32 %v2203, 1.0
        %v2205 = vrcp.pop %v2204
        %v2206 = vmul.f32 1.0, %v2205
        %v2207 = vld [vmem:[%s237] sm:$0xff]
        %v2208 = vld [vmem:[%s237 + $0x8] sm:$0xff]
        %v2209 = vld [vmem:[%s237 + $0x10] sm:$0xff]
        %v2210 = vld [vmem:[%s237 + $0x18] sm:$0xff]
        %v2211 = vld [vmem:[%s237 + $0x20] sm:$0xff]
        %v2212 = vld [vmem:[%s237 + $0x28] sm:$0xff]
        %v2213 = vld [vmem:[%s237 + $0x30] sm:$0xff]
        %v2214 = vld [vmem:[%s237 + $0x38] sm:$0xff]
        %v2215 = vld [vmem:[%s237 + $0x40] sm:$0xff]
        %v2216 = vld [vmem:[%s237 + $0x48] sm:$0xff]
        %v2217 = vld [vmem:[%s237 + $0x50] sm:$0xff]
        %v2218 = vld [vmem:[%s237 + $0x58] sm:$0xff]
        %v2219 = vld [vmem:[%s237 + $0x60] sm:$0xff]
        %v2220 = vld [vmem:[%s237 + $0x68] sm:$0xff]
        %v2221 = vld [vmem:[%s237 + $0x70] sm:$0xff]
        %v2222 = vld [vmem:[%s237 + $0x78] sm:$0xff]
        %v2223 = vmul.f32 %v2207, %v722
        %v2224 = vmul.f32 %v2208, %v722
        %v2225 = vmul.f32 %v2209, %v727
        %v2226 = vmul.f32 %v2210, %v727
        %v2227 = vmul.f32 %v2211, %v732
        %v2228 = vmul.f32 %v2212, %v732
        %v2229 = vmul.f32 %v2213, %v737
        %v2230 = vmul.f32 %v2214, %v737
        %v2231 = vmul.f32 %v2215, %v742
        %v2232 = vmul.f32 %v2216, %v742
        %v2233 = vmul.f32 %v2217, %v747
        %v2234 = vmul.f32 %v2218, %v747
        %v2235 = vmul.f32 %v2219, %v752
        %v2236 = vmul.f32 %v2220, %v752
        %v2237 = vmul.f32 %v2221, %v757
        %v2238 = vmul.f32 %v2222, %v757
        %v2240 = vlaneseq
        %v2241 = vshrl.u32 %v2240, 7
        %v2242 = vsub.s32 0, %v2241
        %v2243 = vrot.slane %v2206, %v2242
        %v2244 = vlaneseq
        %v2245 = vshrl.u32 %v2244, 7
        %v2246 = vsub.s32 1, %v2245
        %v2247 = vrot.slane %v2206, %v2246
        %v2248 = vlaneseq
        %v2249 = vshrl.u32 %v2248, 7
        %v2250 = vsub.s32 2, %v2249
        %v2251 = vrot.slane %v2206, %v2250
        %2252 = vrot.lane.b32.xlu0 %v2243, 51
        %v2253 = vpop.permute.xlu0 %2252
        %2254 = vrot.lane.b32.xlu0 %v2247, 51
        %v2255 = vpop.permute.xlu0 %2254
        %2256 = vrot.lane.b32.xlu0 %v2251, 51
        %v2257 = vpop.permute.xlu0 %2256
        %v2258 = vsel %vm2179, %v2253, %v2255
        %v2259 = vsel %vm2179, %v2255, %v2257
        %v2262 = vmul.f32 %v2223, %v2258
        %v2263 = vmul.f32 %v2224, %v2259
        %v2264 = vmul.f32 %v2225, %v2258
        %v2265 = vmul.f32 %v2226, %v2259
        %v2266 = vmul.f32 %v2227, %v2258
        %v2267 = vmul.f32 %v2228, %v2259
        %v2268 = vmul.f32 %v2229, %v2258
        %v2269 = vmul.f32 %v2230, %v2259
        %v2270 = vmul.f32 %v2231, %v2258
        %v2271 = vmul.f32 %v2232, %v2259
        %v2272 = vmul.f32 %v2233, %v2258
        %v2273 = vmul.f32 %v2234, %v2259
        %v2274 = vmul.f32 %v2235, %v2258
        %v2275 = vmul.f32 %v2236, %v2259
        %v2276 = vmul.f32 %v2237, %v2258
        %v2277 = vmul.f32 %v2238, %v2259
        %2278 = vst [vmem:[%s271] sm:$0xff] %v2262
        %2279 = vst [vmem:[%s271 + $0x8] sm:$0xff] %v2263
        %2280 = vst [vmem:[%s271 + $0x10] sm:$0xff] %v2264
        %2281 = vst [vmem:[%s271 + $0x18] sm:$0xff] %v2265
        %2282 = vst [vmem:[%s271 + $0x20] sm:$0xff] %v2266
        %2283 = vst [vmem:[%s271 + $0x28] sm:$0xff] %v2267
        %2284 = vst [vmem:[%s271 + $0x30] sm:$0xff] %v2268
        %2285 = vst [vmem:[%s271 + $0x38] sm:$0xff] %v2269
        %2286 = vst [vmem:[%s271 + $0x40] sm:$0xff] %v2270
        %2287 = vst [vmem:[%s271 + $0x48] sm:$0xff] %v2271
        %2288 = vst [vmem:[%s271 + $0x50] sm:$0xff] %v2272
        %2289 = vst [vmem:[%s271 + $0x58] sm:$0xff] %v2273
        %2290 = vst [vmem:[%s271 + $0x60] sm:$0xff] %v2274
        %2291 = vst [vmem:[%s271 + $0x68] sm:$0xff] %v2275
        %2292 = vst [vmem:[%s271 + $0x70] sm:$0xff] %v2276
        %2293 = vst [vmem:[%s271 + $0x78] sm:$0xff] %v2277
        %s2294 = sand.u32 %s141, 1
        %s2295 = scalar_lea.sflag [#allocation6], %s2294
        %s2296 = sand.u32 %s141, 1
        %s2297 = smul.addr %s2296, 128
        %s2298 = scalar_lea.vmem [#allocation10], %s2297
        // Predicated region
        $region53: #{tpu_custom_call.1} parent=39 // pred_check
          %p2299 = pneg %p151
        $region54: #{tpu_custom_call.1} parent=39 // pred_check_branch
          %2301 = sbr.rel (%p2299) target = $region56
        $region55: #{tpu_custom_call.1} parent=39 // pred_region
          %s2303 = ssub.s32 2048, 2048
          %2304 = vsyncadd %s2295, %s2303
          %s2305 = smul.addr %s23, 16
          %s2306 = smul.addr %s2305, 128
          %s2307 = scalar_lea.hbm %s5, %s2306
          %s2308 = sshll.u32 %s2298, 4
          %s2309 = int_to_ptr.vmem [resolvable:$true] %s2308
          %2314 = dma.vmem_to_hbm [thread:$0]  %s2309, 2048, %s2307, %s2295, 256, 256, 16
        $region56: #{tpu_custom_call.1} parent=39 // pred_fallthru
          _
      $region40: #{tpu_custom_call.1} parent=5 // pred_fallthru
        _
      %p2315 = scmp.le.s32.totalorder 2, %s18
      // Predicated region
      $region57: #{tpu_custom_call.1} parent=5 // pred_check
        %p2316 = pneg %p2315
      $region58: #{tpu_custom_call.1} parent=5 // pred_check_branch
        %2318 = sbr.rel (%p2316) target = $region60
      $region59: #{tpu_custom_call.1} parent=5 // pred_region
        %s2319 = ssub.s32 %s18, 2
        // Predicated region
        $region61: #{tpu_custom_call.1} parent=59 // pred_check
          %p2320 = pneg %p157
        $region62: #{tpu_custom_call.1} parent=59 // pred_check_branch
          %2322 = sbr.rel (%p2320) target = $region64
        $region63: #{tpu_custom_call.1} parent=59 // pred_region
          %s2323 = sand.u32 %s142, 1
          %s2324 = scalar_lea.sflag [#allocation6], %s2323
          %s2325 = sand.u32 %s142, 1
          %s2326 = smul.addr %s2325, 128
          %s2327 = scalar_lea.vmem [#allocation10], %s2326
          %2328 = dma.done %s2324, 2048
        $region64: #{tpu_custom_call.1} parent=59 // pred_fallthru
          _
      $region60: #{tpu_custom_call.1} parent=5 // pred_fallthru
        _
    $region6: #{tpu_custom_call.1} parent=1 // loop_footer
      %s22 = sadd.s32 1, %s18
    $region7: #{tpu_custom_call.1} parent=1 // loop_footer_branch
      %17 = sbr.rel target = $region3
    $region8: #{tpu_custom_call.1} parent=1 // loop_exit
      _
    %2329 = vsyncpa [#allocation5], 1
    %s2330 = scalar_lea.sflag [#allocation5], 1
    %2331 = vsyncpa %s2330, 1
    %2332 = vsyncpa [#allocation8], 1
    %2333 = vsyncpa [#allocation6], 1
    %s2334 = scalar_lea.sflag [#allocation6], 1
    %2335 = vsyncpa %s2334, 1

</llo_original>
